<compile_context>
chip_gen: v6e
topology: v6e:2x2x1
jax: 0.10.0
libtpu: 0.0.40
codegen_flags: <defaults>
</compile_context>

<pallas_src>
import functools

import jax
import jax.numpy as jnp
from jax.experimental import pallas as pl
from jax.experimental.pallas import tpu as pltpu


# ----------------------------------------------------------------------------
# In-kernel elementwise helpers (VPU / EUP)
# ----------------------------------------------------------------------------
def _erf(x):
    # Abramowitz & Stegun 7.1.26 polynomial erf (|err| < 1.5e-7); nn.GELU()
    # default uses exact erf, so we keep the erf form (per review guidance).
    a1, a2, a3, a4, a5 = 0.254829592, -0.284496736, 1.421413741, -1.453152027, 1.061405429
    p = 0.3275911
    sgn = jnp.where(x >= 0.0, 1.0, -1.0)
    ax = jnp.abs(x)
    t = 1.0 / (1.0 + p * ax)
    poly = ((((a5 * t + a4) * t + a3) * t + a2) * t + a1) * t
    return sgn * (1.0 - poly * jnp.exp(-ax * ax))


def _gelu(x):
    return 0.5 * x * (1.0 + _erf(x * 0.7071067811865476))


def _layer_norm(y, g, b, eps=1e-5):
    mu = jnp.mean(y, axis=-1, keepdims=True)
    var = jnp.mean(jnp.square(y - mu), axis=-1, keepdims=True)
    return (y - mu) * jax.lax.rsqrt(var + eps) * g + b


# ----------------------------------------------------------------------------
# Fused per-class decoder kernel.  grid = (n_classes,).  One grid step computes
# the whole SingleClassDecoder forward for ALL batch elements (batch folded
# into the matmul row dimension).
# ----------------------------------------------------------------------------
def _fused_decoder_kernel(*refs, B, T, C, H, P, expand, has_down):
    out_ref, attn_ref = refs[-2], refs[-1]
    it = iter(refs[:-2])

    x_ref = next(it)                                   # blocked per class [1, B*T, C]
    tcn_refs = [tuple(next(it) for _ in range(4)) for _ in range(3)]
    if has_down:
        wd_ref, bd_ref = next(it), next(it)
    wt_ref, bt_ref = next(it), next(it)
    wa1_ref, ba1_ref = next(it), next(it)              # projection pre-composed in
    wa2_ref, ba2_ref = next(it), next(it)
    g_ref, beta_ref = next(it), next(it)
    wl_ref, bl_ref = next(it), next(it)
    if expand:
        pos_ref = next(it)
        tw1_ref, tb1_ref = next(it), next(it)
        tw2_ref, tb2_ref = next(it), next(it)
    fw1_ref, fb1_ref = next(it), next(it)
    fg_ref, fbeta_ref = next(it), next(it)
    fw2_ref, fb2_ref = next(it), next(it)

    cls = pl.program_id(0)
    f32, bf16 = jnp.float32, jnp.bfloat16
    R = B * T

    # within-batch time index of every folded row (masks conv taps at batch edges)
    t_idx = jax.lax.broadcasted_iota(jnp.int32, (R, 1), 0) % T

    def mm(a, w_ref, b_ref):
        # [rows, K] activation @ per-class VMEM-resident bf16 weight [K, N] + f32 bias
        return (jnp.dot(a.astype(bf16), w_ref[cls], preferred_element_type=f32)
                + b_ref[cls])

    def conv_relu(h, w_ref, b_ref, d):
        # dilated "same" Conv1d (kernel 3, dilation d) as ONE im2col matmul.
        cin = h.shape[-1]
        hb = h.astype(bf16)                                    # cast once per conv
        zpad = jnp.zeros((d, cin), bf16)
        prev = jnp.concatenate([zpad, hb[:R - d, :]], axis=0)  # x[t - d] (global shift)
        nxt = jnp.concatenate([hb[d:, :], zpad], axis=0)       # x[t + d]
        prev = jnp.where(t_idx >= d, prev, jnp.zeros_like(prev))       # batch boundary
        nxt = jnp.where(t_idx < T - d, nxt, jnp.zeros_like(nxt))
        cols = jnp.concatenate([prev, hb, nxt], axis=-1)       # [R, 3*cin]
        z = jnp.dot(cols, w_ref[cls], preferred_element_type=f32) + b_ref[cls]
        return jnp.maximum(z, 0.0)

    def temporal_block(h, refs4, d, down):
        w1_ref, b1_ref, w2_ref, b2_ref = refs4
        z = conv_relu(h, w1_ref, b1_ref, d)
        z = conv_relu(z, w2_ref, b2_ref, d)
        res = mm(h, *down) if down is not None else h
        return jnp.maximum(z + res, 0.0)

    # --- TCN trunk: 3 TemporalBlocks, dilations 1, 2, 4 (batch folded into rows) ---
    h = x_ref[0]                                               # [B*T, C] f32
    h = temporal_block(h, tcn_refs[0], 1, (wd_ref, bd_ref) if has_down else None)
    h = temporal_block(h, tcn_refs[1], 2, None)
    h = temporal_block(h, tcn_refs[2], 4, None)

    # --- TCN linear + (projection ∘ attention) MLP + LayerNorm + linear ---
    tcn_out = mm(h, wt_ref, bt_ref)                            # [R, C]
    attn = mm(_gelu(mm(tcn_out, wa1_ref, ba1_ref)), wa2_ref, ba2_ref)
    attn_ref[0] = attn                                         # one store per class
    fused = mm(_layer_norm(attn + tcn_out, g_ref[cls], beta_ref[cls]),
               wl_ref, bl_ref)                                 # [R, H]

    # --- prediction window / positional-expansion branch ---
    if expand:                                                 # pred_step > T
        pos_c = pos_ref[cls]                                   # [P, H]
        expanded = jnp.concatenate(
            [fused[b * T + T - 1:b * T + T, :] + pos_c for b in range(B)],
            axis=0)                                            # [B*P, H]
        last = mm(_gelu(mm(expanded, tw1_ref, tb1_ref)), tw2_ref, tb2_ref)
    elif P == 1:                                               # window mean, squeeze(-1)
        last = jnp.concatenate(
            [jnp.mean(fused[b * T:(b + 1) * T, :], axis=0, keepdims=True)
             for b in range(B)], axis=0)                       # [B, H]
    else:                                                      # P <= T, P > 1 (P == H)
        num_w = T - P + 1
        ti = jax.lax.broadcasted_iota(jnp.int32, (T, P), 0)
        pi = jax.lax.broadcasted_iota(jnp.int32, (T, P), 1)
        avg = ((ti >= pi) & (ti < pi + num_w)).astype(f32) * (1.0 / num_w)  # [T, P]
        last = jnp.concatenate(
            [jnp.dot(fused[b * T:(b + 1) * T, :].T, avg,
                     preferred_element_type=f32) for b in range(B)],
            axis=0)                                            # [B*H, P]

    # --- fc head: Linear -> LayerNorm -> GELU -> spectral-norm Linear(H, 1) ---
    z = _gelu(_layer_norm(mm(last, fw1_ref, fb1_ref), fg_ref[cls], fbeta_ref[cls]))
    # lane-dense logits: ONE [1, M] row store per grid step (f32 head, tiny).
    out_ref[0] = (jnp.dot(fw2_ref[cls], z.T, preferred_element_type=f32)
                  + fb2_ref[cls])


# ----------------------------------------------------------------------------
# pallas_call wrapper
# ----------------------------------------------------------------------------
def fused_multi_decoder(xc, params, pred_step, B, T):
    NC, R, C = xc.shape                       # R == B*T
    H = params["lin_w"].shape[-1]
    P = pred_step
    expand = P > T
    has_down = "tcn0_wd" in params

    ins = [xc]
    for i in range(3):
        ins += [params[f"tcn{i}_w1"], params[f"tcn{i}_b1"],
                params[f"tcn{i}_w2"], params[f"tcn{i}_b2"]]
    if has_down:
        ins += [params["tcn0_wd"], params["tcn0_bd"]]
    ins += [params["tcn_lin_w"], params["tcn_lin_b"],
            params["attn_w1"], params["attn_b1"],
            params["attn_w2"], params["attn_b2"],
            params["ln_g"], params["ln_b"],
            params["lin_w"], params["lin_b"]]
    if expand:
        ins += [params["pos"], params["tp_w1"], params["tp_b1"],
                params["tp_w2"], params["tp_b2"]]
    ins += [params["fc_w1"], params["fc_b1"], params["fc_ln_g"],
            params["fc_ln_b"], params["fc_w2"], params["fc_b2"]]

    if expand:
        M = B * P
    elif P == 1:
        M = B
    else:
        if P != H:
            raise ValueError("pred_step <= T with pred_step > 1 requires "
                             "pred_step == hidden_dim (as in the PyTorch module).")
        M = B * H

    # x is blocked per class; every weight/bias is a whole-array VMEM resident.
    resident = pl.BlockSpec(memory_space=pltpu.MemorySpace.VMEM)
    in_specs = ([pl.BlockSpec((1, R, C), lambda c: (c, 0, 0))]
                + [resident for _ in ins[1:]])

    # Advisory cost estimate (helps XLA schedule this small custom call).
    mac = R * 3 * C * H + R * 3 * H * H + 4 * R * 3 * H * H
    if has_down:
        mac += R * C * H
    mac += R * H * C + 2 * R * C * C + R * C * H
    if expand:
        mac += M * H * 4 * H + M * 4 * H * H
    elif P > 1:
        mac += B * H * T * P
    mac += M * H * H + M * H
    gelu_elems = R * C + (M * 4 * H if expand else 0) + M * H
    cost = pl.CostEstimate(
        flops=int(2 * mac * NC),
        transcendentals=int(NC * gelu_elems),
        bytes_accessed=int(sum(a.size * a.dtype.itemsize for a in ins)
                           + NC * (M + R * C) * 4))

    kern = functools.partial(_fused_decoder_kernel, B=B, T=T, C=C, H=H, P=P,
                             expand=expand, has_down=has_down)
    logits, attn = pl.pallas_call(
        kern,
        grid=(NC,),
        in_specs=in_specs,
        out_specs=(pl.BlockSpec((1, 1, M), lambda c: (c, 0, 0)),
                   pl.BlockSpec((1, R, C), lambda c: (c, 0, 0))),
        out_shape=(jax.ShapeDtypeStruct((NC, 1, M), jnp.float32),
                   jax.ShapeDtypeStruct((NC, R, C), jnp.float32)),
        compiler_params=pltpu.CompilerParams(
            dimension_semantics=("parallel",)),
        cost_estimate=cost,
    )(*ins)
    return logits, attn


# ----------------------------------------------------------------------------
# Full MultiDecoder forward
# ----------------------------------------------------------------------------
def multi_decoder_forward(params, x, pred_step, interp=False):
    # x: [B, T, concept_dim, n_classes]  (matches the PyTorch docstring)
    B, T, C, NC = x.shape
    H = params["lin_w"].shape[-1]
    P = pred_step

    # x.permute(0, 3, 1, 2) -> per-class [B, T, C]; fold batch into rows (free XLA).
    xc = jnp.transpose(x, (3, 0, 1, 2)).reshape(NC, B * T, C)
    logits, attn = fused_multi_decoder(xc, params, P, B, T)   # [NC,1,M], [NC,B*T,C]

    if P > T:
        out = jnp.transpose(logits.reshape(NC, B, P), (1, 2, 0))   # [B, P, NC]
    elif P == 1:
        out = jnp.transpose(logits.reshape(NC, B), (1, 0))         # [B, NC]
    else:                                                          # P == H case
        out = jnp.transpose(logits.reshape(NC, B, H), (1, 2, 0))   # [B, H, NC]

    if interp:
        attn_maps = attn.reshape(NC, B, T, C)
        return out, [attn_maps[i] for i in range(NC)]
    return out


# ----------------------------------------------------------------------------
# Deterministic synthetic parameters (weight_norm / spectral_norm / proj∘attn1
# resolved here, at parameter-prep time)
# ----------------------------------------------------------------------------
def init_params(key, NC, C, H, P):
    keys = iter(jax.random.split(key, 64))

    def nrm(shape, scale):
        return scale * jax.random.normal(next(keys), shape, jnp.float32)

    def kaiming(shape):                      # (..., fan_in, fan_out)
        return nrm(shape, (2.0 / shape[-2]) ** 0.5)

    bf = lambda a: a.astype(jnp.bfloat16)    # matmul weights kept in bf16

    def conv_w(cin, cout):
        # weight_norm(Conv1d): effective weight == raw weight at init.
        # Stored as im2col slab [K*Cin, Cout], taps ordered (t-d, t, t+d).
        return bf(nrm((NC, 3, cin, cout), 0.1).reshape(NC, 3 * cin, cout))

    p = {}
    cin = C
    for i in range(3):
        p[f"tcn{i}_w1"] = conv_w(cin, H)
        p[f"tcn{i}_b1"] = nrm((NC, 1, H), 0.05)
        p[f"tcn{i}_w2"] = conv_w(H, H)
        p[f"tcn{i}_b2"] = nrm((NC, 1, H), 0.05)
        cin = H
    if C != H:                                             # downsample 1x1 conv
        p["tcn0_wd"] = bf(nrm((NC, C, H), 0.1))
        p["tcn0_bd"] = nrm((NC, 1, H), 0.05)

    p["tcn_lin_w"] = bf(kaiming((NC, H, C))); p["tcn_lin_b"] = jnp.zeros((NC, 1, C))

    # projection ∘ attention-layer-1 pre-composed (both affine; exact in f32).
    proj_w = kaiming((NC, C, C)); proj_b = jnp.zeros((NC, 1, C))
    a1_w = kaiming((NC, C, C));   a1_b = jnp.zeros((NC, 1, C))
    p["attn_w1"] = bf(jnp.einsum("nij,njk->nik", proj_w, a1_w))
    p["attn_b1"] = jnp.einsum("nij,njk->nik", proj_b, a1_w) + a1_b
    p["attn_w2"] = bf(kaiming((NC, C, C)));   p["attn_b2"] = jnp.zeros((NC, 1, C))

    p["ln_g"] = jnp.ones((NC, 1, C));         p["ln_b"] = jnp.zeros((NC, 1, C))
    p["lin_w"] = bf(kaiming((NC, C, H)));     p["lin_b"] = jnp.zeros((NC, 1, H))
    p["pos"] = nrm((NC, P, H), 1.0)           # first P rows of Embedding(1000, H)
    p["tp_w1"] = bf(kaiming((NC, H, 4 * H))); p["tp_b1"] = jnp.zeros((NC, 1, 4 * H))
    p["tp_w2"] = bf(kaiming((NC, 4 * H, H))); p["tp_b2"] = jnp.zeros((NC, 1, H))
    p["fc_w1"] = bf(kaiming((NC, H, H)));     p["fc_b1"] = jnp.zeros((NC, 1, H))
    p["fc_ln_g"] = jnp.ones((NC, 1, H));      p["fc_ln_b"] = jnp.zeros((NC, 1, H))

    # spectral_norm on Linear(H, 1): sigma == ||W||_2 after one power iteration.
    w_sn = nrm((NC, 1, H), (2.0 / H) ** 0.5)
    sigma = jnp.sqrt(jnp.sum(w_sn ** 2, axis=(1, 2), keepdims=True))
    p["fc_w2"] = w_sn / (sigma + 1e-12)       # kept f32 (final tiny head)
    p["fc_b2"] = jnp.zeros((NC, 1, 1))
    return p


# ----------------------------------------------------------------------------
if __name__ == "__main__":
    B, T, C, NC = 2, 8, 16, 3      # batch, time, concept_dim, n_classes
    H = 32                         # hidden_dim
    P = 10                         # pred_step > T  ->  positional-expansion branch

    key = jax.random.PRNGKey(0)
    kx, kp = jax.random.split(key)
    x = jax.random.normal(kx, (B, T, C, NC), jnp.float32)
    params = init_params(kp, NC, C, H, P)

    fwd = jax.jit(lambda pp, xx: multi_decoder_forward(pp, xx, pred_step=P))
    out = jax.block_until_ready(fwd(params, x))

    assert out.shape == (B, P, NC), out.shape
    assert out.dtype == jnp.float32
    assert bool(jnp.all(jnp.isfinite(out)))
    print("KERNEL_OK")
</pallas_src>

<mosaic_0001>
module attributes {stable_mosaic.version = 11 : i64} {
  func.func @_fused_decoder_kernel(%arg0: i32, %arg1: memref<1x16x16xf32, #tpu.memory_space<vmem>>, %arg2: memref<3x48x32xbf16, #tpu.memory_space<vmem>>, %arg3: memref<3x1x32xf32, #tpu.memory_space<vmem>>, %arg4: memref<3x96x32xbf16, #tpu.memory_space<vmem>>, %arg5: memref<3x1x32xf32, #tpu.memory_space<vmem>>, %arg6: memref<3x96x32xbf16, #tpu.memory_space<vmem>>, %arg7: memref<3x1x32xf32, #tpu.memory_space<vmem>>, %arg8: memref<3x96x32xbf16, #tpu.memory_space<vmem>>, %arg9: memref<3x1x32xf32, #tpu.memory_space<vmem>>, %arg10: memref<3x96x32xbf16, #tpu.memory_space<vmem>>, %arg11: memref<3x1x32xf32, #tpu.memory_space<vmem>>, %arg12: memref<3x96x32xbf16, #tpu.memory_space<vmem>>, %arg13: memref<3x1x32xf32, #tpu.memory_space<vmem>>, %arg14: memref<3x16x32xbf16, #tpu.memory_space<vmem>>, %arg15: memref<3x1x32xf32, #tpu.memory_space<vmem>>, %arg16: memref<3x32x16xbf16, #tpu.memory_space<vmem>>, %arg17: memref<3x1x16xf32, #tpu.memory_space<vmem>>, %arg18: memref<3x16x16xbf16, #tpu.memory_space<vmem>>, %arg19: memref<3x1x16xf32, #tpu.memory_space<vmem>>, %arg20: memref<3x16x16xbf16, #tpu.memory_space<vmem>>, %arg21: memref<3x1x16xf32, #tpu.memory_space<vmem>>, %arg22: memref<3x1x16xf32, #tpu.memory_space<vmem>>, %arg23: memref<3x1x16xf32, #tpu.memory_space<vmem>>, %arg24: memref<3x16x32xbf16, #tpu.memory_space<vmem>>, %arg25: memref<3x1x32xf32, #tpu.memory_space<vmem>>, %arg26: memref<3x10x32xf32, #tpu.memory_space<vmem>>, %arg27: memref<3x32x128xbf16, #tpu.memory_space<vmem>>, %arg28: memref<3x1x128xf32, #tpu.memory_space<vmem>>, %arg29: memref<3x128x32xbf16, #tpu.memory_space<vmem>>, %arg30: memref<3x1x32xf32, #tpu.memory_space<vmem>>, %arg31: memref<3x32x32xbf16, #tpu.memory_space<vmem>>, %arg32: memref<3x1x32xf32, #tpu.memory_space<vmem>>, %arg33: memref<3x1x32xf32, #tpu.memory_space<vmem>>, %arg34: memref<3x1x32xf32, #tpu.memory_space<vmem>>, %arg35: memref<3x1x32xf32, #tpu.memory_space<vmem>>, %arg36: memref<3x1x1xf32, #tpu.memory_space<vmem>>, %arg37: memref<1x1x20xf32, #tpu.memory_space<vmem>>, %arg38: memref<1x16x16xf32, #tpu.memory_space<vmem>>) attributes {dimension_semantics = [#tpu.dimension_semantics<parallel>], iteration_bounds = array<i64: 3>, scalar_prefetch = 0 : i64, scratch_operands = 0 : i64, tpu.core_type = #tpu.core_type<tc>, window_params = [{transform_indices = @transform_0, window_bounds = array<i64: 1, 16, 16>}, {pipeline_mode = #tpu.pipeline_mode<synchronous>, transform_indices = @transform_1, window_bounds = array<i64: 3, 48, 32>}, {pipeline_mode = #tpu.pipeline_mode<synchronous>, transform_indices = @transform_2, window_bounds = array<i64: 3, 1, 32>}, {pipeline_mode = #tpu.pipeline_mode<synchronous>, transform_indices = @transform_3, window_bounds = array<i64: 3, 96, 32>}, {pipeline_mode = #tpu.pipeline_mode<synchronous>, transform_indices = @transform_4, window_bounds = array<i64: 3, 1, 32>}, {pipeline_mode = #tpu.pipeline_mode<synchronous>, transform_indices = @transform_5, window_bounds = array<i64: 3, 96, 32>}, {pipeline_mode = #tpu.pipeline_mode<synchronous>, transform_indices = @transform_6, window_bounds = array<i64: 3, 1, 32>}, {pipeline_mode = #tpu.pipeline_mode<synchronous>, transform_indices = @transform_7, window_bounds = array<i64: 3, 96, 32>}, {pipeline_mode = #tpu.pipeline_mode<synchronous>, transform_indices = @transform_8, window_bounds = array<i64: 3, 1, 32>}, {pipeline_mode = #tpu.pipeline_mode<synchronous>, transform_indices = @transform_9, window_bounds = array<i64: 3, 96, 32>}, {pipeline_mode = #tpu.pipeline_mode<synchronous>, transform_indices = @transform_10, window_bounds = array<i64: 3, 1, 32>}, {pipeline_mode = #tpu.pipeline_mode<synchronous>, transform_indices = @transform_11, window_bounds = array<i64: 3, 96, 32>}, {pipeline_mode = #tpu.pipeline_mode<synchronous>, transform_indices = @transform_12, window_bounds = array<i64: 3, 1, 32>}, {pipeline_mode = #tpu.pipeline_mode<synchronous>, transform_indices = @transform_13, window_bounds = array<i64: 3, 16, 32>}, {pipeline_mode = #tpu.pipeline_mode<synchronous>, transform_indices = @transform_14, window_bounds = array<i64: 3, 1, 32>}, {pipeline_mode = #tpu.pipeline_mode<synchronous>, transform_indices = @transform_15, window_bounds = array<i64: 3, 32, 16>}, {pipeline_mode = #tpu.pipeline_mode<synchronous>, transform_indices = @transform_16, window_bounds = array<i64: 3, 1, 16>}, {pipeline_mode = #tpu.pipeline_mode<synchronous>, transform_indices = @transform_17, window_bounds = array<i64: 3, 16, 16>}, {pipeline_mode = #tpu.pipeline_mode<synchronous>, transform_indices = @transform_18, window_bounds = array<i64: 3, 1, 16>}, {pipeline_mode = #tpu.pipeline_mode<synchronous>, transform_indices = @transform_19, window_bounds = array<i64: 3, 16, 16>}, {pipeline_mode = #tpu.pipeline_mode<synchronous>, transform_indices = @transform_20, window_bounds = array<i64: 3, 1, 16>}, {pipeline_mode = #tpu.pipeline_mode<synchronous>, transform_indices = @transform_21, window_bounds = array<i64: 3, 1, 16>}, {pipeline_mode = #tpu.pipeline_mode<synchronous>, transform_indices = @transform_22, window_bounds = array<i64: 3, 1, 16>}, {pipeline_mode = #tpu.pipeline_mode<synchronous>, transform_indices = @transform_23, window_bounds = array<i64: 3, 16, 32>}, {pipeline_mode = #tpu.pipeline_mode<synchronous>, transform_indices = @transform_24, window_bounds = array<i64: 3, 1, 32>}, {pipeline_mode = #tpu.pipeline_mode<synchronous>, transform_indices = @transform_25, window_bounds = array<i64: 3, 10, 32>}, {pipeline_mode = #tpu.pipeline_mode<synchronous>, transform_indices = @transform_26, window_bounds = array<i64: 3, 32, 128>}, {pipeline_mode = #tpu.pipeline_mode<synchronous>, transform_indices = @transform_27, window_bounds = array<i64: 3, 1, 128>}, {pipeline_mode = #tpu.pipeline_mode<synchronous>, transform_indices = @transform_28, window_bounds = array<i64: 3, 128, 32>}, {pipeline_mode = #tpu.pipeline_mode<synchronous>, transform_indices = @transform_29, window_bounds = array<i64: 3, 1, 32>}, {pipeline_mode = #tpu.pipeline_mode<synchronous>, transform_indices = @transform_30, window_bounds = array<i64: 3, 32, 32>}, {pipeline_mode = #tpu.pipeline_mode<synchronous>, transform_indices = @transform_31, window_bounds = array<i64: 3, 1, 32>}, {pipeline_mode = #tpu.pipeline_mode<synchronous>, transform_indices = @transform_32, window_bounds = array<i64: 3, 1, 32>}, {pipeline_mode = #tpu.pipeline_mode<synchronous>, transform_indices = @transform_33, window_bounds = array<i64: 3, 1, 32>}, {pipeline_mode = #tpu.pipeline_mode<synchronous>, transform_indices = @transform_34, window_bounds = array<i64: 3, 1, 32>}, {pipeline_mode = #tpu.pipeline_mode<synchronous>, transform_indices = @transform_35, window_bounds = array<i64: 3, 1, 1>}, {transform_indices = @transform_36, window_bounds = array<i64: 1, 1, 20>}, {transform_indices = @transform_37, window_bounds = array<i64: 1, 16, 16>}]} {
    %0 = tpu.iota {dimensions = array<i32: 0>} : vector<16x1xi32>
    %c8_i32 = arith.constant 8 : i32
    %c0_i32 = arith.constant 0 : i32
    %1 = arith.cmpi eq, %c8_i32, %c0_i32 : i32
    %c1_i32 = arith.constant 1 : i32
    %2 = arith.select %1, %c1_i32, %c8_i32 : i32
    %3 = vector.broadcast %2 : i32 to vector<16x1xi32>
    %4 = arith.remsi %0, %3 : vector<16x1xi32>
    %c0_i32_0 = arith.constant 0 : i32
    %5 = vector.broadcast %c0_i32_0 : i32 to vector<16x1xi32>
    %6 = arith.cmpi ne, %4, %5 : vector<16x1xi32>
    %c0_i32_1 = arith.constant 0 : i32
    %7 = vector.broadcast %c0_i32_1 : i32 to vector<16x1xi32>
    %8 = arith.cmpi slt, %4, %7 : vector<16x1xi32>
    %c0_i32_2 = arith.constant 0 : i32
    %9 = arith.cmpi slt, %2, %c0_i32_2 : i32
    %10 = vector.broadcast %9 : i1 to vector<16x1xi1>
    %11 = vector.broadcast %10 : vector<16x1xi1> to vector<16x1xi1>
    %12 = arith.xori %8, %11 : vector<16x1xi1>
    %13 = arith.andi %12, %6 : vector<16x1xi1>
    %14 = vector.broadcast %2 : i32 to vector<16x1xi32>
    %15 = arith.addi %4, %14 : vector<16x1xi32>
    %16 = arith.select %13, %15, %4 : vector<16x1xi1>, vector<16x1xi32>
    %c0 = arith.constant 0 : index
    %c0_3 = arith.constant 0 : index
    %c0_4 = arith.constant 0 : index
    %17 = vector.load %arg1[%c0, %c0_3, %c0_4] : memref<1x16x16xf32, #tpu.memory_space<vmem>>, vector<1x16x16xf32>
    %18 = vector.shape_cast %17 : vector<1x16x16xf32> to vector<16x16xf32>
    %19 = arith.truncf %18 : vector<16x16xf32> to vector<16x16xbf16>
    %cst = arith.constant 0.000000e+00 : bf16
    %20 = vector.broadcast %cst : bf16 to vector<1x16xbf16>
    %21 = vector.extract_strided_slice %19 {offsets = [0, 0], sizes = [15, 16], strides = [1, 1]} : vector<16x16xbf16> to vector<15x16xbf16>
    %22 = tpu.concatenate %20, %21 in 0 : vector<1x16xbf16>, vector<15x16xbf16> -> vector<16x16xbf16>
    %23 = vector.extract_strided_slice %19 {offsets = [1, 0], sizes = [15, 16], strides = [1, 1]} : vector<16x16xbf16> to vector<15x16xbf16>
    %24 = tpu.concatenate %23, %20 in 0 : vector<15x16xbf16>, vector<1x16xbf16> -> vector<16x16xbf16>
    %c1_i32_5 = arith.constant 1 : i32
    %25 = vector.broadcast %c1_i32_5 : i32 to vector<16x1xi32>
    %26 = arith.cmpi sge, %16, %25 : vector<16x1xi32>
    %cst_6 = arith.constant 0.000000e+00 : bf16
    %27 = vector.broadcast %cst_6 : bf16 to vector<16x16xbf16>
    %28 = vector.shape_cast %26 : vector<16x1xi1> to vector<16x1xi1>
    %29 = vector.broadcast %28 : vector<16x1xi1> to vector<16x16xi1>
    %30 = arith.select %29, %22, %27 : vector<16x16xi1>, vector<16x16xbf16>
    %c7_i32 = arith.constant 7 : i32
    %31 = vector.broadcast %c7_i32 : i32 to vector<16x1xi32>
    %32 = arith.cmpi slt, %16, %31 : vector<16x1xi32>
    %cst_7 = arith.constant 0.000000e+00 : bf16
    %33 = vector.broadcast %cst_7 : bf16 to vector<16x16xbf16>
    %34 = vector.shape_cast %32 : vector<16x1xi1> to vector<16x1xi1>
    %35 = vector.broadcast %34 : vector<16x1xi1> to vector<16x16xi1>
    %36 = arith.select %35, %24, %33 : vector<16x16xi1>, vector<16x16xbf16>
    %37 = tpu.concatenate %30, %19, %36 in 1 : vector<16x16xbf16>, vector<16x16xbf16>, vector<16x16xbf16> -> vector<16x48xbf16>
    %38 = arith.index_cast %arg0 : i32 to index
    %c0_8 = arith.constant 0 : index
    %c0_9 = arith.constant 0 : index
    %39 = vector.load %arg2[%38, %c0_8, %c0_9] : memref<3x48x32xbf16, #tpu.memory_space<vmem>>, vector<1x48x32xbf16>
    %40 = vector.shape_cast %39 : vector<1x48x32xbf16> to vector<48x32xbf16>
    %cst_10 = arith.constant dense<0.000000e+00> : vector<16x32xf32>
    %41 = tpu.matmul %37, %40, %cst_10 {dimension_numbers = #tpu.dot_dimension_numbers<[1], [0], [0], [1], [0, 0, 1, 1], [], []>} : vector<16x48xbf16>, vector<48x32xbf16>, vector<16x32xf32> -> vector<16x32xf32>
    %42 = arith.index_cast %arg0 : i32 to index
    %c0_11 = arith.constant 0 : index
    %c0_12 = arith.constant 0 : index
    %43 = vector.load %arg3[%42, %c0_11, %c0_12] : memref<3x1x32xf32, #tpu.memory_space<vmem>>, vector<1x1x32xf32>
    %44 = vector.shape_cast %43 : vector<1x1x32xf32> to vector<1x32xf32>
    %45 = vector.broadcast %44 : vector<1x32xf32> to vector<16x32xf32>
    %46 = arith.addf %41, %45 : vector<16x32xf32>
    %cst_13 = arith.constant 0.000000e+00 : f32
    %47 = vector.broadcast %cst_13 : f32 to vector<16x32xf32>
    %48 = arith.maximumf %46, %47 : vector<16x32xf32>
    %49 = arith.truncf %48 : vector<16x32xf32> to vector<16x32xbf16>
    %cst_14 = arith.constant 0.000000e+00 : bf16
    %50 = vector.broadcast %cst_14 : bf16 to vector<1x32xbf16>
    %51 = vector.extract_strided_slice %49 {offsets = [0, 0], sizes = [15, 32], strides = [1, 1]} : vector<16x32xbf16> to vector<15x32xbf16>
    %52 = tpu.concatenate %50, %51 in 0 : vector<1x32xbf16>, vector<15x32xbf16> -> vector<16x32xbf16>
    %53 = vector.extract_strided_slice %49 {offsets = [1, 0], sizes = [15, 32], strides = [1, 1]} : vector<16x32xbf16> to vector<15x32xbf16>
    %54 = tpu.concatenate %53, %50 in 0 : vector<15x32xbf16>, vector<1x32xbf16> -> vector<16x32xbf16>
    %c1_i32_15 = arith.constant 1 : i32
    %55 = vector.broadcast %c1_i32_15 : i32 to vector<16x1xi32>
    %56 = arith.cmpi sge, %16, %55 : vector<16x1xi32>
    %cst_16 = arith.constant 0.000000e+00 : bf16
    %57 = vector.broadcast %cst_16 : bf16 to vector<16x32xbf16>
    %58 = vector.shape_cast %56 : vector<16x1xi1> to vector<16x1xi1>
    %59 = vector.broadcast %58 : vector<16x1xi1> to vector<16x32xi1>
    %60 = arith.select %59, %52, %57 : vector<16x32xi1>, vector<16x32xbf16>
    %c7_i32_17 = arith.constant 7 : i32
    %61 = vector.broadcast %c7_i32_17 : i32 to vector<16x1xi32>
    %62 = arith.cmpi slt, %16, %61 : vector<16x1xi32>
    %cst_18 = arith.constant 0.000000e+00 : bf16
    %63 = vector.broadcast %cst_18 : bf16 to vector<16x32xbf16>
    %64 = vector.shape_cast %62 : vector<16x1xi1> to vector<16x1xi1>
    %65 = vector.broadcast %64 : vector<16x1xi1> to vector<16x32xi1>
    %66 = arith.select %65, %54, %63 : vector<16x32xi1>, vector<16x32xbf16>
    %67 = tpu.concatenate %60, %49, %66 in 1 : vector<16x32xbf16>, vector<16x32xbf16>, vector<16x32xbf16> -> vector<16x96xbf16>
    %68 = arith.index_cast %arg0 : i32 to index
    %c0_19 = arith.constant 0 : index
    %c0_20 = arith.constant 0 : index
    %69 = vector.load %arg4[%68, %c0_19, %c0_20] : memref<3x96x32xbf16, #tpu.memory_space<vmem>>, vector<1x96x32xbf16>
    %70 = vector.shape_cast %69 : vector<1x96x32xbf16> to vector<96x32xbf16>
    %cst_21 = arith.constant dense<0.000000e+00> : vector<16x32xf32>
    %71 = tpu.matmul %67, %70, %cst_21 {dimension_numbers = #tpu.dot_dimension_numbers<[1], [0], [0], [1], [0, 0, 1, 1], [], []>} : vector<16x96xbf16>, vector<96x32xbf16>, vector<16x32xf32> -> vector<16x32xf32>
    %72 = arith.index_cast %arg0 : i32 to index
    %c0_22 = arith.constant 0 : index
    %c0_23 = arith.constant 0 : index
    %73 = vector.load %arg5[%72, %c0_22, %c0_23] : memref<3x1x32xf32, #tpu.memory_space<vmem>>, vector<1x1x32xf32>
    %74 = vector.shape_cast %73 : vector<1x1x32xf32> to vector<1x32xf32>
    %75 = vector.broadcast %74 : vector<1x32xf32> to vector<16x32xf32>
    %76 = arith.addf %71, %75 : vector<16x32xf32>
    %cst_24 = arith.constant 0.000000e+00 : f32
    %77 = vector.broadcast %cst_24 : f32 to vector<16x32xf32>
    %78 = arith.maximumf %76, %77 : vector<16x32xf32>
    %79 = arith.truncf %18 : vector<16x16xf32> to vector<16x16xbf16>
    %80 = arith.index_cast %arg0 : i32 to index
    %c0_25 = arith.constant 0 : index
    %c0_26 = arith.constant 0 : index
    %81 = vector.load %arg14[%80, %c0_25, %c0_26] : memref<3x16x32xbf16, #tpu.memory_space<vmem>>, vector<1x16x32xbf16>
    %82 = vector.shape_cast %81 : vector<1x16x32xbf16> to vector<16x32xbf16>
    %cst_27 = arith.constant dense<0.000000e+00> : vector<16x32xf32>
    %83 = tpu.matmul %79, %82, %cst_27 {dimension_numbers = #tpu.dot_dimension_numbers<[1], [0], [0], [1], [0, 0, 1, 1], [], []>} : vector<16x16xbf16>, vector<16x32xbf16>, vector<16x32xf32> -> vector<16x32xf32>
    %84 = arith.index_cast %arg0 : i32 to index
    %c0_28 = arith.constant 0 : index
    %c0_29 = arith.constant 0 : index
    %85 = vector.load %arg15[%84, %c0_28, %c0_29] : memref<3x1x32xf32, #tpu.memory_space<vmem>>, vector<1x1x32xf32>
    %86 = vector.shape_cast %85 : vector<1x1x32xf32> to vector<1x32xf32>
    %87 = vector.broadcast %86 : vector<1x32xf32> to vector<16x32xf32>
    %88 = arith.addf %83, %87 : vector<16x32xf32>
    %89 = arith.addf %78, %88 : vector<16x32xf32>
    %cst_30 = arith.constant 0.000000e+00 : f32
    %90 = vector.broadcast %cst_30 : f32 to vector<16x32xf32>
    %91 = arith.maximumf %89, %90 : vector<16x32xf32>
    %92 = arith.truncf %91 : vector<16x32xf32> to vector<16x32xbf16>
    %cst_31 = arith.constant 0.000000e+00 : bf16
    %93 = vector.broadcast %cst_31 : bf16 to vector<2x32xbf16>
    %94 = vector.extract_strided_slice %92 {offsets = [0, 0], sizes = [14, 32], strides = [1, 1]} : vector<16x32xbf16> to vector<14x32xbf16>
    %95 = tpu.concatenate %93, %94 in 0 : vector<2x32xbf16>, vector<14x32xbf16> -> vector<16x32xbf16>
    %96 = vector.extract_strided_slice %92 {offsets = [2, 0], sizes = [14, 32], strides = [1, 1]} : vector<16x32xbf16> to vector<14x32xbf16>
    %97 = tpu.concatenate %96, %93 in 0 : vector<14x32xbf16>, vector<2x32xbf16> -> vector<16x32xbf16>
    %c2_i32 = arith.constant 2 : i32
    %98 = vector.broadcast %c2_i32 : i32 to vector<16x1xi32>
    %99 = arith.cmpi sge, %16, %98 : vector<16x1xi32>
    %cst_32 = arith.constant 0.000000e+00 : bf16
    %100 = vector.broadcast %cst_32 : bf16 to vector<16x32xbf16>
    %101 = vector.shape_cast %99 : vector<16x1xi1> to vector<16x1xi1>
    %102 = vector.broadcast %101 : vector<16x1xi1> to vector<16x32xi1>
    %103 = arith.select %102, %95, %100 : vector<16x32xi1>, vector<16x32xbf16>
    %c6_i32 = arith.constant 6 : i32
    %104 = vector.broadcast %c6_i32 : i32 to vector<16x1xi32>
    %105 = arith.cmpi slt, %16, %104 : vector<16x1xi32>
    %cst_33 = arith.constant 0.000000e+00 : bf16
    %106 = vector.broadcast %cst_33 : bf16 to vector<16x32xbf16>
    %107 = vector.shape_cast %105 : vector<16x1xi1> to vector<16x1xi1>
    %108 = vector.broadcast %107 : vector<16x1xi1> to vector<16x32xi1>
    %109 = arith.select %108, %97, %106 : vector<16x32xi1>, vector<16x32xbf16>
    %110 = tpu.concatenate %103, %92, %109 in 1 : vector<16x32xbf16>, vector<16x32xbf16>, vector<16x32xbf16> -> vector<16x96xbf16>
    %111 = arith.index_cast %arg0 : i32 to index
    %c0_34 = arith.constant 0 : index
    %c0_35 = arith.constant 0 : index
    %112 = vector.load %arg6[%111, %c0_34, %c0_35] : memref<3x96x32xbf16, #tpu.memory_space<vmem>>, vector<1x96x32xbf16>
    %113 = vector.shape_cast %112 : vector<1x96x32xbf16> to vector<96x32xbf16>
    %cst_36 = arith.constant dense<0.000000e+00> : vector<16x32xf32>
    %114 = tpu.matmul %110, %113, %cst_36 {dimension_numbers = #tpu.dot_dimension_numbers<[1], [0], [0], [1], [0, 0, 1, 1], [], []>} : vector<16x96xbf16>, vector<96x32xbf16>, vector<16x32xf32> -> vector<16x32xf32>
    %115 = arith.index_cast %arg0 : i32 to index
    %c0_37 = arith.constant 0 : index
    %c0_38 = arith.constant 0 : index
    %116 = vector.load %arg7[%115, %c0_37, %c0_38] : memref<3x1x32xf32, #tpu.memory_space<vmem>>, vector<1x1x32xf32>
    %117 = vector.shape_cast %116 : vector<1x1x32xf32> to vector<1x32xf32>
    %118 = vector.broadcast %117 : vector<1x32xf32> to vector<16x32xf32>
    %119 = arith.addf %114, %118 : vector<16x32xf32>
    %cst_39 = arith.constant 0.000000e+00 : f32
    %120 = vector.broadcast %cst_39 : f32 to vector<16x32xf32>
    %121 = arith.maximumf %119, %120 : vector<16x32xf32>
    %122 = arith.truncf %121 : vector<16x32xf32> to vector<16x32xbf16>
    %cst_40 = arith.constant 0.000000e+00 : bf16
    %123 = vector.broadcast %cst_40 : bf16 to vector<2x32xbf16>
    %124 = vector.extract_strided_slice %122 {offsets = [0, 0], sizes = [14, 32], strides = [1, 1]} : vector<16x32xbf16> to vector<14x32xbf16>
    %125 = tpu.concatenate %123, %124 in 0 : vector<2x32xbf16>, vector<14x32xbf16> -> vector<16x32xbf16>
    %126 = vector.extract_strided_slice %122 {offsets = [2, 0], sizes = [14, 32], strides = [1, 1]} : vector<16x32xbf16> to vector<14x32xbf16>
    %127 = tpu.concatenate %126, %123 in 0 : vector<14x32xbf16>, vector<2x32xbf16> -> vector<16x32xbf16>
    %c2_i32_41 = arith.constant 2 : i32
    %128 = vector.broadcast %c2_i32_41 : i32 to vector<16x1xi32>
    %129 = arith.cmpi sge, %16, %128 : vector<16x1xi32>
    %cst_42 = arith.constant 0.000000e+00 : bf16
    %130 = vector.broadcast %cst_42 : bf16 to vector<16x32xbf16>
    %131 = vector.shape_cast %129 : vector<16x1xi1> to vector<16x1xi1>
    %132 = vector.broadcast %131 : vector<16x1xi1> to vector<16x32xi1>
    %133 = arith.select %132, %125, %130 : vector<16x32xi1>, vector<16x32xbf16>
    %c6_i32_43 = arith.constant 6 : i32
    %134 = vector.broadcast %c6_i32_43 : i32 to vector<16x1xi32>
    %135 = arith.cmpi slt, %16, %134 : vector<16x1xi32>
    %cst_44 = arith.constant 0.000000e+00 : bf16
    %136 = vector.broadcast %cst_44 : bf16 to vector<16x32xbf16>
    %137 = vector.shape_cast %135 : vector<16x1xi1> to vector<16x1xi1>
    %138 = vector.broadcast %137 : vector<16x1xi1> to vector<16x32xi1>
    %139 = arith.select %138, %127, %136 : vector<16x32xi1>, vector<16x32xbf16>
    %140 = tpu.concatenate %133, %122, %139 in 1 : vector<16x32xbf16>, vector<16x32xbf16>, vector<16x32xbf16> -> vector<16x96xbf16>
    %141 = arith.index_cast %arg0 : i32 to index
    %c0_45 = arith.constant 0 : index
    %c0_46 = arith.constant 0 : index
    %142 = vector.load %arg8[%141, %c0_45, %c0_46] : memref<3x96x32xbf16, #tpu.memory_space<vmem>>, vector<1x96x32xbf16>
    %143 = vector.shape_cast %142 : vector<1x96x32xbf16> to vector<96x32xbf16>
    %cst_47 = arith.constant dense<0.000000e+00> : vector<16x32xf32>
    %144 = tpu.matmul %140, %143, %cst_47 {dimension_numbers = #tpu.dot_dimension_numbers<[1], [0], [0], [1], [0, 0, 1, 1], [], []>} : vector<16x96xbf16>, vector<96x32xbf16>, vector<16x32xf32> -> vector<16x32xf32>
    %145 = arith.index_cast %arg0 : i32 to index
    %c0_48 = arith.constant 0 : index
    %c0_49 = arith.constant 0 : index
    %146 = vector.load %arg9[%145, %c0_48, %c0_49] : memref<3x1x32xf32, #tpu.memory_space<vmem>>, vector<1x1x32xf32>
    %147 = vector.shape_cast %146 : vector<1x1x32xf32> to vector<1x32xf32>
    %148 = vector.broadcast %147 : vector<1x32xf32> to vector<16x32xf32>
    %149 = arith.addf %144, %148 : vector<16x32xf32>
    %cst_50 = arith.constant 0.000000e+00 : f32
    %150 = vector.broadcast %cst_50 : f32 to vector<16x32xf32>
    %151 = arith.maximumf %149, %150 : vector<16x32xf32>
    %152 = arith.addf %151, %91 : vector<16x32xf32>
    %cst_51 = arith.constant 0.000000e+00 : f32
    %153 = vector.broadcast %cst_51 : f32 to vector<16x32xf32>
    %154 = arith.maximumf %152, %153 : vector<16x32xf32>
    %155 = arith.truncf %154 : vector<16x32xf32> to vector<16x32xbf16>
    %cst_52 = arith.constant 0.000000e+00 : bf16
    %156 = vector.broadcast %cst_52 : bf16 to vector<4x32xbf16>
    %157 = vector.extract_strided_slice %155 {offsets = [0, 0], sizes = [12, 32], strides = [1, 1]} : vector<16x32xbf16> to vector<12x32xbf16>
    %158 = tpu.concatenate %156, %157 in 0 : vector<4x32xbf16>, vector<12x32xbf16> -> vector<16x32xbf16>
    %159 = vector.extract_strided_slice %155 {offsets = [4, 0], sizes = [12, 32], strides = [1, 1]} : vector<16x32xbf16> to vector<12x32xbf16>
    %160 = tpu.concatenate %159, %156 in 0 : vector<12x32xbf16>, vector<4x32xbf16> -> vector<16x32xbf16>
    %c4_i32 = arith.constant 4 : i32
    %161 = vector.broadcast %c4_i32 : i32 to vector<16x1xi32>
    %162 = arith.cmpi sge, %16, %161 : vector<16x1xi32>
    %cst_53 = arith.constant 0.000000e+00 : bf16
    %163 = vector.broadcast %cst_53 : bf16 to vector<16x32xbf16>
    %164 = vector.shape_cast %162 : vector<16x1xi1> to vector<16x1xi1>
    %165 = vector.broadcast %164 : vector<16x1xi1> to vector<16x32xi1>
    %166 = arith.select %165, %158, %163 : vector<16x32xi1>, vector<16x32xbf16>
    %c4_i32_54 = arith.constant 4 : i32
    %167 = vector.broadcast %c4_i32_54 : i32 to vector<16x1xi32>
    %168 = arith.cmpi slt, %16, %167 : vector<16x1xi32>
    %cst_55 = arith.constant 0.000000e+00 : bf16
    %169 = vector.broadcast %cst_55 : bf16 to vector<16x32xbf16>
    %170 = vector.shape_cast %168 : vector<16x1xi1> to vector<16x1xi1>
    %171 = vector.broadcast %170 : vector<16x1xi1> to vector<16x32xi1>
    %172 = arith.select %171, %160, %169 : vector<16x32xi1>, vector<16x32xbf16>
    %173 = tpu.concatenate %166, %155, %172 in 1 : vector<16x32xbf16>, vector<16x32xbf16>, vector<16x32xbf16> -> vector<16x96xbf16>
    %174 = arith.index_cast %arg0 : i32 to index
    %c0_56 = arith.constant 0 : index
    %c0_57 = arith.constant 0 : index
    %175 = vector.load %arg10[%174, %c0_56, %c0_57] : memref<3x96x32xbf16, #tpu.memory_space<vmem>>, vector<1x96x32xbf16>
    %176 = vector.shape_cast %175 : vector<1x96x32xbf16> to vector<96x32xbf16>
    %cst_58 = arith.constant dense<0.000000e+00> : vector<16x32xf32>
    %177 = tpu.matmul %173, %176, %cst_58 {dimension_numbers = #tpu.dot_dimension_numbers<[1], [0], [0], [1], [0, 0, 1, 1], [], []>} : vector<16x96xbf16>, vector<96x32xbf16>, vector<16x32xf32> -> vector<16x32xf32>
    %178 = arith.index_cast %arg0 : i32 to index
    %c0_59 = arith.constant 0 : index
    %c0_60 = arith.constant 0 : index
    %179 = vector.load %arg11[%178, %c0_59, %c0_60] : memref<3x1x32xf32, #tpu.memory_space<vmem>>, vector<1x1x32xf32>
    %180 = vector.shape_cast %179 : vector<1x1x32xf32> to vector<1x32xf32>
    %181 = vector.broadcast %180 : vector<1x32xf32> to vector<16x32xf32>
    %182 = arith.addf %177, %181 : vector<16x32xf32>
    %cst_61 = arith.constant 0.000000e+00 : f32
    %183 = vector.broadcast %cst_61 : f32 to vector<16x32xf32>
    %184 = arith.maximumf %182, %183 : vector<16x32xf32>
    %185 = arith.truncf %184 : vector<16x32xf32> to vector<16x32xbf16>
    %cst_62 = arith.constant 0.000000e+00 : bf16
    %186 = vector.broadcast %cst_62 : bf16 to vector<4x32xbf16>
    %187 = vector.extract_strided_slice %185 {offsets = [0, 0], sizes = [12, 32], strides = [1, 1]} : vector<16x32xbf16> to vector<12x32xbf16>
    %188 = tpu.concatenate %186, %187 in 0 : vector<4x32xbf16>, vector<12x32xbf16> -> vector<16x32xbf16>
    %189 = vector.extract_strided_slice %185 {offsets = [4, 0], sizes = [12, 32], strides = [1, 1]} : vector<16x32xbf16> to vector<12x32xbf16>
    %190 = tpu.concatenate %189, %186 in 0 : vector<12x32xbf16>, vector<4x32xbf16> -> vector<16x32xbf16>
    %c4_i32_63 = arith.constant 4 : i32
    %191 = vector.broadcast %c4_i32_63 : i32 to vector<16x1xi32>
    %192 = arith.cmpi sge, %16, %191 : vector<16x1xi32>
    %cst_64 = arith.constant 0.000000e+00 : bf16
    %193 = vector.broadcast %cst_64 : bf16 to vector<16x32xbf16>
    %194 = vector.shape_cast %192 : vector<16x1xi1> to vector<16x1xi1>
    %195 = vector.broadcast %194 : vector<16x1xi1> to vector<16x32xi1>
    %196 = arith.select %195, %188, %193 : vector<16x32xi1>, vector<16x32xbf16>
    %c4_i32_65 = arith.constant 4 : i32
    %197 = vector.broadcast %c4_i32_65 : i32 to vector<16x1xi32>
    %198 = arith.cmpi slt, %16, %197 : vector<16x1xi32>
    %cst_66 = arith.constant 0.000000e+00 : bf16
    %199 = vector.broadcast %cst_66 : bf16 to vector<16x32xbf16>
    %200 = vector.shape_cast %198 : vector<16x1xi1> to vector<16x1xi1>
    %201 = vector.broadcast %200 : vector<16x1xi1> to vector<16x32xi1>
    %202 = arith.select %201, %190, %199 : vector<16x32xi1>, vector<16x32xbf16>
    %203 = tpu.concatenate %196, %185, %202 in 1 : vector<16x32xbf16>, vector<16x32xbf16>, vector<16x32xbf16> -> vector<16x96xbf16>
    %204 = arith.index_cast %arg0 : i32 to index
    %c0_67 = arith.constant 0 : index
    %c0_68 = arith.constant 0 : index
    %205 = vector.load %arg12[%204, %c0_67, %c0_68] : memref<3x96x32xbf16, #tpu.memory_space<vmem>>, vector<1x96x32xbf16>
    %206 = vector.shape_cast %205 : vector<1x96x32xbf16> to vector<96x32xbf16>
    %cst_69 = arith.constant dense<0.000000e+00> : vector<16x32xf32>
    %207 = tpu.matmul %203, %206, %cst_69 {dimension_numbers = #tpu.dot_dimension_numbers<[1], [0], [0], [1], [0, 0, 1, 1], [], []>} : vector<16x96xbf16>, vector<96x32xbf16>, vector<16x32xf32> -> vector<16x32xf32>
    %208 = arith.index_cast %arg0 : i32 to index
    %c0_70 = arith.constant 0 : index
    %c0_71 = arith.constant 0 : index
    %209 = vector.load %arg13[%208, %c0_70, %c0_71] : memref<3x1x32xf32, #tpu.memory_space<vmem>>, vector<1x1x32xf32>
    %210 = vector.shape_cast %209 : vector<1x1x32xf32> to vector<1x32xf32>
    %211 = vector.broadcast %210 : vector<1x32xf32> to vector<16x32xf32>
    %212 = arith.addf %207, %211 : vector<16x32xf32>
    %cst_72 = arith.constant 0.000000e+00 : f32
    %213 = vector.broadcast %cst_72 : f32 to vector<16x32xf32>
    %214 = arith.maximumf %212, %213 : vector<16x32xf32>
    %215 = arith.addf %214, %154 : vector<16x32xf32>
    %cst_73 = arith.constant 0.000000e+00 : f32
    %216 = vector.broadcast %cst_73 : f32 to vector<16x32xf32>
    %217 = arith.maximumf %215, %216 : vector<16x32xf32>
    %218 = arith.truncf %217 : vector<16x32xf32> to vector<16x32xbf16>
    %219 = arith.index_cast %arg0 : i32 to index
    %c0_74 = arith.constant 0 : index
    %c0_75 = arith.constant 0 : index
    %220 = vector.load %arg16[%219, %c0_74, %c0_75] : memref<3x32x16xbf16, #tpu.memory_space<vmem>>, vector<1x32x16xbf16>
    %221 = vector.shape_cast %220 : vector<1x32x16xbf16> to vector<32x16xbf16>
    %cst_76 = arith.constant dense<0.000000e+00> : vector<16x16xf32>
    %222 = tpu.matmul %218, %221, %cst_76 {dimension_numbers = #tpu.dot_dimension_numbers<[1], [0], [0], [1], [0, 0, 1, 1], [], []>} : vector<16x32xbf16>, vector<32x16xbf16>, vector<16x16xf32> -> vector<16x16xf32>
    %223 = arith.index_cast %arg0 : i32 to index
    %c0_77 = arith.constant 0 : index
    %c0_78 = arith.constant 0 : index
    %224 = vector.load %arg17[%223, %c0_77, %c0_78] : memref<3x1x16xf32, #tpu.memory_space<vmem>>, vector<1x1x16xf32>
    %225 = vector.shape_cast %224 : vector<1x1x16xf32> to vector<1x16xf32>
    %226 = vector.broadcast %225 : vector<1x16xf32> to vector<16x16xf32>
    %227 = arith.addf %222, %226 : vector<16x16xf32>
    %228 = arith.truncf %227 : vector<16x16xf32> to vector<16x16xbf16>
    %229 = arith.index_cast %arg0 : i32 to index
    %c0_79 = arith.constant 0 : index
    %c0_80 = arith.constant 0 : index
    %230 = vector.load %arg18[%229, %c0_79, %c0_80] : memref<3x16x16xbf16, #tpu.memory_space<vmem>>, vector<1x16x16xbf16>
    %231 = vector.shape_cast %230 : vector<1x16x16xbf16> to vector<16x16xbf16>
    %cst_81 = arith.constant dense<0.000000e+00> : vector<16x16xf32>
    %232 = tpu.matmul %228, %231, %cst_81 {dimension_numbers = #tpu.dot_dimension_numbers<[1], [0], [0], [1], [0, 0, 1, 1], [], []>} : vector<16x16xbf16>, vector<16x16xbf16>, vector<16x16xf32> -> vector<16x16xf32>
    %233 = arith.index_cast %arg0 : i32 to index
    %c0_82 = arith.constant 0 : index
    %c0_83 = arith.constant 0 : index
    %234 = vector.load %arg19[%233, %c0_82, %c0_83] : memref<3x1x16xf32, #tpu.memory_space<vmem>>, vector<1x1x16xf32>
    %235 = vector.shape_cast %234 : vector<1x1x16xf32> to vector<1x16xf32>
    %236 = vector.broadcast %235 : vector<1x16xf32> to vector<16x16xf32>
    %237 = arith.addf %232, %236 : vector<16x16xf32>
    %cst_84 = arith.constant 5.000000e-01 : f32
    %238 = vector.broadcast %cst_84 : f32 to vector<16x16xf32>
    %239 = arith.mulf %238, %237 : vector<16x16xf32>
    %cst_85 = arith.constant 0.707106769 : f32
    %240 = vector.broadcast %cst_85 : f32 to vector<16x16xf32>
    %241 = arith.mulf %237, %240 : vector<16x16xf32>
    %cst_86 = arith.constant 0.000000e+00 : f32
    %242 = vector.broadcast %cst_86 : f32 to vector<16x16xf32>
    %243 = arith.cmpf oge, %241, %242 : vector<16x16xf32>
    %cst_87 = arith.constant 1.000000e+00 : f32
    %cst_88 = arith.constant -1.000000e+00 : f32
    %244 = vector.broadcast %cst_87 : f32 to vector<16x16xf32>
    %245 = vector.broadcast %cst_88 : f32 to vector<16x16xf32>
    %246 = arith.select %243, %244, %245 : vector<16x16xi1>, vector<16x16xf32>
    %247 = math.absf %241 : vector<16x16xf32>
    %cst_89 = arith.constant 0.327591091 : f32
    %248 = vector.broadcast %cst_89 : f32 to vector<16x16xf32>
    %249 = arith.mulf %248, %247 : vector<16x16xf32>
    %cst_90 = arith.constant 1.000000e+00 : f32
    %250 = vector.broadcast %cst_90 : f32 to vector<16x16xf32>
    %251 = arith.addf %250, %249 : vector<16x16xf32>
    %cst_91 = arith.constant 1.000000e+00 : f32
    %252 = vector.broadcast %cst_91 : f32 to vector<16x16xf32>
    %253 = arith.divf %252, %251 : vector<16x16xf32>
    %cst_92 = arith.constant 1.06140542 : f32
    %254 = vector.broadcast %cst_92 : f32 to vector<16x16xf32>
    %255 = arith.mulf %254, %253 : vector<16x16xf32>
    %cst_93 = arith.constant -1.45315206 : f32
    %256 = vector.broadcast %cst_93 : f32 to vector<16x16xf32>
    %257 = arith.addf %255, %256 : vector<16x16xf32>
    %258 = arith.mulf %257, %253 : vector<16x16xf32>
    %cst_94 = arith.constant 1.42141378 : f32
    %259 = vector.broadcast %cst_94 : f32 to vector<16x16xf32>
    %260 = arith.addf %258, %259 : vector<16x16xf32>
    %261 = arith.mulf %260, %253 : vector<16x16xf32>
    %cst_95 = arith.constant -0.284496725 : f32
    %262 = vector.broadcast %cst_95 : f32 to vector<16x16xf32>
    %263 = arith.addf %261, %262 : vector<16x16xf32>
    %264 = arith.mulf %263, %253 : vector<16x16xf32>
    %cst_96 = arith.constant 0.254829586 : f32
    %265 = vector.broadcast %cst_96 : f32 to vector<16x16xf32>
    %266 = arith.addf %264, %265 : vector<16x16xf32>
    %267 = arith.mulf %266, %253 : vector<16x16xf32>
    %cst_97 = arith.constant 0.000000e+00 : f32
    %268 = vector.broadcast %cst_97 : f32 to vector<16x16xf32>
    %269 = arith.subf %268, %247 : vector<16x16xf32>
    %270 = arith.mulf %269, %247 : vector<16x16xf32>
    %271 = math.exp %270 : vector<16x16xf32>
    %272 = arith.mulf %267, %271 : vector<16x16xf32>
    %cst_98 = arith.constant 1.000000e+00 : f32
    %273 = vector.broadcast %cst_98 : f32 to vector<16x16xf32>
    %274 = arith.subf %273, %272 : vector<16x16xf32>
    %275 = arith.mulf %246, %274 : vector<16x16xf32>
    %cst_99 = arith.constant 1.000000e+00 : f32
    %276 = vector.broadcast %cst_99 : f32 to vector<16x16xf32>
    %277 = arith.addf %276, %275 : vector<16x16xf32>
    %278 = arith.mulf %239, %277 : vector<16x16xf32>
    %279 = arith.truncf %278 : vector<16x16xf32> to vector<16x16xbf16>
    %280 = arith.index_cast %arg0 : i32 to index
    %c0_100 = arith.constant 0 : index
    %c0_101 = arith.constant 0 : index
    %281 = vector.load %arg20[%280, %c0_100, %c0_101] : memref<3x16x16xbf16, #tpu.memory_space<vmem>>, vector<1x16x16xbf16>
    %282 = vector.shape_cast %281 : vector<1x16x16xbf16> to vector<16x16xbf16>
    %cst_102 = arith.constant dense<0.000000e+00> : vector<16x16xf32>
    %283 = tpu.matmul %279, %282, %cst_102 {dimension_numbers = #tpu.dot_dimension_numbers<[1], [0], [0], [1], [0, 0, 1, 1], [], []>} : vector<16x16xbf16>, vector<16x16xbf16>, vector<16x16xf32> -> vector<16x16xf32>
    %284 = arith.index_cast %arg0 : i32 to index
    %c0_103 = arith.constant 0 : index
    %c0_104 = arith.constant 0 : index
    %285 = vector.load %arg21[%284, %c0_103, %c0_104] : memref<3x1x16xf32, #tpu.memory_space<vmem>>, vector<1x1x16xf32>
    %286 = vector.shape_cast %285 : vector<1x1x16xf32> to vector<1x16xf32>
    %287 = vector.broadcast %286 : vector<1x16xf32> to vector<16x16xf32>
    %288 = arith.addf %283, %287 : vector<16x16xf32>
    %c0_105 = arith.constant 0 : index
    %c0_106 = arith.constant 0 : index
    %c0_107 = arith.constant 0 : index
    %289 = vector.load %arg38[%c0_105, %c0_106, %c0_107] : memref<1x16x16xf32, #tpu.memory_space<vmem>>, vector<1x16x16xf32>
    %290 = vector.shape_cast %289 : vector<1x16x16xf32> to vector<16x16xf32>
    %291 = vector.shape_cast %288 : vector<16x16xf32> to vector<1x16x16xf32>
    tpu.vector_store %arg38[%c0_105, %c0_106, %c0_107], %291 {strides = array<i32>} : memref<1x16x16xf32, #tpu.memory_space<vmem>>, vector<1x16x16xf32>,
    %292 = arith.addf %288, %227 : vector<16x16xf32>
    %293 = arith.index_cast %arg0 : i32 to index
    %c0_108 = arith.constant 0 : index
    %c0_109 = arith.constant 0 : index
    %294 = vector.load %arg22[%293, %c0_108, %c0_109] : memref<3x1x16xf32, #tpu.memory_space<vmem>>, vector<1x1x16xf32>
    %295 = vector.shape_cast %294 : vector<1x1x16xf32> to vector<1x16xf32>
    %296 = arith.index_cast %arg0 : i32 to index
    %c0_110 = arith.constant 0 : index
    %c0_111 = arith.constant 0 : index
    %297 = vector.load %arg23[%296, %c0_110, %c0_111] : memref<3x1x16xf32, #tpu.memory_space<vmem>>, vector<1x1x16xf32>
    %298 = vector.shape_cast %297 : vector<1x1x16xf32> to vector<1x16xf32>
    %cst_112 = arith.constant dense<0.000000e+00> : vector<16xf32>
    %299 = vector.multi_reduction <add>, %292, %cst_112 [1] : vector<16x16xf32> to vector<16xf32>
    %300 = vector.shape_cast %299 : vector<16xf32> to vector<16x1xf32>
    %cst_113 = arith.constant 1.600000e+01 : f32
    %301 = vector.broadcast %cst_113 : f32 to vector<16x1xf32>
    %302 = arith.divf %300, %301 : vector<16x1xf32>
    %303 = vector.broadcast %302 : vector<16x1xf32> to vector<16x16xf32>
    %304 = arith.subf %292, %303 : vector<16x16xf32>
    %305 = arith.mulf %304, %304 : vector<16x16xf32>
    %cst_114 = arith.constant dense<0.000000e+00> : vector<16xf32>
    %306 = vector.multi_reduction <add>, %305, %cst_114 [1] : vector<16x16xf32> to vector<16xf32>
    %307 = vector.shape_cast %306 : vector<16xf32> to vector<16x1xf32>
    %cst_115 = arith.constant 1.600000e+01 : f32
    %308 = vector.broadcast %cst_115 : f32 to vector<16x1xf32>
    %309 = arith.divf %307, %308 : vector<16x1xf32>
    %310 = vector.broadcast %302 : vector<16x1xf32> to vector<16x16xf32>
    %311 = arith.subf %292, %310 : vector<16x16xf32>
    %cst_116 = arith.constant 9.99999974E-6 : f32
    %312 = vector.broadcast %cst_116 : f32 to vector<16x1xf32>
    %313 = arith.addf %309, %312 : vector<16x1xf32>
    %314 = math.rsqrt %313 : vector<16x1xf32>
    %315 = vector.broadcast %314 : vector<16x1xf32> to vector<16x16xf32>
    %316 = arith.mulf %311, %315 : vector<16x16xf32>
    %317 = vector.broadcast %295 : vector<1x16xf32> to vector<16x16xf32>
    %318 = arith.mulf %316, %317 : vector<16x16xf32>
    %319 = vector.broadcast %298 : vector<1x16xf32> to vector<16x16xf32>
    %320 = arith.addf %318, %319 : vector<16x16xf32>
    %321 = arith.truncf %320 : vector<16x16xf32> to vector<16x16xbf16>
    %322 = arith.index_cast %arg0 : i32 to index
    %c0_117 = arith.constant 0 : index
    %c0_118 = arith.constant 0 : index
    %323 = vector.load %arg24[%322, %c0_117, %c0_118] : memref<3x16x32xbf16, #tpu.memory_space<vmem>>, vector<1x16x32xbf16>
    %324 = vector.shape_cast %323 : vector<1x16x32xbf16> to vector<16x32xbf16>
    %cst_119 = arith.constant dense<0.000000e+00> : vector<16x32xf32>
    %325 = tpu.matmul %321, %324, %cst_119 {dimension_numbers = #tpu.dot_dimension_numbers<[1], [0], [0], [1], [0, 0, 1, 1], [], []>} : vector<16x16xbf16>, vector<16x32xbf16>, vector<16x32xf32> -> vector<16x32xf32>
    %326 = arith.index_cast %arg0 : i32 to index
    %c0_120 = arith.constant 0 : index
    %c0_121 = arith.constant 0 : index
    %327 = vector.load %arg25[%326, %c0_120, %c0_121] : memref<3x1x32xf32, #tpu.memory_space<vmem>>, vector<1x1x32xf32>
    %328 = vector.shape_cast %327 : vector<1x1x32xf32> to vector<1x32xf32>
    %329 = vector.broadcast %328 : vector<1x32xf32> to vector<16x32xf32>
    %330 = arith.addf %325, %329 : vector<16x32xf32>
    %331 = arith.index_cast %arg0 : i32 to index
    %c0_122 = arith.constant 0 : index
    %c0_123 = arith.constant 0 : index
    %332 = vector.load %arg26[%331, %c0_122, %c0_123] : memref<3x10x32xf32, #tpu.memory_space<vmem>>, vector<1x10x32xf32>
    %333 = vector.shape_cast %332 : vector<1x10x32xf32> to vector<10x32xf32>
    %334 = vector.extract_strided_slice %330 {offsets = [7, 0], sizes = [1, 32], strides = [1, 1]} : vector<16x32xf32> to vector<1x32xf32>
    %335 = vector.broadcast %334 : vector<1x32xf32> to vector<10x32xf32>
    %336 = arith.addf %335, %333 : vector<10x32xf32>
    %337 = vector.extract_strided_slice %330 {offsets = [15, 0], sizes = [1, 32], strides = [1, 1]} : vector<16x32xf32> to vector<1x32xf32>
    %338 = vector.broadcast %337 : vector<1x32xf32> to vector<10x32xf32>
    %339 = arith.addf %338, %333 : vector<10x32xf32>
    %340 = tpu.concatenate %336, %339 in 0 : vector<10x32xf32>, vector<10x32xf32> -> vector<20x32xf32>
    %341 = arith.truncf %340 : vector<20x32xf32> to vector<20x32xbf16>
    %342 = arith.index_cast %arg0 : i32 to index
    %c0_124 = arith.constant 0 : index
    %c0_125 = arith.constant 0 : index
    %343 = vector.load %arg27[%342, %c0_124, %c0_125] : memref<3x32x128xbf16, #tpu.memory_space<vmem>>, vector<1x32x128xbf16>
    %344 = vector.shape_cast %343 : vector<1x32x128xbf16> to vector<32x128xbf16>
    %cst_126 = arith.constant dense<0.000000e+00> : vector<20x128xf32>
    %345 = tpu.matmul %341, %344, %cst_126 {dimension_numbers = #tpu.dot_dimension_numbers<[1], [0], [0], [1], [0, 0, 1, 1], [], []>} : vector<20x32xbf16>, vector<32x128xbf16>, vector<20x128xf32> -> vector<20x128xf32>
    %346 = arith.index_cast %arg0 : i32 to index
    %c0_127 = arith.constant 0 : index
    %c0_128 = arith.constant 0 : index
    %347 = vector.load %arg28[%346, %c0_127, %c0_128] : memref<3x1x128xf32, #tpu.memory_space<vmem>>, vector<1x1x128xf32>
    %348 = vector.shape_cast %347 : vector<1x1x128xf32> to vector<1x128xf32>
    %349 = vector.broadcast %348 : vector<1x128xf32> to vector<20x128xf32>
    %350 = arith.addf %345, %349 : vector<20x128xf32>
    %cst_129 = arith.constant 5.000000e-01 : f32
    %351 = vector.broadcast %cst_129 : f32 to vector<20x128xf32>
    %352 = arith.mulf %351, %350 : vector<20x128xf32>
    %cst_130 = arith.constant 0.707106769 : f32
    %353 = vector.broadcast %cst_130 : f32 to vector<20x128xf32>
    %354 = arith.mulf %350, %353 : vector<20x128xf32>
    %cst_131 = arith.constant 0.000000e+00 : f32
    %355 = vector.broadcast %cst_131 : f32 to vector<20x128xf32>
    %356 = arith.cmpf oge, %354, %355 : vector<20x128xf32>
    %cst_132 = arith.constant 1.000000e+00 : f32
    %cst_133 = arith.constant -1.000000e+00 : f32
    %357 = vector.broadcast %cst_132 : f32 to vector<20x128xf32>
    %358 = vector.broadcast %cst_133 : f32 to vector<20x128xf32>
    %359 = arith.select %356, %357, %358 : vector<20x128xi1>, vector<20x128xf32>
    %360 = math.absf %354 : vector<20x128xf32>
    %cst_134 = arith.constant 0.327591091 : f32
    %361 = vector.broadcast %cst_134 : f32 to vector<20x128xf32>
    %362 = arith.mulf %361, %360 : vector<20x128xf32>
    %cst_135 = arith.constant 1.000000e+00 : f32
    %363 = vector.broadcast %cst_135 : f32 to vector<20x128xf32>
    %364 = arith.addf %363, %362 : vector<20x128xf32>
    %cst_136 = arith.constant 1.000000e+00 : f32
    %365 = vector.broadcast %cst_136 : f32 to vector<20x128xf32>
    %366 = arith.divf %365, %364 : vector<20x128xf32>
    %cst_137 = arith.constant 1.06140542 : f32
    %367 = vector.broadcast %cst_137 : f32 to vector<20x128xf32>
    %368 = arith.mulf %367, %366 : vector<20x128xf32>
    %cst_138 = arith.constant -1.45315206 : f32
    %369 = vector.broadcast %cst_138 : f32 to vector<20x128xf32>
    %370 = arith.addf %368, %369 : vector<20x128xf32>
    %371 = arith.mulf %370, %366 : vector<20x128xf32>
    %cst_139 = arith.constant 1.42141378 : f32
    %372 = vector.broadcast %cst_139 : f32 to vector<20x128xf32>
    %373 = arith.addf %371, %372 : vector<20x128xf32>
    %374 = arith.mulf %373, %366 : vector<20x128xf32>
    %cst_140 = arith.constant -0.284496725 : f32
    %375 = vector.broadcast %cst_140 : f32 to vector<20x128xf32>
    %376 = arith.addf %374, %375 : vector<20x128xf32>
    %377 = arith.mulf %376, %366 : vector<20x128xf32>
    %cst_141 = arith.constant 0.254829586 : f32
    %378 = vector.broadcast %cst_141 : f32 to vector<20x128xf32>
    %379 = arith.addf %377, %378 : vector<20x128xf32>
    %380 = arith.mulf %379, %366 : vector<20x128xf32>
    %cst_142 = arith.constant 0.000000e+00 : f32
    %381 = vector.broadcast %cst_142 : f32 to vector<20x128xf32>
    %382 = arith.subf %381, %360 : vector<20x128xf32>
    %383 = arith.mulf %382, %360 : vector<20x128xf32>
    %384 = math.exp %383 : vector<20x128xf32>
    %385 = arith.mulf %380, %384 : vector<20x128xf32>
    %cst_143 = arith.constant 1.000000e+00 : f32
    %386 = vector.broadcast %cst_143 : f32 to vector<20x128xf32>
    %387 = arith.subf %386, %385 : vector<20x128xf32>
    %388 = arith.mulf %359, %387 : vector<20x128xf32>
    %cst_144 = arith.constant 1.000000e+00 : f32
    %389 = vector.broadcast %cst_144 : f32 to vector<20x128xf32>
    %390 = arith.addf %389, %388 : vector<20x128xf32>
    %391 = arith.mulf %352, %390 : vector<20x128xf32>
    %392 = arith.truncf %391 : vector<20x128xf32> to vector<20x128xbf16>
    %393 = arith.index_cast %arg0 : i32 to index
    %c0_145 = arith.constant 0 : index
    %c0_146 = arith.constant 0 : index
    %394 = vector.load %arg29[%393, %c0_145, %c0_146] : memref<3x128x32xbf16, #tpu.memory_space<vmem>>, vector<1x128x32xbf16>
    %395 = vector.shape_cast %394 : vector<1x128x32xbf16> to vector<128x32xbf16>
    %cst_147 = arith.constant dense<0.000000e+00> : vector<20x32xf32>
    %396 = tpu.matmul %392, %395, %cst_147 {dimension_numbers = #tpu.dot_dimension_numbers<[1], [0], [0], [1], [0, 0, 1, 1], [], []>} : vector<20x128xbf16>, vector<128x32xbf16>, vector<20x32xf32> -> vector<20x32xf32>
    %397 = arith.index_cast %arg0 : i32 to index
    %c0_148 = arith.constant 0 : index
    %c0_149 = arith.constant 0 : index
    %398 = vector.load %arg30[%397, %c0_148, %c0_149] : memref<3x1x32xf32, #tpu.memory_space<vmem>>, vector<1x1x32xf32>
    %399 = vector.shape_cast %398 : vector<1x1x32xf32> to vector<1x32xf32>
    %400 = vector.broadcast %399 : vector<1x32xf32> to vector<20x32xf32>
    %401 = arith.addf %396, %400 : vector<20x32xf32>
    %402 = arith.truncf %401 : vector<20x32xf32> to vector<20x32xbf16>
    %403 = arith.index_cast %arg0 : i32 to index
    %c0_150 = arith.constant 0 : index
    %c0_151 = arith.constant 0 : index
    %404 = vector.load %arg31[%403, %c0_150, %c0_151] : memref<3x32x32xbf16, #tpu.memory_space<vmem>>, vector<1x32x32xbf16>
    %405 = vector.shape_cast %404 : vector<1x32x32xbf16> to vector<32x32xbf16>
    %cst_152 = arith.constant dense<0.000000e+00> : vector<20x32xf32>
    %406 = tpu.matmul %402, %405, %cst_152 {dimension_numbers = #tpu.dot_dimension_numbers<[1], [0], [0], [1], [0, 0, 1, 1], [], []>} : vector<20x32xbf16>, vector<32x32xbf16>, vector<20x32xf32> -> vector<20x32xf32>
    %407 = arith.index_cast %arg0 : i32 to index
    %c0_153 = arith.constant 0 : index
    %c0_154 = arith.constant 0 : index
    %408 = vector.load %arg32[%407, %c0_153, %c0_154] : memref<3x1x32xf32, #tpu.memory_space<vmem>>, vector<1x1x32xf32>
    %409 = vector.shape_cast %408 : vector<1x1x32xf32> to vector<1x32xf32>
    %410 = vector.broadcast %409 : vector<1x32xf32> to vector<20x32xf32>
    %411 = arith.addf %406, %410 : vector<20x32xf32>
    %412 = arith.index_cast %arg0 : i32 to index
    %c0_155 = arith.constant 0 : index
    %c0_156 = arith.constant 0 : index
    %413 = vector.load %arg33[%412, %c0_155, %c0_156] : memref<3x1x32xf32, #tpu.memory_space<vmem>>, vector<1x1x32xf32>
    %414 = vector.shape_cast %413 : vector<1x1x32xf32> to vector<1x32xf32>
    %415 = arith.index_cast %arg0 : i32 to index
    %c0_157 = arith.constant 0 : index
    %c0_158 = arith.constant 0 : index
    %416 = vector.load %arg34[%415, %c0_157, %c0_158] : memref<3x1x32xf32, #tpu.memory_space<vmem>>, vector<1x1x32xf32>
    %417 = vector.shape_cast %416 : vector<1x1x32xf32> to vector<1x32xf32>
    %cst_159 = arith.constant dense<0.000000e+00> : vector<20xf32>
    %418 = vector.multi_reduction <add>, %411, %cst_159 [1] : vector<20x32xf32> to vector<20xf32>
    %419 = vector.shape_cast %418 : vector<20xf32> to vector<20x1xf32>
    %cst_160 = arith.constant 3.200000e+01 : f32
    %420 = vector.broadcast %cst_160 : f32 to vector<20x1xf32>
    %421 = arith.divf %419, %420 : vector<20x1xf32>
    %422 = vector.broadcast %421 : vector<20x1xf32> to vector<20x32xf32>
    %423 = arith.subf %411, %422 : vector<20x32xf32>
    %424 = arith.mulf %423, %423 : vector<20x32xf32>
    %cst_161 = arith.constant dense<0.000000e+00> : vector<20xf32>
    %425 = vector.multi_reduction <add>, %424, %cst_161 [1] : vector<20x32xf32> to vector<20xf32>
    %426 = vector.shape_cast %425 : vector<20xf32> to vector<20x1xf32>
    %cst_162 = arith.constant 3.200000e+01 : f32
    %427 = vector.broadcast %cst_162 : f32 to vector<20x1xf32>
    %428 = arith.divf %426, %427 : vector<20x1xf32>
    %429 = vector.broadcast %421 : vector<20x1xf32> to vector<20x32xf32>
    %430 = arith.subf %411, %429 : vector<20x32xf32>
    %cst_163 = arith.constant 9.99999974E-6 : f32
    %431 = vector.broadcast %cst_163 : f32 to vector<20x1xf32>
    %432 = arith.addf %428, %431 : vector<20x1xf32>
    %433 = math.rsqrt %432 : vector<20x1xf32>
    %434 = vector.broadcast %433 : vector<20x1xf32> to vector<20x32xf32>
    %435 = arith.mulf %430, %434 : vector<20x32xf32>
    %436 = vector.broadcast %414 : vector<1x32xf32> to vector<20x32xf32>
    %437 = arith.mulf %435, %436 : vector<20x32xf32>
    %438 = vector.broadcast %417 : vector<1x32xf32> to vector<20x32xf32>
    %439 = arith.addf %437, %438 : vector<20x32xf32>
    %cst_164 = arith.constant 5.000000e-01 : f32
    %440 = vector.broadcast %cst_164 : f32 to vector<20x32xf32>
    %441 = arith.mulf %440, %439 : vector<20x32xf32>
    %cst_165 = arith.constant 0.707106769 : f32
    %442 = vector.broadcast %cst_165 : f32 to vector<20x32xf32>
    %443 = arith.mulf %439, %442 : vector<20x32xf32>
    %cst_166 = arith.constant 0.000000e+00 : f32
    %444 = vector.broadcast %cst_166 : f32 to vector<20x32xf32>
    %445 = arith.cmpf oge, %443, %444 : vector<20x32xf32>
    %cst_167 = arith.constant 1.000000e+00 : f32
    %cst_168 = arith.constant -1.000000e+00 : f32
    %446 = vector.broadcast %cst_167 : f32 to vector<20x32xf32>
    %447 = vector.broadcast %cst_168 : f32 to vector<20x32xf32>
    %448 = arith.select %445, %446, %447 : vector<20x32xi1>, vector<20x32xf32>
    %449 = math.absf %443 : vector<20x32xf32>
    %cst_169 = arith.constant 0.327591091 : f32
    %450 = vector.broadcast %cst_169 : f32 to vector<20x32xf32>
    %451 = arith.mulf %450, %449 : vector<20x32xf32>
    %cst_170 = arith.constant 1.000000e+00 : f32
    %452 = vector.broadcast %cst_170 : f32 to vector<20x32xf32>
    %453 = arith.addf %452, %451 : vector<20x32xf32>
    %cst_171 = arith.constant 1.000000e+00 : f32
    %454 = vector.broadcast %cst_171 : f32 to vector<20x32xf32>
    %455 = arith.divf %454, %453 : vector<20x32xf32>
    %cst_172 = arith.constant 1.06140542 : f32
    %456 = vector.broadcast %cst_172 : f32 to vector<20x32xf32>
    %457 = arith.mulf %456, %455 : vector<20x32xf32>
    %cst_173 = arith.constant -1.45315206 : f32
    %458 = vector.broadcast %cst_173 : f32 to vector<20x32xf32>
    %459 = arith.addf %457, %458 : vector<20x32xf32>
    %460 = arith.mulf %459, %455 : vector<20x32xf32>
    %cst_174 = arith.constant 1.42141378 : f32
    %461 = vector.broadcast %cst_174 : f32 to vector<20x32xf32>
    %462 = arith.addf %460, %461 : vector<20x32xf32>
    %463 = arith.mulf %462, %455 : vector<20x32xf32>
    %cst_175 = arith.constant -0.284496725 : f32
    %464 = vector.broadcast %cst_175 : f32 to vector<20x32xf32>
    %465 = arith.addf %463, %464 : vector<20x32xf32>
    %466 = arith.mulf %465, %455 : vector<20x32xf32>
    %cst_176 = arith.constant 0.254829586 : f32
    %467 = vector.broadcast %cst_176 : f32 to vector<20x32xf32>
    %468 = arith.addf %466, %467 : vector<20x32xf32>
    %469 = arith.mulf %468, %455 : vector<20x32xf32>
    %cst_177 = arith.constant 0.000000e+00 : f32
    %470 = vector.broadcast %cst_177 : f32 to vector<20x32xf32>
    %471 = arith.subf %470, %449 : vector<20x32xf32>
    %472 = arith.mulf %471, %449 : vector<20x32xf32>
    %473 = math.exp %472 : vector<20x32xf32>
    %474 = arith.mulf %469, %473 : vector<20x32xf32>
    %cst_178 = arith.constant 1.000000e+00 : f32
    %475 = vector.broadcast %cst_178 : f32 to vector<20x32xf32>
    %476 = arith.subf %475, %474 : vector<20x32xf32>
    %477 = arith.mulf %448, %476 : vector<20x32xf32>
    %cst_179 = arith.constant 1.000000e+00 : f32
    %478 = vector.broadcast %cst_179 : f32 to vector<20x32xf32>
    %479 = arith.addf %478, %477 : vector<20x32xf32>
    %480 = arith.mulf %441, %479 : vector<20x32xf32>
    %481 = arith.index_cast %arg0 : i32 to index
    %c0_180 = arith.constant 0 : index
    %c0_181 = arith.constant 0 : index
    %482 = vector.load %arg35[%481, %c0_180, %c0_181] : memref<3x1x32xf32, #tpu.memory_space<vmem>>, vector<1x1x32xf32>
    %483 = vector.shape_cast %482 : vector<1x1x32xf32> to vector<1x32xf32>
    %484 = tpu.transpose %480, [1, 0] : vector<20x32xf32> -> vector<32x20xf32>
    %cst_182 = arith.constant dense<0.000000e+00> : vector<1x20xf32>
    %485 = tpu.matmul %483, %484, %cst_182 {dimension_numbers = #tpu.dot_dimension_numbers<[1], [0], [0], [1], [0, 0, 1, 1], [], []>} : vector<1x32xf32>, vector<32x20xf32>, vector<1x20xf32> -> vector<1x20xf32>
    %486 = arith.index_cast %arg0 : i32 to index
    %c0_183 = arith.constant 0 : index
    %c0_184 = arith.constant 0 : index
    %487 = vector.load %arg36[%486, %c0_183, %c0_184] : memref<3x1x1xf32, #tpu.memory_space<vmem>>, vector<1x1x1xf32>
    %488 = vector.shape_cast %487 : vector<1x1x1xf32> to vector<1x1xf32>
    %489 = vector.broadcast %488 : vector<1x1xf32> to vector<1x20xf32>
    %490 = arith.addf %485, %489 : vector<1x20xf32>
    %c0_185 = arith.constant 0 : index
    %c0_186 = arith.constant 0 : index
    %c0_187 = arith.constant 0 : index
    %491 = vector.load %arg37[%c0_185, %c0_186, %c0_187] : memref<1x1x20xf32, #tpu.memory_space<vmem>>, vector<1x1x20xf32>
    %492 = vector.shape_cast %491 : vector<1x1x20xf32> to vector<1x20xf32>
    %493 = vector.shape_cast %490 : vector<1x20xf32> to vector<1x1x20xf32>
    tpu.vector_store %arg37[%c0_185, %c0_186, %c0_187], %493 {strides = array<i32>} : memref<1x1x20xf32, #tpu.memory_space<vmem>>, vector<1x1x20xf32>,
    return
  }
  func.func @transform_0(%arg0: i32) -> (i32, i32, i32) {
    %c0_i32 = arith.constant 0 : i32
    %c0_i32_0 = arith.constant 0 : i32
    %c0_i32_1 = arith.constant 0 : i32
    return %arg0, %c0_i32, %c0_i32_0 : i32, i32, i32
  }
  func.func @transform_1(%arg0: i32) -> (i32, i32, i32) {
    %c0_i32 = arith.constant 0 : i32
    %c0_i32_0 = arith.constant 0 : i32
    %c0_i32_1 = arith.constant 0 : i32
    %c0_i32_2 = arith.constant 0 : i32
    return %c0_i32, %c0_i32_0, %c0_i32_1 : i32, i32, i32
  }
  func.func @transform_2(%arg0: i32) -> (i32, i32, i32) {
    %c0_i32 = arith.constant 0 : i32
    %c0_i32_0 = arith.constant 0 : i32
    %c0_i32_1 = arith.constant 0 : i32
    %c0_i32_2 = arith.constant 0 : i32
    return %c0_i32, %c0_i32_0, %c0_i32_1 : i32, i32, i32
  }
  func.func @transform_3(%arg0: i32) -> (i32, i32, i32) {
    %c0_i32 = arith.constant 0 : i32
    %c0_i32_0 = arith.constant 0 : i32
    %c0_i32_1 = arith.constant 0 : i32
    %c0_i32_2 = arith.constant 0 : i32
    return %c0_i32, %c0_i32_0, %c0_i32_1 : i32, i32, i32
  }
  func.func @transform_4(%arg0: i32) -> (i32, i32, i32) {
    %c0_i32 = arith.constant 0 : i32
    %c0_i32_0 = arith.constant 0 : i32
    %c0_i32_1 = arith.constant 0 : i32
    %c0_i32_2 = arith.constant 0 : i32
    return %c0_i32, %c0_i32_0, %c0_i32_1 : i32, i32, i32
  }
  func.func @transform_5(%arg0: i32) -> (i32, i32, i32) {
    %c0_i32 = arith.constant 0 : i32
    %c0_i32_0 = arith.constant 0 : i32
    %c0_i32_1 = arith.constant 0 : i32
    %c0_i32_2 = arith.constant 0 : i32
    return %c0_i32, %c0_i32_0, %c0_i32_1 : i32, i32, i32
  }
  func.func @transform_6(%arg0: i32) -> (i32, i32, i32) {
    %c0_i32 = arith.constant 0 : i32
    %c0_i32_0 = arith.constant 0 : i32
    %c0_i32_1 = arith.constant 0 : i32
    %c0_i32_2 = arith.constant 0 : i32
    return %c0_i32, %c0_i32_0, %c0_i32_1 : i32, i32, i32
  }
  func.func @transform_7(%arg0: i32) -> (i32, i32, i32) {
    %c0_i32 = arith.constant 0 : i32
    %c0_i32_0 = arith.constant 0 : i32
    %c0_i32_1 = arith.constant 0 : i32
    %c0_i32_2 = arith.constant 0 : i32
    return %c0_i32, %c0_i32_0, %c0_i32_1 : i32, i32, i32
  }
  func.func @transform_8(%arg0: i32) -> (i32, i32, i32) {
    %c0_i32 = arith.constant 0 : i32
    %c0_i32_0 = arith.constant 0 : i32
    %c0_i32_1 = arith.constant 0 : i32
    %c0_i32_2 = arith.constant 0 : i32
    return %c0_i32, %c0_i32_0, %c0_i32_1 : i32, i32, i32
  }
  func.func @transform_9(%arg0: i32) -> (i32, i32, i32) {
    %c0_i32 = arith.constant 0 : i32
    %c0_i32_0 = arith.constant 0 : i32
    %c0_i32_1 = arith.constant 0 : i32
    %c0_i32_2 = arith.constant 0 : i32
    return %c0_i32, %c0_i32_0, %c0_i32_1 : i32, i32, i32
  }
  func.func @transform_10(%arg0: i32) -> (i32, i32, i32) {
    %c0_i32 = arith.constant 0 : i32
    %c0_i32_0 = arith.constant 0 : i32
    %c0_i32_1 = arith.constant 0 : i32
    %c0_i32_2 = arith.constant 0 : i32
    return %c0_i32, %c0_i32_0, %c0_i32_1 : i32, i32, i32
  }
  func.func @transform_11(%arg0: i32) -> (i32, i32, i32) {
    %c0_i32 = arith.constant 0 : i32
    %c0_i32_0 = arith.constant 0 : i32
    %c0_i32_1 = arith.constant 0 : i32
    %c0_i32_2 = arith.constant 0 : i32
    return %c0_i32, %c0_i32_0, %c0_i32_1 : i32, i32, i32
  }
  func.func @transform_12(%arg0: i32) -> (i32, i32, i32) {
    %c0_i32 = arith.constant 0 : i32
    %c0_i32_0 = arith.constant 0 : i32
    %c0_i32_1 = arith.constant 0 : i32
    %c0_i32_2 = arith.constant 0 : i32
    return %c0_i32, %c0_i32_0, %c0_i32_1 : i32, i32, i32
  }
  func.func @transform_13(%arg0: i32) -> (i32, i32, i32) {
    %c0_i32 = arith.constant 0 : i32
    %c0_i32_0 = arith.constant 0 : i32
    %c0_i32_1 = arith.constant 0 : i32
    %c0_i32_2 = arith.constant 0 : i32
    return %c0_i32, %c0_i32_0, %c0_i32_1 : i32, i32, i32
  }
  func.func @transform_14(%arg0: i32) -> (i32, i32, i32) {
    %c0_i32 = arith.constant 0 : i32
    %c0_i32_0 = arith.constant 0 : i32
    %c0_i32_1 = arith.constant 0 : i32
    %c0_i32_2 = arith.constant 0 : i32
    return %c0_i32, %c0_i32_0, %c0_i32_1 : i32, i32, i32
  }
  func.func @transform_15(%arg0: i32) -> (i32, i32, i32) {
    %c0_i32 = arith.constant 0 : i32
    %c0_i32_0 = arith.constant 0 : i32
    %c0_i32_1 = arith.constant 0 : i32
    %c0_i32_2 = arith.constant 0 : i32
    return %c0_i32, %c0_i32_0, %c0_i32_1 : i32, i32, i32
  }
  func.func @transform_16(%arg0: i32) -> (i32, i32, i32) {
    %c0_i32 = arith.constant 0 : i32
    %c0_i32_0 = arith.constant 0 : i32
    %c0_i32_1 = arith.constant 0 : i32
    %c0_i32_2 = arith.constant 0 : i32
    return %c0_i32, %c0_i32_0, %c0_i32_1 : i32, i32, i32
  }
  func.func @transform_17(%arg0: i32) -> (i32, i32, i32) {
    %c0_i32 = arith.constant 0 : i32
    %c0_i32_0 = arith.constant 0 : i32
    %c0_i32_1 = arith.constant 0 : i32
    %c0_i32_2 = arith.constant 0 : i32
    return %c0_i32, %c0_i32_0, %c0_i32_1 : i32, i32, i32
  }
  func.func @transform_18(%arg0: i32) -> (i32, i32, i32) {
    %c0_i32 = arith.constant 0 : i32
    %c0_i32_0 = arith.constant 0 : i32
    %c0_i32_1 = arith.constant 0 : i32
    %c0_i32_2 = arith.constant 0 : i32
    return %c0_i32, %c0_i32_0, %c0_i32_1 : i32, i32, i32
  }
  func.func @transform_19(%arg0: i32) -> (i32, i32, i32) {
    %c0_i32 = arith.constant 0 : i32
    %c0_i32_0 = arith.constant 0 : i32
    %c0_i32_1 = arith.constant 0 : i32
    %c0_i32_2 = arith.constant 0 : i32
    return %c0_i32, %c0_i32_0, %c0_i32_1 : i32, i32, i32
  }
  func.func @transform_20(%arg0: i32) -> (i32, i32, i32) {
    %c0_i32 = arith.constant 0 : i32
    %c0_i32_0 = arith.constant 0 : i32
    %c0_i32_1 = arith.constant 0 : i32
    %c0_i32_2 = arith.constant 0 : i32
    return %c0_i32, %c0_i32_0, %c0_i32_1 : i32, i32, i32
  }
  func.func @transform_21(%arg0: i32) -> (i32, i32, i32) {
    %c0_i32 = arith.constant 0 : i32
    %c0_i32_0 = arith.constant 0 : i32
    %c0_i32_1 = arith.constant 0 : i32
    %c0_i32_2 = arith.constant 0 : i32
    return %c0_i32, %c0_i32_0, %c0_i32_1 : i32, i32, i32
  }
  func.func @transform_22(%arg0: i32) -> (i32, i32, i32) {
    %c0_i32 = arith.constant 0 : i32
    %c0_i32_0 = arith.constant 0 : i32
    %c0_i32_1 = arith.constant 0 : i32
    %c0_i32_2 = arith.constant 0 : i32
    return %c0_i32, %c0_i32_0, %c0_i32_1 : i32, i32, i32
  }
  func.func @transform_23(%arg0: i32) -> (i32, i32, i32) {
    %c0_i32 = arith.constant 0 : i32
    %c0_i32_0 = arith.constant 0 : i32
    %c0_i32_1 = arith.constant 0 : i32
    %c0_i32_2 = arith.constant 0 : i32
    return %c0_i32, %c0_i32_0, %c0_i32_1 : i32, i32, i32
  }
  func.func @transform_24(%arg0: i32) -> (i32, i32, i32) {
    %c0_i32 = arith.constant 0 : i32
    %c0_i32_0 = arith.constant 0 : i32
    %c0_i32_1 = arith.constant 0 : i32
    %c0_i32_2 = arith.constant 0 : i32
    return %c0_i32, %c0_i32_0, %c0_i32_1 : i32, i32, i32
  }
  func.func @transform_25(%arg0: i32) -> (i32, i32, i32) {
    %c0_i32 = arith.constant 0 : i32
    %c0_i32_0 = arith.constant 0 : i32
    %c0_i32_1 = arith.constant 0 : i32
    %c0_i32_2 = arith.constant 0 : i32
    return %c0_i32, %c0_i32_0, %c0_i32_1 : i32, i32, i32
  }
  func.func @transform_26(%arg0: i32) -> (i32, i32, i32) {
    %c0_i32 = arith.constant 0 : i32
    %c0_i32_0 = arith.constant 0 : i32
    %c0_i32_1 = arith.constant 0 : i32
    %c0_i32_2 = arith.constant 0 : i32
    return %c0_i32, %c0_i32_0, %c0_i32_1 : i32, i32, i32
  }
  func.func @transform_27(%arg0: i32) -> (i32, i32, i32) {
    %c0_i32 = arith.constant 0 : i32
    %c0_i32_0 = arith.constant 0 : i32
    %c0_i32_1 = arith.constant 0 : i32
    %c0_i32_2 = arith.constant 0 : i32
    return %c0_i32, %c0_i32_0, %c0_i32_1 : i32, i32, i32
  }
  func.func @transform_28(%arg0: i32) -> (i32, i32, i32) {
    %c0_i32 = arith.constant 0 : i32
    %c0_i32_0 = arith.constant 0 : i32
    %c0_i32_1 = arith.constant 0 : i32
    %c0_i32_2 = arith.constant 0 : i32
    return %c0_i32, %c0_i32_0, %c0_i32_1 : i32, i32, i32
  }
  func.func @transform_29(%arg0: i32) -> (i32, i32, i32) {
    %c0_i32 = arith.constant 0 : i32
    %c0_i32_0 = arith.constant 0 : i32
    %c0_i32_1 = arith.constant 0 : i32
    %c0_i32_2 = arith.constant 0 : i32
    return %c0_i32, %c0_i32_0, %c0_i32_1 : i32, i32, i32
  }
  func.func @transform_30(%arg0: i32) -> (i32, i32, i32) {
    %c0_i32 = arith.constant 0 : i32
    %c0_i32_0 = arith.constant 0 : i32
    %c0_i32_1 = arith.constant 0 : i32
    %c0_i32_2 = arith.constant 0 : i32
    return %c0_i32, %c0_i32_0, %c0_i32_1 : i32, i32, i32
  }
  func.func @transform_31(%arg0: i32) -> (i32, i32, i32) {
    %c0_i32 = arith.constant 0 : i32
    %c0_i32_0 = arith.constant 0 : i32
    %c0_i32_1 = arith.constant 0 : i32
    %c0_i32_2 = arith.constant 0 : i32
    return %c0_i32, %c0_i32_0, %c0_i32_1 : i32, i32, i32
  }
  func.func @transform_32(%arg0: i32) -> (i32, i32, i32) {
    %c0_i32 = arith.constant 0 : i32
    %c0_i32_0 = arith.constant 0 : i32
    %c0_i32_1 = arith.constant 0 : i32
    %c0_i32_2 = arith.constant 0 : i32
    return %c0_i32, %c0_i32_0, %c0_i32_1 : i32, i32, i32
  }
  func.func @transform_33(%arg0: i32) -> (i32, i32, i32) {
    %c0_i32 = arith.constant 0 : i32
    %c0_i32_0 = arith.constant 0 : i32
    %c0_i32_1 = arith.constant 0 : i32
    %c0_i32_2 = arith.constant 0 : i32
    return %c0_i32, %c0_i32_0, %c0_i32_1 : i32, i32, i32
  }
  func.func @transform_34(%arg0: i32) -> (i32, i32, i32) {
    %c0_i32 = arith.constant 0 : i32
    %c0_i32_0 = arith.constant 0 : i32
    %c0_i32_1 = arith.constant 0 : i32
    %c0_i32_2 = arith.constant 0 : i32
    return %c0_i32, %c0_i32_0, %c0_i32_1 : i32, i32, i32
  }
  func.func @transform_35(%arg0: i32) -> (i32, i32, i32) {
    %c0_i32 = arith.constant 0 : i32
    %c0_i32_0 = arith.constant 0 : i32
    %c0_i32_1 = arith.constant 0 : i32
    %c0_i32_2 = arith.constant 0 : i32
    return %c0_i32, %c0_i32_0, %c0_i32_1 : i32, i32, i32
  }
  func.func @transform_36(%arg0: i32) -> (i32, i32, i32) {
    %c0_i32 = arith.constant 0 : i32
    %c0_i32_0 = arith.constant 0 : i32
    %c0_i32_1 = arith.constant 0 : i32
    return %arg0, %c0_i32, %c0_i32_0 : i32, i32, i32
  }
  func.func @transform_37(%arg0: i32) -> (i32, i32, i32) {
    %c0_i32 = arith.constant 0 : i32
    %c0_i32_0 = arith.constant 0 : i32
    %c0_i32_1 = arith.constant 0 : i32
    return %arg0, %c0_i32, %c0_i32_0 : i32, i32, i32
  }
}

</mosaic_0001>

<llo_original>
// kernel: _lambda_.1
$region0: #{_lambda_.1}
  #allocation0 [shape = 'u32[]', space=smem, size = 0x4, offset = 0x4, fixed_abs, tag = 'smem constant byte address 0x4 - core index']
  #allocation1 [shape = 'u32[144,128]{1,0:T(1,128)}', space=vmem, size = 0x12000, scoped, tag = 'internal scratch']
  %s0 = inlined_call_operand.smem [shape: u32[38], index: -1, kind: input, shape index: {}]
  %s1 = sld [smem:[%s0]]
  %s2 = scalar_lea.smem %s0, 1
  %s3 = sld [smem:[%s2]]
  %s4 = scalar_lea.smem %s0, 2
  %s5 = sld [smem:[%s4]]
  %s6 = scalar_lea.smem %s0, 3
  %s7 = sld [smem:[%s6]]
  %s8 = scalar_lea.smem %s0, 4
  %s9 = sld [smem:[%s8]]
  %s10 = scalar_lea.smem %s0, 5
  %s11 = sld [smem:[%s10]]
  %s12 = scalar_lea.smem %s0, 6
  %s13 = sld [smem:[%s12]]
  %s14 = scalar_lea.smem %s0, 7
  %s15 = sld [smem:[%s14]]
  %s16 = scalar_lea.smem %s0, 8
  %s17 = sld [smem:[%s16]]
  %s18 = scalar_lea.smem %s0, 9
  %s19 = sld [smem:[%s18]]
  %s20 = scalar_lea.smem %s0, 10
  %s21 = sld [smem:[%s20]]
  %s22 = scalar_lea.smem %s0, 11
  %s23 = sld [smem:[%s22]]
  %s24 = scalar_lea.smem %s0, 12
  %s25 = sld [smem:[%s24]]
  %s26 = scalar_lea.smem %s0, 13
  %s27 = sld [smem:[%s26]]
  %s28 = scalar_lea.smem %s0, 14
  %s29 = sld [smem:[%s28]]
  %s30 = scalar_lea.smem %s0, 15
  %s31 = sld [smem:[%s30]]
  %s32 = scalar_lea.smem %s0, 16
  %s33 = sld [smem:[%s32]]
  %s34 = scalar_lea.smem %s0, 17
  %s35 = sld [smem:[%s34]]
  %s36 = scalar_lea.smem %s0, 18
  %s37 = sld [smem:[%s36]]
  %s38 = scalar_lea.smem %s0, 19
  %s39 = sld [smem:[%s38]]
  %s40 = scalar_lea.smem %s0, 20
  %s41 = sld [smem:[%s40]]
  %s42 = scalar_lea.smem %s0, 21
  %s43 = sld [smem:[%s42]]
  %s44 = scalar_lea.smem %s0, 22
  %s45 = sld [smem:[%s44]]
  %s46 = scalar_lea.smem %s0, 23
  %s47 = sld [smem:[%s46]]
  %s48 = scalar_lea.smem %s0, 24
  %s49 = sld [smem:[%s48]]
  %s50 = scalar_lea.smem %s0, 25
  %s51 = sld [smem:[%s50]]
  %s52 = scalar_lea.smem %s0, 26
  %s53 = sld [smem:[%s52]]
  %s54 = scalar_lea.smem %s0, 27
  %s55 = sld [smem:[%s54]]
  %s56 = scalar_lea.smem %s0, 28
  %s57 = sld [smem:[%s56]]
  %s58 = scalar_lea.smem %s0, 29
  %s59 = sld [smem:[%s58]]
  %s60 = scalar_lea.smem %s0, 30
  %s61 = sld [smem:[%s60]]
  %s62 = scalar_lea.smem %s0, 31
  %s63 = sld [smem:[%s62]]
  %s64 = scalar_lea.smem %s0, 32
  %s65 = sld [smem:[%s64]]
  %s66 = scalar_lea.smem %s0, 33
  %s67 = sld [smem:[%s66]]
  %s68 = scalar_lea.smem %s0, 34
  %s69 = sld [smem:[%s68]]
  %s70 = scalar_lea.smem %s0, 35
  %s71 = sld [smem:[%s70]]
  %s72 = scalar_lea.smem %s0, 36
  %s73 = sld [smem:[%s72]]
  %s74 = scalar_lea.smem %s0, 37
  %s75 = sld [smem:[%s74]]
  %76 = xla_tuple %s73, %s75
  %s77 = sld [smem:[#allocation0]]
  $region185: #{_lambda_.1} parent=0
    _
  %s79 = ssub.s32 1, %s77
  %s80 = scalar_select 0, %s79, %s77
  $region1: #{_lambda_.1} parent=0
    #allocation2 [shape = 'u8[16384]{0}', space=vmem, size = 0x4000, scoped, tag = 'output window, operand 1']
    #allocation3 [shape = 's32[2]{0}', space=sflag, size = 0x8, scoped, tag = 'scoped memory for _lambda_.1']
    %81 = vsyncpa [#allocation3], 0
    %s82 = scalar_lea.sflag [#allocation3], 1
    %83 = vsyncpa %s82, 0
    loop: start=0, step=1, limit=5
    $region2: #{_lambda_.1} parent=1 // loop_pre_header
      _
    $region3: #{_lambda_.1} parent=1 // loop_header
      %s85 = sphi 0, %s89
      %p86 = scmp.ge.s32.totalorder %s85, 5
      %s95 = sphi 0, %s97
      %s98 = sphi 0, %s95
      %s99 = sphi 0, %s98
      %s115 = sphi 0, %s99
      %s119 = sphi 0, %s119
      %s121 = sphi 0, %s119
      %s122 = sphi 0, %s121
      %s136 = sphi 0, %s122
      %s140 = sphi 0, %s140
      %s142 = sphi 0, %s140
      %s143 = sphi 0, %s142
      %s157 = sphi 0, %s143
      %s161 = sphi 0, %s161
      %s163 = sphi 0, %s161
      %s164 = sphi 0, %s163
      %s178 = sphi 0, %s164
      %s182 = sphi 0, %s182
      %s184 = sphi 0, %s182
      %s185 = sphi 0, %s184
      %s199 = sphi 0, %s185
      %s203 = sphi 0, %s203
      %s205 = sphi 0, %s203
      %s206 = sphi 0, %s205
      %s220 = sphi 0, %s206
      %s224 = sphi 0, %s224
      %s226 = sphi 0, %s224
      %s227 = sphi 0, %s226
      %s241 = sphi 0, %s227
      %s245 = sphi 0, %s245
      %s247 = sphi 0, %s245
      %s248 = sphi 0, %s247
      %s262 = sphi 0, %s248
      %s266 = sphi 0, %s266
      %s268 = sphi 0, %s266
      %s269 = sphi 0, %s268
      %s283 = sphi 0, %s269
      %s287 = sphi 0, %s287
      %s289 = sphi 0, %s287
      %s290 = sphi 0, %s289
      %s304 = sphi 0, %s290
      %s308 = sphi 0, %s308
      %s310 = sphi 0, %s308
      %s311 = sphi 0, %s310
      %s325 = sphi 0, %s311
      %s329 = sphi 0, %s329
      %s331 = sphi 0, %s329
      %s332 = sphi 0, %s331
      %s346 = sphi 0, %s332
      %s350 = sphi 0, %s350
      %s352 = sphi 0, %s350
      %s353 = sphi 0, %s352
      %s367 = sphi 0, %s353
      %s371 = sphi 0, %s371
      %s373 = sphi 0, %s371
      %s374 = sphi 0, %s373
      %s388 = sphi 0, %s374
      %s392 = sphi 0, %s392
      %s394 = sphi 0, %s392
      %s395 = sphi 0, %s394
      %s409 = sphi 0, %s395
      %s413 = sphi 0, %s413
      %s415 = sphi 0, %s413
      %s416 = sphi 0, %s415
      %s430 = sphi 0, %s416
      %s434 = sphi 0, %s434
      %s436 = sphi 0, %s434
      %s437 = sphi 0, %s436
      %s451 = sphi 0, %s437
      %s455 = sphi 0, %s455
      %s457 = sphi 0, %s455
      %s458 = sphi 0, %s457
      %s472 = sphi 0, %s458
      %s476 = sphi 0, %s476
      %s478 = sphi 0, %s476
      %s479 = sphi 0, %s478
      %s493 = sphi 0, %s479
      %s497 = sphi 0, %s497
      %s499 = sphi 0, %s497
      %s500 = sphi 0, %s499
      %s514 = sphi 0, %s500
      %s518 = sphi 0, %s518
      %s520 = sphi 0, %s518
      %s521 = sphi 0, %s520
      %s535 = sphi 0, %s521
      %s539 = sphi 0, %s539
      %s541 = sphi 0, %s539
      %s542 = sphi 0, %s541
      %s556 = sphi 0, %s542
      %s560 = sphi 0, %s560
      %s562 = sphi 0, %s560
      %s563 = sphi 0, %s562
      %s577 = sphi 0, %s563
      %s581 = sphi 0, %s581
      %s583 = sphi 0, %s581
      %s584 = sphi 0, %s583
      %s598 = sphi 0, %s584
      %s602 = sphi 0, %s602
      %s604 = sphi 0, %s602
      %s605 = sphi 0, %s604
      %s619 = sphi 0, %s605
      %s623 = sphi 0, %s623
      %s625 = sphi 0, %s623
      %s626 = sphi 0, %s625
      %s640 = sphi 0, %s626
      %s644 = sphi 0, %s644
      %s646 = sphi 0, %s644
      %s647 = sphi 0, %s646
      %s661 = sphi 0, %s647
      %s665 = sphi 0, %s665
      %s667 = sphi 0, %s665
      %s668 = sphi 0, %s667
      %s682 = sphi 0, %s668
      %s686 = sphi 0, %s686
      %s688 = sphi 0, %s686
      %s689 = sphi 0, %s688
      %s703 = sphi 0, %s689
      %s707 = sphi 0, %s707
      %s709 = sphi 0, %s707
      %s710 = sphi 0, %s709
      %s724 = sphi 0, %s710
      %s728 = sphi 0, %s728
      %s730 = sphi 0, %s728
      %s731 = sphi 0, %s730
      %s745 = sphi 0, %s731
      %s749 = sphi 0, %s749
      %s751 = sphi 0, %s749
      %s752 = sphi 0, %s751
      %s766 = sphi 0, %s752
      %s770 = sphi 0, %s770
      %s772 = sphi 0, %s770
      %s773 = sphi 0, %s772
      %s787 = sphi 0, %s773
      %s791 = sphi 0, %s791
      %s793 = sphi 0, %s791
      %s794 = sphi 0, %s793
      %s808 = sphi 0, %s794
      %s812 = sphi 0, %s812
      %s814 = sphi 0, %s812
      %s815 = sphi 0, %s814
      %s829 = sphi 0, %s815
      %s833 = sphi 0, %s833
      %s835 = sphi 0, %s833
      %s836 = sphi 0, %s835
      %s850 = sphi 0, %s836
      %s856 = sphi 0, %s858
      %s859 = sphi 0, %s856
      %s860 = sphi 0, %s859
      %s876 = sphi 0, %s860
      %s882 = sphi 0, %s884
      %s885 = sphi 0, %s882
      %s886 = sphi 0, %s885
      %s902 = sphi 0, %s886
    $region4: #{_lambda_.1} parent=1 // loop_header_branch
      %88 = sbr.rel (%p86) target = $region8
    $region5: #{_lambda_.1} parent=1 // loop_body
      %s90 = ssub.s32 %s85, 1
      %s91 = ssub.s32 %s85, 2
      %s92 = sadd.s32 %s85, 1
      %s93 = ssub.s32 %s85, %s92
      %p94 = scmp.eq.s32.totalorder %s93, 0
      %s96 = sadd.s32 %s95, 1
      %s97 = scalar_select %p94, %s95, %s96
      %p100 = pneg %p94
      %p101 = scmp.eq.s32.totalorder %s85, 2
      %p102 = por %p100, %p101
      %p103 = scmp.ne.s32.totalorder %s95, %s98
      %p104 = scmp.eq.s32.totalorder %s85, 0
      %p105 = por %p103, %p104
      %p106 = scmp.ne.s32.totalorder %s95, %s98
      %p107 = scmp.eq.s32.totalorder %s90, 2
      %p108 = por %p106, %p107
      %p109 = scmp.ne.s32.totalorder %s98, %s99
      %p110 = scmp.eq.s32.totalorder %s90, 0
      %p111 = por %p109, %p110
      %p112 = scmp.ne.s32.totalorder %s98, %s99
      %p113 = scmp.eq.s32.totalorder %s91, 2
      %p114 = por %p112, %p113
      %p116 = scmp.ne.s32.totalorder %s99, %s115
      %p117 = scmp.eq.s32.totalorder %s91, 0
      %p118 = por %p116, %p117
      %s120 = sadd.s32 %s119, 1
      %p123 = scmp.eq.s32.totalorder %s85, 2
      %p124 = scmp.ne.s32.totalorder %s119, %s121
      %p125 = scmp.eq.s32.totalorder %s85, 0
      %p126 = por %p124, %p125
      %p127 = scmp.ne.s32.totalorder %s119, %s121
      %p128 = scmp.eq.s32.totalorder %s90, 2
      %p129 = por %p127, %p128
      %p130 = scmp.ne.s32.totalorder %s121, %s122
      %p131 = scmp.eq.s32.totalorder %s90, 0
      %p132 = por %p130, %p131
      %p133 = scmp.ne.s32.totalorder %s121, %s122
      %p134 = scmp.eq.s32.totalorder %s91, 2
      %p135 = por %p133, %p134
      %p137 = scmp.ne.s32.totalorder %s122, %s136
      %p138 = scmp.eq.s32.totalorder %s91, 0
      %p139 = por %p137, %p138
      %s141 = sadd.s32 %s140, 1
      %p144 = scmp.eq.s32.totalorder %s85, 2
      %p145 = scmp.ne.s32.totalorder %s140, %s142
      %p146 = scmp.eq.s32.totalorder %s85, 0
      %p147 = por %p145, %p146
      %p148 = scmp.ne.s32.totalorder %s140, %s142
      %p149 = scmp.eq.s32.totalorder %s90, 2
      %p150 = por %p148, %p149
      %p151 = scmp.ne.s32.totalorder %s142, %s143
      %p152 = scmp.eq.s32.totalorder %s90, 0
      %p153 = por %p151, %p152
      %p154 = scmp.ne.s32.totalorder %s142, %s143
      %p155 = scmp.eq.s32.totalorder %s91, 2
      %p156 = por %p154, %p155
      %p158 = scmp.ne.s32.totalorder %s143, %s157
      %p159 = scmp.eq.s32.totalorder %s91, 0
      %p160 = por %p158, %p159
      %s162 = sadd.s32 %s161, 1
      %p165 = scmp.eq.s32.totalorder %s85, 2
      %p166 = scmp.ne.s32.totalorder %s161, %s163
      %p167 = scmp.eq.s32.totalorder %s85, 0
      %p168 = por %p166, %p167
      %p169 = scmp.ne.s32.totalorder %s161, %s163
      %p170 = scmp.eq.s32.totalorder %s90, 2
      %p171 = por %p169, %p170
      %p172 = scmp.ne.s32.totalorder %s163, %s164
      %p173 = scmp.eq.s32.totalorder %s90, 0
      %p174 = por %p172, %p173
      %p175 = scmp.ne.s32.totalorder %s163, %s164
      %p176 = scmp.eq.s32.totalorder %s91, 2
      %p177 = por %p175, %p176
      %p179 = scmp.ne.s32.totalorder %s164, %s178
      %p180 = scmp.eq.s32.totalorder %s91, 0
      %p181 = por %p179, %p180
      %s183 = sadd.s32 %s182, 1
      %p186 = scmp.eq.s32.totalorder %s85, 2
      %p187 = scmp.ne.s32.totalorder %s182, %s184
      %p188 = scmp.eq.s32.totalorder %s85, 0
      %p189 = por %p187, %p188
      %p190 = scmp.ne.s32.totalorder %s182, %s184
      %p191 = scmp.eq.s32.totalorder %s90, 2
      %p192 = por %p190, %p191
      %p193 = scmp.ne.s32.totalorder %s184, %s185
      %p194 = scmp.eq.s32.totalorder %s90, 0
      %p195 = por %p193, %p194
      %p196 = scmp.ne.s32.totalorder %s184, %s185
      %p197 = scmp.eq.s32.totalorder %s91, 2
      %p198 = por %p196, %p197
      %p200 = scmp.ne.s32.totalorder %s185, %s199
      %p201 = scmp.eq.s32.totalorder %s91, 0
      %p202 = por %p200, %p201
      %s204 = sadd.s32 %s203, 1
      %p207 = scmp.eq.s32.totalorder %s85, 2
      %p208 = scmp.ne.s32.totalorder %s203, %s205
      %p209 = scmp.eq.s32.totalorder %s85, 0
      %p210 = por %p208, %p209
      %p211 = scmp.ne.s32.totalorder %s203, %s205
      %p212 = scmp.eq.s32.totalorder %s90, 2
      %p213 = por %p211, %p212
      %p214 = scmp.ne.s32.totalorder %s205, %s206
      %p215 = scmp.eq.s32.totalorder %s90, 0
      %p216 = por %p214, %p215
      %p217 = scmp.ne.s32.totalorder %s205, %s206
      %p218 = scmp.eq.s32.totalorder %s91, 2
      %p219 = por %p217, %p218
      %p221 = scmp.ne.s32.totalorder %s206, %s220
      %p222 = scmp.eq.s32.totalorder %s91, 0
      %p223 = por %p221, %p222
      %s225 = sadd.s32 %s224, 1
      %p228 = scmp.eq.s32.totalorder %s85, 2
      %p229 = scmp.ne.s32.totalorder %s224, %s226
      %p230 = scmp.eq.s32.totalorder %s85, 0
      %p231 = por %p229, %p230
      %p232 = scmp.ne.s32.totalorder %s224, %s226
      %p233 = scmp.eq.s32.totalorder %s90, 2
      %p234 = por %p232, %p233
      %p235 = scmp.ne.s32.totalorder %s226, %s227
      %p236 = scmp.eq.s32.totalorder %s90, 0
      %p237 = por %p235, %p236
      %p238 = scmp.ne.s32.totalorder %s226, %s227
      %p239 = scmp.eq.s32.totalorder %s91, 2
      %p240 = por %p238, %p239
      %p242 = scmp.ne.s32.totalorder %s227, %s241
      %p243 = scmp.eq.s32.totalorder %s91, 0
      %p244 = por %p242, %p243
      %s246 = sadd.s32 %s245, 1
      %p249 = scmp.eq.s32.totalorder %s85, 2
      %p250 = scmp.ne.s32.totalorder %s245, %s247
      %p251 = scmp.eq.s32.totalorder %s85, 0
      %p252 = por %p250, %p251
      %p253 = scmp.ne.s32.totalorder %s245, %s247
      %p254 = scmp.eq.s32.totalorder %s90, 2
      %p255 = por %p253, %p254
      %p256 = scmp.ne.s32.totalorder %s247, %s248
      %p257 = scmp.eq.s32.totalorder %s90, 0
      %p258 = por %p256, %p257
      %p259 = scmp.ne.s32.totalorder %s247, %s248
      %p260 = scmp.eq.s32.totalorder %s91, 2
      %p261 = por %p259, %p260
      %p263 = scmp.ne.s32.totalorder %s248, %s262
      %p264 = scmp.eq.s32.totalorder %s91, 0
      %p265 = por %p263, %p264
      %s267 = sadd.s32 %s266, 1
      %p270 = scmp.eq.s32.totalorder %s85, 2
      %p271 = scmp.ne.s32.totalorder %s266, %s268
      %p272 = scmp.eq.s32.totalorder %s85, 0
      %p273 = por %p271, %p272
      %p274 = scmp.ne.s32.totalorder %s266, %s268
      %p275 = scmp.eq.s32.totalorder %s90, 2
      %p276 = por %p274, %p275
      %p277 = scmp.ne.s32.totalorder %s268, %s269
      %p278 = scmp.eq.s32.totalorder %s90, 0
      %p279 = por %p277, %p278
      %p280 = scmp.ne.s32.totalorder %s268, %s269
      %p281 = scmp.eq.s32.totalorder %s91, 2
      %p282 = por %p280, %p281
      %p284 = scmp.ne.s32.totalorder %s269, %s283
      %p285 = scmp.eq.s32.totalorder %s91, 0
      %p286 = por %p284, %p285
      %s288 = sadd.s32 %s287, 1
      %p291 = scmp.eq.s32.totalorder %s85, 2
      %p292 = scmp.ne.s32.totalorder %s287, %s289
      %p293 = scmp.eq.s32.totalorder %s85, 0
      %p294 = por %p292, %p293
      %p295 = scmp.ne.s32.totalorder %s287, %s289
      %p296 = scmp.eq.s32.totalorder %s90, 2
      %p297 = por %p295, %p296
      %p298 = scmp.ne.s32.totalorder %s289, %s290
      %p299 = scmp.eq.s32.totalorder %s90, 0
      %p300 = por %p298, %p299
      %p301 = scmp.ne.s32.totalorder %s289, %s290
      %p302 = scmp.eq.s32.totalorder %s91, 2
      %p303 = por %p301, %p302
      %p305 = scmp.ne.s32.totalorder %s290, %s304
      %p306 = scmp.eq.s32.totalorder %s91, 0
      %p307 = por %p305, %p306
      %s309 = sadd.s32 %s308, 1
      %p312 = scmp.eq.s32.totalorder %s85, 2
      %p313 = scmp.ne.s32.totalorder %s308, %s310
      %p314 = scmp.eq.s32.totalorder %s85, 0
      %p315 = por %p313, %p314
      %p316 = scmp.ne.s32.totalorder %s308, %s310
      %p317 = scmp.eq.s32.totalorder %s90, 2
      %p318 = por %p316, %p317
      %p319 = scmp.ne.s32.totalorder %s310, %s311
      %p320 = scmp.eq.s32.totalorder %s90, 0
      %p321 = por %p319, %p320
      %p322 = scmp.ne.s32.totalorder %s310, %s311
      %p323 = scmp.eq.s32.totalorder %s91, 2
      %p324 = por %p322, %p323
      %p326 = scmp.ne.s32.totalorder %s311, %s325
      %p327 = scmp.eq.s32.totalorder %s91, 0
      %p328 = por %p326, %p327
      %s330 = sadd.s32 %s329, 1
      %p333 = scmp.eq.s32.totalorder %s85, 2
      %p334 = scmp.ne.s32.totalorder %s329, %s331
      %p335 = scmp.eq.s32.totalorder %s85, 0
      %p336 = por %p334, %p335
      %p337 = scmp.ne.s32.totalorder %s329, %s331
      %p338 = scmp.eq.s32.totalorder %s90, 2
      %p339 = por %p337, %p338
      %p340 = scmp.ne.s32.totalorder %s331, %s332
      %p341 = scmp.eq.s32.totalorder %s90, 0
      %p342 = por %p340, %p341
      %p343 = scmp.ne.s32.totalorder %s331, %s332
      %p344 = scmp.eq.s32.totalorder %s91, 2
      %p345 = por %p343, %p344
      %p347 = scmp.ne.s32.totalorder %s332, %s346
      %p348 = scmp.eq.s32.totalorder %s91, 0
      %p349 = por %p347, %p348
      %s351 = sadd.s32 %s350, 1
      %p354 = scmp.eq.s32.totalorder %s85, 2
      %p355 = scmp.ne.s32.totalorder %s350, %s352
      %p356 = scmp.eq.s32.totalorder %s85, 0
      %p357 = por %p355, %p356
      %p358 = scmp.ne.s32.totalorder %s350, %s352
      %p359 = scmp.eq.s32.totalorder %s90, 2
      %p360 = por %p358, %p359
      %p361 = scmp.ne.s32.totalorder %s352, %s353
      %p362 = scmp.eq.s32.totalorder %s90, 0
      %p363 = por %p361, %p362
      %p364 = scmp.ne.s32.totalorder %s352, %s353
      %p365 = scmp.eq.s32.totalorder %s91, 2
      %p366 = por %p364, %p365
      %p368 = scmp.ne.s32.totalorder %s353, %s367
      %p369 = scmp.eq.s32.totalorder %s91, 0
      %p370 = por %p368, %p369
      %s372 = sadd.s32 %s371, 1
      %p375 = scmp.eq.s32.totalorder %s85, 2
      %p376 = scmp.ne.s32.totalorder %s371, %s373
      %p377 = scmp.eq.s32.totalorder %s85, 0
      %p378 = por %p376, %p377
      %p379 = scmp.ne.s32.totalorder %s371, %s373
      %p380 = scmp.eq.s32.totalorder %s90, 2
      %p381 = por %p379, %p380
      %p382 = scmp.ne.s32.totalorder %s373, %s374
      %p383 = scmp.eq.s32.totalorder %s90, 0
      %p384 = por %p382, %p383
      %p385 = scmp.ne.s32.totalorder %s373, %s374
      %p386 = scmp.eq.s32.totalorder %s91, 2
      %p387 = por %p385, %p386
      %p389 = scmp.ne.s32.totalorder %s374, %s388
      %p390 = scmp.eq.s32.totalorder %s91, 0
      %p391 = por %p389, %p390
      %s393 = sadd.s32 %s392, 1
      %p396 = scmp.eq.s32.totalorder %s85, 2
      %p397 = scmp.ne.s32.totalorder %s392, %s394
      %p398 = scmp.eq.s32.totalorder %s85, 0
      %p399 = por %p397, %p398
      %p400 = scmp.ne.s32.totalorder %s392, %s394
      %p401 = scmp.eq.s32.totalorder %s90, 2
      %p402 = por %p400, %p401
      %p403 = scmp.ne.s32.totalorder %s394, %s395
      %p404 = scmp.eq.s32.totalorder %s90, 0
      %p405 = por %p403, %p404
      %p406 = scmp.ne.s32.totalorder %s394, %s395
      %p407 = scmp.eq.s32.totalorder %s91, 2
      %p408 = por %p406, %p407
      %p410 = scmp.ne.s32.totalorder %s395, %s409
      %p411 = scmp.eq.s32.totalorder %s91, 0
      %p412 = por %p410, %p411
      %s414 = sadd.s32 %s413, 1
      %p417 = scmp.eq.s32.totalorder %s85, 2
      %p418 = scmp.ne.s32.totalorder %s413, %s415
      %p419 = scmp.eq.s32.totalorder %s85, 0
      %p420 = por %p418, %p419
      %p421 = scmp.ne.s32.totalorder %s413, %s415
      %p422 = scmp.eq.s32.totalorder %s90, 2
      %p423 = por %p421, %p422
      %p424 = scmp.ne.s32.totalorder %s415, %s416
      %p425 = scmp.eq.s32.totalorder %s90, 0
      %p426 = por %p424, %p425
      %p427 = scmp.ne.s32.totalorder %s415, %s416
      %p428 = scmp.eq.s32.totalorder %s91, 2
      %p429 = por %p427, %p428
      %p431 = scmp.ne.s32.totalorder %s416, %s430
      %p432 = scmp.eq.s32.totalorder %s91, 0
      %p433 = por %p431, %p432
      %s435 = sadd.s32 %s434, 1
      %p438 = scmp.eq.s32.totalorder %s85, 2
      %p439 = scmp.ne.s32.totalorder %s434, %s436
      %p440 = scmp.eq.s32.totalorder %s85, 0
      %p441 = por %p439, %p440
      %p442 = scmp.ne.s32.totalorder %s434, %s436
      %p443 = scmp.eq.s32.totalorder %s90, 2
      %p444 = por %p442, %p443
      %p445 = scmp.ne.s32.totalorder %s436, %s437
      %p446 = scmp.eq.s32.totalorder %s90, 0
      %p447 = por %p445, %p446
      %p448 = scmp.ne.s32.totalorder %s436, %s437
      %p449 = scmp.eq.s32.totalorder %s91, 2
      %p450 = por %p448, %p449
      %p452 = scmp.ne.s32.totalorder %s437, %s451
      %p453 = scmp.eq.s32.totalorder %s91, 0
      %p454 = por %p452, %p453
      %s456 = sadd.s32 %s455, 1
      %p459 = scmp.eq.s32.totalorder %s85, 2
      %p460 = scmp.ne.s32.totalorder %s455, %s457
      %p461 = scmp.eq.s32.totalorder %s85, 0
      %p462 = por %p460, %p461
      %p463 = scmp.ne.s32.totalorder %s455, %s457
      %p464 = scmp.eq.s32.totalorder %s90, 2
      %p465 = por %p463, %p464
      %p466 = scmp.ne.s32.totalorder %s457, %s458
      %p467 = scmp.eq.s32.totalorder %s90, 0
      %p468 = por %p466, %p467
      %p469 = scmp.ne.s32.totalorder %s457, %s458
      %p470 = scmp.eq.s32.totalorder %s91, 2
      %p471 = por %p469, %p470
      %p473 = scmp.ne.s32.totalorder %s458, %s472
      %p474 = scmp.eq.s32.totalorder %s91, 0
      %p475 = por %p473, %p474
      %s477 = sadd.s32 %s476, 1
      %p480 = scmp.eq.s32.totalorder %s85, 2
      %p481 = scmp.ne.s32.totalorder %s476, %s478
      %p482 = scmp.eq.s32.totalorder %s85, 0
      %p483 = por %p481, %p482
      %p484 = scmp.ne.s32.totalorder %s476, %s478
      %p485 = scmp.eq.s32.totalorder %s90, 2
      %p486 = por %p484, %p485
      %p487 = scmp.ne.s32.totalorder %s478, %s479
      %p488 = scmp.eq.s32.totalorder %s90, 0
      %p489 = por %p487, %p488
      %p490 = scmp.ne.s32.totalorder %s478, %s479
      %p491 = scmp.eq.s32.totalorder %s91, 2
      %p492 = por %p490, %p491
      %p494 = scmp.ne.s32.totalorder %s479, %s493
      %p495 = scmp.eq.s32.totalorder %s91, 0
      %p496 = por %p494, %p495
      %s498 = sadd.s32 %s497, 1
      %p501 = scmp.eq.s32.totalorder %s85, 2
      %p502 = scmp.ne.s32.totalorder %s497, %s499
      %p503 = scmp.eq.s32.totalorder %s85, 0
      %p504 = por %p502, %p503
      %p505 = scmp.ne.s32.totalorder %s497, %s499
      %p506 = scmp.eq.s32.totalorder %s90, 2
      %p507 = por %p505, %p506
      %p508 = scmp.ne.s32.totalorder %s499, %s500
      %p509 = scmp.eq.s32.totalorder %s90, 0
      %p510 = por %p508, %p509
      %p511 = scmp.ne.s32.totalorder %s499, %s500
      %p512 = scmp.eq.s32.totalorder %s91, 2
      %p513 = por %p511, %p512
      %p515 = scmp.ne.s32.totalorder %s500, %s514
      %p516 = scmp.eq.s32.totalorder %s91, 0
      %p517 = por %p515, %p516
      %s519 = sadd.s32 %s518, 1
      %p522 = scmp.eq.s32.totalorder %s85, 2
      %p523 = scmp.ne.s32.totalorder %s518, %s520
      %p524 = scmp.eq.s32.totalorder %s85, 0
      %p525 = por %p523, %p524
      %p526 = scmp.ne.s32.totalorder %s518, %s520
      %p527 = scmp.eq.s32.totalorder %s90, 2
      %p528 = por %p526, %p527
      %p529 = scmp.ne.s32.totalorder %s520, %s521
      %p530 = scmp.eq.s32.totalorder %s90, 0
      %p531 = por %p529, %p530
      %p532 = scmp.ne.s32.totalorder %s520, %s521
      %p533 = scmp.eq.s32.totalorder %s91, 2
      %p534 = por %p532, %p533
      %p536 = scmp.ne.s32.totalorder %s521, %s535
      %p537 = scmp.eq.s32.totalorder %s91, 0
      %p538 = por %p536, %p537
      %s540 = sadd.s32 %s539, 1
      %p543 = scmp.eq.s32.totalorder %s85, 2
      %p544 = scmp.ne.s32.totalorder %s539, %s541
      %p545 = scmp.eq.s32.totalorder %s85, 0
      %p546 = por %p544, %p545
      %p547 = scmp.ne.s32.totalorder %s539, %s541
      %p548 = scmp.eq.s32.totalorder %s90, 2
      %p549 = por %p547, %p548
      %p550 = scmp.ne.s32.totalorder %s541, %s542
      %p551 = scmp.eq.s32.totalorder %s90, 0
      %p552 = por %p550, %p551
      %p553 = scmp.ne.s32.totalorder %s541, %s542
      %p554 = scmp.eq.s32.totalorder %s91, 2
      %p555 = por %p553, %p554
      %p557 = scmp.ne.s32.totalorder %s542, %s556
      %p558 = scmp.eq.s32.totalorder %s91, 0
      %p559 = por %p557, %p558
      %s561 = sadd.s32 %s560, 1
      %p564 = scmp.eq.s32.totalorder %s85, 2
      %p565 = scmp.ne.s32.totalorder %s560, %s562
      %p566 = scmp.eq.s32.totalorder %s85, 0
      %p567 = por %p565, %p566
      %p568 = scmp.ne.s32.totalorder %s560, %s562
      %p569 = scmp.eq.s32.totalorder %s90, 2
      %p570 = por %p568, %p569
      %p571 = scmp.ne.s32.totalorder %s562, %s563
      %p572 = scmp.eq.s32.totalorder %s90, 0
      %p573 = por %p571, %p572
      %p574 = scmp.ne.s32.totalorder %s562, %s563
      %p575 = scmp.eq.s32.totalorder %s91, 2
      %p576 = por %p574, %p575
      %p578 = scmp.ne.s32.totalorder %s563, %s577
      %p579 = scmp.eq.s32.totalorder %s91, 0
      %p580 = por %p578, %p579
      %s582 = sadd.s32 %s581, 1
      %p585 = scmp.eq.s32.totalorder %s85, 2
      %p586 = scmp.ne.s32.totalorder %s581, %s583
      %p587 = scmp.eq.s32.totalorder %s85, 0
      %p588 = por %p586, %p587
      %p589 = scmp.ne.s32.totalorder %s581, %s583
      %p590 = scmp.eq.s32.totalorder %s90, 2
      %p591 = por %p589, %p590
      %p592 = scmp.ne.s32.totalorder %s583, %s584
      %p593 = scmp.eq.s32.totalorder %s90, 0
      %p594 = por %p592, %p593
      %p595 = scmp.ne.s32.totalorder %s583, %s584
      %p596 = scmp.eq.s32.totalorder %s91, 2
      %p597 = por %p595, %p596
      %p599 = scmp.ne.s32.totalorder %s584, %s598
      %p600 = scmp.eq.s32.totalorder %s91, 0
      %p601 = por %p599, %p600
      %s603 = sadd.s32 %s602, 1
      %p606 = scmp.eq.s32.totalorder %s85, 2
      %p607 = scmp.ne.s32.totalorder %s602, %s604
      %p608 = scmp.eq.s32.totalorder %s85, 0
      %p609 = por %p607, %p608
      %p610 = scmp.ne.s32.totalorder %s602, %s604
      %p611 = scmp.eq.s32.totalorder %s90, 2
      %p612 = por %p610, %p611
      %p613 = scmp.ne.s32.totalorder %s604, %s605
      %p614 = scmp.eq.s32.totalorder %s90, 0
      %p615 = por %p613, %p614
      %p616 = scmp.ne.s32.totalorder %s604, %s605
      %p617 = scmp.eq.s32.totalorder %s91, 2
      %p618 = por %p616, %p617
      %p620 = scmp.ne.s32.totalorder %s605, %s619
      %p621 = scmp.eq.s32.totalorder %s91, 0
      %p622 = por %p620, %p621
      %s624 = sadd.s32 %s623, 1
      %p627 = scmp.eq.s32.totalorder %s85, 2
      %p628 = scmp.ne.s32.totalorder %s623, %s625
      %p629 = scmp.eq.s32.totalorder %s85, 0
      %p630 = por %p628, %p629
      %p631 = scmp.ne.s32.totalorder %s623, %s625
      %p632 = scmp.eq.s32.totalorder %s90, 2
      %p633 = por %p631, %p632
      %p634 = scmp.ne.s32.totalorder %s625, %s626
      %p635 = scmp.eq.s32.totalorder %s90, 0
      %p636 = por %p634, %p635
      %p637 = scmp.ne.s32.totalorder %s625, %s626
      %p638 = scmp.eq.s32.totalorder %s91, 2
      %p639 = por %p637, %p638
      %p641 = scmp.ne.s32.totalorder %s626, %s640
      %p642 = scmp.eq.s32.totalorder %s91, 0
      %p643 = por %p641, %p642
      %s645 = sadd.s32 %s644, 1
      %p648 = scmp.eq.s32.totalorder %s85, 2
      %p649 = scmp.ne.s32.totalorder %s644, %s646
      %p650 = scmp.eq.s32.totalorder %s85, 0
      %p651 = por %p649, %p650
      %p652 = scmp.ne.s32.totalorder %s644, %s646
      %p653 = scmp.eq.s32.totalorder %s90, 2
      %p654 = por %p652, %p653
      %p655 = scmp.ne.s32.totalorder %s646, %s647
      %p656 = scmp.eq.s32.totalorder %s90, 0
      %p657 = por %p655, %p656
      %p658 = scmp.ne.s32.totalorder %s646, %s647
      %p659 = scmp.eq.s32.totalorder %s91, 2
      %p660 = por %p658, %p659
      %p662 = scmp.ne.s32.totalorder %s647, %s661
      %p663 = scmp.eq.s32.totalorder %s91, 0
      %p664 = por %p662, %p663
      %s666 = sadd.s32 %s665, 1
      %p669 = scmp.eq.s32.totalorder %s85, 2
      %p670 = scmp.ne.s32.totalorder %s665, %s667
      %p671 = scmp.eq.s32.totalorder %s85, 0
      %p672 = por %p670, %p671
      %p673 = scmp.ne.s32.totalorder %s665, %s667
      %p674 = scmp.eq.s32.totalorder %s90, 2
      %p675 = por %p673, %p674
      %p676 = scmp.ne.s32.totalorder %s667, %s668
      %p677 = scmp.eq.s32.totalorder %s90, 0
      %p678 = por %p676, %p677
      %p679 = scmp.ne.s32.totalorder %s667, %s668
      %p680 = scmp.eq.s32.totalorder %s91, 2
      %p681 = por %p679, %p680
      %p683 = scmp.ne.s32.totalorder %s668, %s682
      %p684 = scmp.eq.s32.totalorder %s91, 0
      %p685 = por %p683, %p684
      %s687 = sadd.s32 %s686, 1
      %p690 = scmp.eq.s32.totalorder %s85, 2
      %p691 = scmp.ne.s32.totalorder %s686, %s688
      %p692 = scmp.eq.s32.totalorder %s85, 0
      %p693 = por %p691, %p692
      %p694 = scmp.ne.s32.totalorder %s686, %s688
      %p695 = scmp.eq.s32.totalorder %s90, 2
      %p696 = por %p694, %p695
      %p697 = scmp.ne.s32.totalorder %s688, %s689
      %p698 = scmp.eq.s32.totalorder %s90, 0
      %p699 = por %p697, %p698
      %p700 = scmp.ne.s32.totalorder %s688, %s689
      %p701 = scmp.eq.s32.totalorder %s91, 2
      %p702 = por %p700, %p701
      %p704 = scmp.ne.s32.totalorder %s689, %s703
      %p705 = scmp.eq.s32.totalorder %s91, 0
      %p706 = por %p704, %p705
      %s708 = sadd.s32 %s707, 1
      %p711 = scmp.eq.s32.totalorder %s85, 2
      %p712 = scmp.ne.s32.totalorder %s707, %s709
      %p713 = scmp.eq.s32.totalorder %s85, 0
      %p714 = por %p712, %p713
      %p715 = scmp.ne.s32.totalorder %s707, %s709
      %p716 = scmp.eq.s32.totalorder %s90, 2
      %p717 = por %p715, %p716
      %p718 = scmp.ne.s32.totalorder %s709, %s710
      %p719 = scmp.eq.s32.totalorder %s90, 0
      %p720 = por %p718, %p719
      %p721 = scmp.ne.s32.totalorder %s709, %s710
      %p722 = scmp.eq.s32.totalorder %s91, 2
      %p723 = por %p721, %p722
      %p725 = scmp.ne.s32.totalorder %s710, %s724
      %p726 = scmp.eq.s32.totalorder %s91, 0
      %p727 = por %p725, %p726
      %s729 = sadd.s32 %s728, 1
      %p732 = scmp.eq.s32.totalorder %s85, 2
      %p733 = scmp.ne.s32.totalorder %s728, %s730
      %p734 = scmp.eq.s32.totalorder %s85, 0
      %p735 = por %p733, %p734
      %p736 = scmp.ne.s32.totalorder %s728, %s730
      %p737 = scmp.eq.s32.totalorder %s90, 2
      %p738 = por %p736, %p737
      %p739 = scmp.ne.s32.totalorder %s730, %s731
      %p740 = scmp.eq.s32.totalorder %s90, 0
      %p741 = por %p739, %p740
      %p742 = scmp.ne.s32.totalorder %s730, %s731
      %p743 = scmp.eq.s32.totalorder %s91, 2
      %p744 = por %p742, %p743
      %p746 = scmp.ne.s32.totalorder %s731, %s745
      %p747 = scmp.eq.s32.totalorder %s91, 0
      %p748 = por %p746, %p747
      %s750 = sadd.s32 %s749, 1
      %p753 = scmp.eq.s32.totalorder %s85, 2
      %p754 = scmp.ne.s32.totalorder %s749, %s751
      %p755 = scmp.eq.s32.totalorder %s85, 0
      %p756 = por %p754, %p755
      %p757 = scmp.ne.s32.totalorder %s749, %s751
      %p758 = scmp.eq.s32.totalorder %s90, 2
      %p759 = por %p757, %p758
      %p760 = scmp.ne.s32.totalorder %s751, %s752
      %p761 = scmp.eq.s32.totalorder %s90, 0
      %p762 = por %p760, %p761
      %p763 = scmp.ne.s32.totalorder %s751, %s752
      %p764 = scmp.eq.s32.totalorder %s91, 2
      %p765 = por %p763, %p764
      %p767 = scmp.ne.s32.totalorder %s752, %s766
      %p768 = scmp.eq.s32.totalorder %s91, 0
      %p769 = por %p767, %p768
      %s771 = sadd.s32 %s770, 1
      %p774 = scmp.eq.s32.totalorder %s85, 2
      %p775 = scmp.ne.s32.totalorder %s770, %s772
      %p776 = scmp.eq.s32.totalorder %s85, 0
      %p777 = por %p775, %p776
      %p778 = scmp.ne.s32.totalorder %s770, %s772
      %p779 = scmp.eq.s32.totalorder %s90, 2
      %p780 = por %p778, %p779
      %p781 = scmp.ne.s32.totalorder %s772, %s773
      %p782 = scmp.eq.s32.totalorder %s90, 0
      %p783 = por %p781, %p782
      %p784 = scmp.ne.s32.totalorder %s772, %s773
      %p785 = scmp.eq.s32.totalorder %s91, 2
      %p786 = por %p784, %p785
      %p788 = scmp.ne.s32.totalorder %s773, %s787
      %p789 = scmp.eq.s32.totalorder %s91, 0
      %p790 = por %p788, %p789
      %s792 = sadd.s32 %s791, 1
      %p795 = scmp.eq.s32.totalorder %s85, 2
      %p796 = scmp.ne.s32.totalorder %s791, %s793
      %p797 = scmp.eq.s32.totalorder %s85, 0
      %p798 = por %p796, %p797
      %p799 = scmp.ne.s32.totalorder %s791, %s793
      %p800 = scmp.eq.s32.totalorder %s90, 2
      %p801 = por %p799, %p800
      %p802 = scmp.ne.s32.totalorder %s793, %s794
      %p803 = scmp.eq.s32.totalorder %s90, 0
      %p804 = por %p802, %p803
      %p805 = scmp.ne.s32.totalorder %s793, %s794
      %p806 = scmp.eq.s32.totalorder %s91, 2
      %p807 = por %p805, %p806
      %p809 = scmp.ne.s32.totalorder %s794, %s808
      %p810 = scmp.eq.s32.totalorder %s91, 0
      %p811 = por %p809, %p810
      %s813 = sadd.s32 %s812, 1
      %p816 = scmp.eq.s32.totalorder %s85, 2
      %p817 = scmp.ne.s32.totalorder %s812, %s814
      %p818 = scmp.eq.s32.totalorder %s85, 0
      %p819 = por %p817, %p818
      %p820 = scmp.ne.s32.totalorder %s812, %s814
      %p821 = scmp.eq.s32.totalorder %s90, 2
      %p822 = por %p820, %p821
      %p823 = scmp.ne.s32.totalorder %s814, %s815
      %p824 = scmp.eq.s32.totalorder %s90, 0
      %p825 = por %p823, %p824
      %p826 = scmp.ne.s32.totalorder %s814, %s815
      %p827 = scmp.eq.s32.totalorder %s91, 2
      %p828 = por %p826, %p827
      %p830 = scmp.ne.s32.totalorder %s815, %s829
      %p831 = scmp.eq.s32.totalorder %s91, 0
      %p832 = por %p830, %p831
      %s834 = sadd.s32 %s833, 1
      %p837 = scmp.eq.s32.totalorder %s85, 2
      %p838 = scmp.ne.s32.totalorder %s833, %s835
      %p839 = scmp.eq.s32.totalorder %s85, 0
      %p840 = por %p838, %p839
      %p841 = scmp.ne.s32.totalorder %s833, %s835
      %p842 = scmp.eq.s32.totalorder %s90, 2
      %p843 = por %p841, %p842
      %p844 = scmp.ne.s32.totalorder %s835, %s836
      %p845 = scmp.eq.s32.totalorder %s90, 0
      %p846 = por %p844, %p845
      %p847 = scmp.ne.s32.totalorder %s835, %s836
      %p848 = scmp.eq.s32.totalorder %s91, 2
      %p849 = por %p847, %p848
      %p851 = scmp.ne.s32.totalorder %s836, %s850
      %p852 = scmp.eq.s32.totalorder %s91, 0
      %p853 = por %p851, %p852
      %s854 = ssub.s32 %s85, %s92
      %p855 = scmp.eq.s32.totalorder %s854, 0
      %s857 = sadd.s32 %s856, 1
      %s858 = scalar_select %p855, %s856, %s857
      %p861 = pneg %p855
      %p862 = scmp.eq.s32.totalorder %s85, 2
      %p863 = por %p861, %p862
      %p864 = scmp.ne.s32.totalorder %s856, %s859
      %p865 = scmp.eq.s32.totalorder %s85, 0
      %p866 = por %p864, %p865
      %p867 = scmp.ne.s32.totalorder %s856, %s859
      %p868 = scmp.eq.s32.totalorder %s90, 2
      %p869 = por %p867, %p868
      %p870 = scmp.ne.s32.totalorder %s859, %s860
      %p871 = scmp.eq.s32.totalorder %s90, 0
      %p872 = por %p870, %p871
      %p873 = scmp.ne.s32.totalorder %s859, %s860
      %p874 = scmp.eq.s32.totalorder %s91, 2
      %p875 = por %p873, %p874
      %p877 = scmp.ne.s32.totalorder %s860, %s876
      %p878 = scmp.eq.s32.totalorder %s91, 0
      %p879 = por %p877, %p878
      %s880 = ssub.s32 %s85, %s92
      %p881 = scmp.eq.s32.totalorder %s880, 0
      %s883 = sadd.s32 %s882, 1
      %s884 = scalar_select %p881, %s882, %s883
      %p887 = pneg %p881
      %p888 = scmp.eq.s32.totalorder %s85, 2
      %p889 = por %p887, %p888
      %p890 = scmp.ne.s32.totalorder %s882, %s885
      %p891 = scmp.eq.s32.totalorder %s85, 0
      %p892 = por %p890, %p891
      %p893 = scmp.ne.s32.totalorder %s882, %s885
      %p894 = scmp.eq.s32.totalorder %s90, 2
      %p895 = por %p893, %p894
      %p896 = scmp.ne.s32.totalorder %s885, %s886
      %p897 = scmp.eq.s32.totalorder %s90, 0
      %p898 = por %p896, %p897
      %p899 = scmp.ne.s32.totalorder %s885, %s886
      %p900 = scmp.eq.s32.totalorder %s91, 2
      %p901 = por %p899, %p900
      %p903 = scmp.ne.s32.totalorder %s886, %s902
      %p904 = scmp.eq.s32.totalorder %s91, 0
      %p905 = por %p903, %p904
      %p906 = scmp.le.s32.totalorder 1, %s85
      %p907 = scmp.lt.s32.totalorder %s85, 4
      %p908 = pnand %p906, %p907
      %p909 = pneg %p908
      // Predicated region
      $region9: #{_lambda_.1} parent=5 // pred_check
        _
      $region10: #{_lambda_.1} parent=5 // pred_check_branch
        %911 = sbr.rel (%p908) target = $region12
      $region11: #{_lambda_.1} parent=5 // pred_region
        %s912 = ssub.s32 %s85, 1
        // Predicated region
        $region13: #{_lambda_.1} parent=11 // pred_check
          %p913 = pneg %p132
        $region14: #{_lambda_.1} parent=11 // pred_check_branch
          %915 = sbr.rel (%p913) target = $region16
        $region15: #{_lambda_.1} parent=11 // pred_region
          _
        $region16: #{_lambda_.1} parent=11 // pred_fallthru
          _
        // Predicated region
        $region17: #{_lambda_.1} parent=11 // pred_check
          %p916 = pneg %p153
        $region18: #{_lambda_.1} parent=11 // pred_check_branch
          %918 = sbr.rel (%p916) target = $region20
        $region19: #{_lambda_.1} parent=11 // pred_region
          _
        $region20: #{_lambda_.1} parent=11 // pred_fallthru
          _
        // Predicated region
        $region21: #{_lambda_.1} parent=11 // pred_check
          %p919 = pneg %p174
        $region22: #{_lambda_.1} parent=11 // pred_check_branch
          %921 = sbr.rel (%p919) target = $region24
        $region23: #{_lambda_.1} parent=11 // pred_region
          _
        $region24: #{_lambda_.1} parent=11 // pred_fallthru
          _
        // Predicated region
        $region25: #{_lambda_.1} parent=11 // pred_check
          %p922 = pneg %p195
        $region26: #{_lambda_.1} parent=11 // pred_check_branch
          %924 = sbr.rel (%p922) target = $region28
        $region27: #{_lambda_.1} parent=11 // pred_region
          _
        $region28: #{_lambda_.1} parent=11 // pred_fallthru
          _
        // Predicated region
        $region29: #{_lambda_.1} parent=11 // pred_check
          %p925 = pneg %p216
        $region30: #{_lambda_.1} parent=11 // pred_check_branch
          %927 = sbr.rel (%p925) target = $region32
        $region31: #{_lambda_.1} parent=11 // pred_region
          _
        $region32: #{_lambda_.1} parent=11 // pred_fallthru
          _
        // Predicated region
        $region33: #{_lambda_.1} parent=11 // pred_check
          %p928 = pneg %p237
        $region34: #{_lambda_.1} parent=11 // pred_check_branch
          %930 = sbr.rel (%p928) target = $region36
        $region35: #{_lambda_.1} parent=11 // pred_region
          _
        $region36: #{_lambda_.1} parent=11 // pred_fallthru
          _
        // Predicated region
        $region37: #{_lambda_.1} parent=11 // pred_check
          %p931 = pneg %p258
        $region38: #{_lambda_.1} parent=11 // pred_check_branch
          %933 = sbr.rel (%p931) target = $region40
        $region39: #{_lambda_.1} parent=11 // pred_region
          _
        $region40: #{_lambda_.1} parent=11 // pred_fallthru
          _
        // Predicated region
        $region41: #{_lambda_.1} parent=11 // pred_check
          %p934 = pneg %p279
        $region42: #{_lambda_.1} parent=11 // pred_check_branch
          %936 = sbr.rel (%p934) target = $region44
        $region43: #{_lambda_.1} parent=11 // pred_region
          _
        $region44: #{_lambda_.1} parent=11 // pred_fallthru
          _
        // Predicated region
        $region45: #{_lambda_.1} parent=11 // pred_check
          %p937 = pneg %p300
        $region46: #{_lambda_.1} parent=11 // pred_check_branch
          %939 = sbr.rel (%p937) target = $region48
        $region47: #{_lambda_.1} parent=11 // pred_region
          _
        $region48: #{_lambda_.1} parent=11 // pred_fallthru
          _
        // Predicated region
        $region49: #{_lambda_.1} parent=11 // pred_check
          %p940 = pneg %p321
        $region50: #{_lambda_.1} parent=11 // pred_check_branch
          %942 = sbr.rel (%p940) target = $region52
        $region51: #{_lambda_.1} parent=11 // pred_region
          _
        $region52: #{_lambda_.1} parent=11 // pred_fallthru
          _
        // Predicated region
        $region53: #{_lambda_.1} parent=11 // pred_check
          %p943 = pneg %p342
        $region54: #{_lambda_.1} parent=11 // pred_check_branch
          %945 = sbr.rel (%p943) target = $region56
        $region55: #{_lambda_.1} parent=11 // pred_region
          _
        $region56: #{_lambda_.1} parent=11 // pred_fallthru
          _
        // Predicated region
        $region57: #{_lambda_.1} parent=11 // pred_check
          %p946 = pneg %p363
        $region58: #{_lambda_.1} parent=11 // pred_check_branch
          %948 = sbr.rel (%p946) target = $region60
        $region59: #{_lambda_.1} parent=11 // pred_region
          _
        $region60: #{_lambda_.1} parent=11 // pred_fallthru
          _
        // Predicated region
        $region61: #{_lambda_.1} parent=11 // pred_check
          %p949 = pneg %p384
        $region62: #{_lambda_.1} parent=11 // pred_check_branch
          %951 = sbr.rel (%p949) target = $region64
        $region63: #{_lambda_.1} parent=11 // pred_region
          _
        $region64: #{_lambda_.1} parent=11 // pred_fallthru
          _
        // Predicated region
        $region65: #{_lambda_.1} parent=11 // pred_check
          %p952 = pneg %p405
        $region66: #{_lambda_.1} parent=11 // pred_check_branch
          %954 = sbr.rel (%p952) target = $region68
        $region67: #{_lambda_.1} parent=11 // pred_region
          _
        $region68: #{_lambda_.1} parent=11 // pred_fallthru
          _
        // Predicated region
        $region69: #{_lambda_.1} parent=11 // pred_check
          %p955 = pneg %p426
        $region70: #{_lambda_.1} parent=11 // pred_check_branch
          %957 = sbr.rel (%p955) target = $region72
        $region71: #{_lambda_.1} parent=11 // pred_region
          _
        $region72: #{_lambda_.1} parent=11 // pred_fallthru
          _
        // Predicated region
        $region73: #{_lambda_.1} parent=11 // pred_check
          %p958 = pneg %p447
        $region74: #{_lambda_.1} parent=11 // pred_check_branch
          %960 = sbr.rel (%p958) target = $region76
        $region75: #{_lambda_.1} parent=11 // pred_region
          _
        $region76: #{_lambda_.1} parent=11 // pred_fallthru
          _
        // Predicated region
        $region77: #{_lambda_.1} parent=11 // pred_check
          %p961 = pneg %p468
        $region78: #{_lambda_.1} parent=11 // pred_check_branch
          %963 = sbr.rel (%p961) target = $region80
        $region79: #{_lambda_.1} parent=11 // pred_region
          _
        $region80: #{_lambda_.1} parent=11 // pred_fallthru
          _
        // Predicated region
        $region81: #{_lambda_.1} parent=11 // pred_check
          %p964 = pneg %p489
        $region82: #{_lambda_.1} parent=11 // pred_check_branch
          %966 = sbr.rel (%p964) target = $region84
        $region83: #{_lambda_.1} parent=11 // pred_region
          _
        $region84: #{_lambda_.1} parent=11 // pred_fallthru
          _
        // Predicated region
        $region85: #{_lambda_.1} parent=11 // pred_check
          %p967 = pneg %p510
        $region86: #{_lambda_.1} parent=11 // pred_check_branch
          %969 = sbr.rel (%p967) target = $region88
        $region87: #{_lambda_.1} parent=11 // pred_region
          _
        $region88: #{_lambda_.1} parent=11 // pred_fallthru
          _
        // Predicated region
        $region89: #{_lambda_.1} parent=11 // pred_check
          %p970 = pneg %p531
        $region90: #{_lambda_.1} parent=11 // pred_check_branch
          %972 = sbr.rel (%p970) target = $region92
        $region91: #{_lambda_.1} parent=11 // pred_region
          _
        $region92: #{_lambda_.1} parent=11 // pred_fallthru
          _
        // Predicated region
        $region93: #{_lambda_.1} parent=11 // pred_check
          %p973 = pneg %p552
        $region94: #{_lambda_.1} parent=11 // pred_check_branch
          %975 = sbr.rel (%p973) target = $region96
        $region95: #{_lambda_.1} parent=11 // pred_region
          _
        $region96: #{_lambda_.1} parent=11 // pred_fallthru
          _
        // Predicated region
        $region97: #{_lambda_.1} parent=11 // pred_check
          %p976 = pneg %p573
        $region98: #{_lambda_.1} parent=11 // pred_check_branch
          %978 = sbr.rel (%p976) target = $region100
        $region99: #{_lambda_.1} parent=11 // pred_region
          _
        $region100: #{_lambda_.1} parent=11 // pred_fallthru
          _
        // Predicated region
        $region101: #{_lambda_.1} parent=11 // pred_check
          %p979 = pneg %p594
        $region102: #{_lambda_.1} parent=11 // pred_check_branch
          %981 = sbr.rel (%p979) target = $region104
        $region103: #{_lambda_.1} parent=11 // pred_region
          _
        $region104: #{_lambda_.1} parent=11 // pred_fallthru
          _
        // Predicated region
        $region105: #{_lambda_.1} parent=11 // pred_check
          %p982 = pneg %p615
        $region106: #{_lambda_.1} parent=11 // pred_check_branch
          %984 = sbr.rel (%p982) target = $region108
        $region107: #{_lambda_.1} parent=11 // pred_region
          _
        $region108: #{_lambda_.1} parent=11 // pred_fallthru
          _
        // Predicated region
        $region109: #{_lambda_.1} parent=11 // pred_check
          %p985 = pneg %p636
        $region110: #{_lambda_.1} parent=11 // pred_check_branch
          %987 = sbr.rel (%p985) target = $region112
        $region111: #{_lambda_.1} parent=11 // pred_region
          _
        $region112: #{_lambda_.1} parent=11 // pred_fallthru
          _
        // Predicated region
        $region113: #{_lambda_.1} parent=11 // pred_check
          %p988 = pneg %p657
        $region114: #{_lambda_.1} parent=11 // pred_check_branch
          %990 = sbr.rel (%p988) target = $region116
        $region115: #{_lambda_.1} parent=11 // pred_region
          _
        $region116: #{_lambda_.1} parent=11 // pred_fallthru
          _
        // Predicated region
        $region117: #{_lambda_.1} parent=11 // pred_check
          %p991 = pneg %p678
        $region118: #{_lambda_.1} parent=11 // pred_check_branch
          %993 = sbr.rel (%p991) target = $region120
        $region119: #{_lambda_.1} parent=11 // pred_region
          _
        $region120: #{_lambda_.1} parent=11 // pred_fallthru
          _
        // Predicated region
        $region121: #{_lambda_.1} parent=11 // pred_check
          %p994 = pneg %p699
        $region122: #{_lambda_.1} parent=11 // pred_check_branch
          %996 = sbr.rel (%p994) target = $region124
        $region123: #{_lambda_.1} parent=11 // pred_region
          _
        $region124: #{_lambda_.1} parent=11 // pred_fallthru
          _
        // Predicated region
        $region125: #{_lambda_.1} parent=11 // pred_check
          %p997 = pneg %p720
        $region126: #{_lambda_.1} parent=11 // pred_check_branch
          %999 = sbr.rel (%p997) target = $region128
        $region127: #{_lambda_.1} parent=11 // pred_region
          _
        $region128: #{_lambda_.1} parent=11 // pred_fallthru
          _
        // Predicated region
        $region129: #{_lambda_.1} parent=11 // pred_check
          %p1000 = pneg %p741
        $region130: #{_lambda_.1} parent=11 // pred_check_branch
          %1002 = sbr.rel (%p1000) target = $region132
        $region131: #{_lambda_.1} parent=11 // pred_region
          _
        $region132: #{_lambda_.1} parent=11 // pred_fallthru
          _
        // Predicated region
        $region133: #{_lambda_.1} parent=11 // pred_check
          %p1003 = pneg %p762
        $region134: #{_lambda_.1} parent=11 // pred_check_branch
          %1005 = sbr.rel (%p1003) target = $region136
        $region135: #{_lambda_.1} parent=11 // pred_region
          _
        $region136: #{_lambda_.1} parent=11 // pred_fallthru
          _
        // Predicated region
        $region137: #{_lambda_.1} parent=11 // pred_check
          %p1006 = pneg %p783
        $region138: #{_lambda_.1} parent=11 // pred_check_branch
          %1008 = sbr.rel (%p1006) target = $region140
        $region139: #{_lambda_.1} parent=11 // pred_region
          _
        $region140: #{_lambda_.1} parent=11 // pred_fallthru
          _
        // Predicated region
        $region141: #{_lambda_.1} parent=11 // pred_check
          %p1009 = pneg %p804
        $region142: #{_lambda_.1} parent=11 // pred_check_branch
          %1011 = sbr.rel (%p1009) target = $region144
        $region143: #{_lambda_.1} parent=11 // pred_region
          _
        $region144: #{_lambda_.1} parent=11 // pred_fallthru
          _
        // Predicated region
        $region145: #{_lambda_.1} parent=11 // pred_check
          %p1012 = pneg %p825
        $region146: #{_lambda_.1} parent=11 // pred_check_branch
          %1014 = sbr.rel (%p1012) target = $region148
        $region147: #{_lambda_.1} parent=11 // pred_region
          _
        $region148: #{_lambda_.1} parent=11 // pred_fallthru
          _
        // Predicated region
        $region149: #{_lambda_.1} parent=11 // pred_check
          %p1015 = pneg %p846
        $region150: #{_lambda_.1} parent=11 // pred_check_branch
          %1017 = sbr.rel (%p1015) target = $region152
        $region151: #{_lambda_.1} parent=11 // pred_region
          _
        $region152: #{_lambda_.1} parent=11 // pred_fallthru
          _
      $region12: #{_lambda_.1} parent=5 // pred_fallthru
        _
      %p1018 = scmp.lt.s32.totalorder %s85, 3
      // Predicated region
      $region153: #{_lambda_.1} parent=5 // pred_check
        %p1019 = pneg %p1018
      $region154: #{_lambda_.1} parent=5 // pred_check_branch
        %1021 = sbr.rel (%p1019) target = $region156
      $region155: #{_lambda_.1} parent=5 // pred_region
        // Predicated region
        $region157: #{_lambda_.1} parent=155 // pred_check
          %p1022 = pneg %p105
        $region158: #{_lambda_.1} parent=155 // pred_check_branch
          %1024 = sbr.rel (%p1022) target = $region160
        $region159: #{_lambda_.1} parent=155 // pred_region
          %p1025 = scmp.lt.s32.totalorder %s85, 2
          %s1026 = scalar_select %p1025, %s85, 2
          %s1027 = smul.addr %s1026, 2
          %s1028 = smul.addr %s1027, 8
          %s1029 = scalar_lea.vmem %s1, %s1028
        $region160: #{_lambda_.1} parent=155 // pred_fallthru
          _
      $region156: #{_lambda_.1} parent=5 // pred_fallthru
        _
      %p1030 = scmp.le.s32.totalorder 1, %s85
      %p1031 = scmp.lt.s32.totalorder %s85, 4
      %p1032 = pnand %p1030, %p1031
      %p1033 = pneg %p1032
      // Predicated region
      $region161: #{_lambda_.1} parent=5 // pred_check
        _
      $region162: #{_lambda_.1} parent=5 // pred_check_branch
        %1035 = sbr.rel (%p1032) target = $region164
      $region163: #{_lambda_.1} parent=5 // pred_region
        %s1036 = ssub.s32 %s85, 1
        %p1037 = scmp.lt.s32.totalorder %s90, 2
        %s1038 = scalar_select %p1037, %s90, 2
        %s1039 = smul.addr %s1038, 2
        %s1040 = smul.addr %s1039, 8
        %s1041 = scalar_lea.vmem %s1, %s1040
        %p1042 = pneg %p111
        %p1043 = pneg %p108
        %p1044 = pneg %p132
        %p1045 = pneg %p129
        %p1046 = pneg %p153
        %p1047 = pneg %p150
        %p1048 = pneg %p174
        %p1049 = pneg %p171
        %p1050 = pneg %p195
        %p1051 = pneg %p192
        %p1052 = pneg %p216
        %p1053 = pneg %p213
        %p1054 = pneg %p237
        %p1055 = pneg %p234
        %p1056 = pneg %p258
        %p1057 = pneg %p255
        %p1058 = pneg %p279
        %p1059 = pneg %p276
        %p1060 = pneg %p300
        %p1061 = pneg %p297
        %p1062 = pneg %p321
        %p1063 = pneg %p318
        %p1064 = pneg %p342
        %p1065 = pneg %p339
        %p1066 = pneg %p363
        %p1067 = pneg %p360
        %p1068 = pneg %p384
        %p1069 = pneg %p381
        %p1070 = pneg %p405
        %p1071 = pneg %p402
        %p1072 = pneg %p426
        %p1073 = pneg %p423
        %p1074 = pneg %p447
        %p1075 = pneg %p444
        %p1076 = pneg %p468
        %p1077 = pneg %p465
        %p1078 = pneg %p489
        %p1079 = pneg %p486
        %p1080 = pneg %p510
        %p1081 = pneg %p507
        %p1082 = pneg %p531
        %p1083 = pneg %p528
        %p1084 = pneg %p552
        %p1085 = pneg %p549
        %p1086 = pneg %p573
        %p1087 = pneg %p570
        %p1088 = pneg %p594
        %p1089 = pneg %p591
        %p1090 = pneg %p615
        %p1091 = pneg %p612
        %p1092 = pneg %p636
        %p1093 = pneg %p633
        %p1094 = pneg %p657
        %p1095 = pneg %p654
        %p1096 = pneg %p678
        %p1097 = pneg %p675
        %p1098 = pneg %p699
        %p1099 = pneg %p696
        %p1100 = pneg %p720
        %p1101 = pneg %p717
        %p1102 = pneg %p741
        %p1103 = pneg %p738
        %p1104 = pneg %p762
        %p1105 = pneg %p759
        %p1106 = pneg %p783
        %p1107 = pneg %p780
        %p1108 = pneg %p804
        %p1109 = pneg %p801
        %p1110 = pneg %p825
        %p1111 = pneg %p822
        %p1112 = pneg %p846
        %p1113 = pneg %p843
        %p1114 = pneg %p872
        %p1115 = pneg %p869
        %p1116 = scmp.lt.s32.totalorder %s90, 2
        %s1117 = scalar_select %p1116, %s90, 2
        %s1118 = scalar_lea.vmem %s73, %s1117
        %p1119 = pneg %p898
        %p1120 = pneg %p895
        %s1121 = sand.u32 %s885, 1
        %s1122 = scalar_lea.sflag [#allocation3], %s1121
        %s1123 = sand.u32 %s885, 1
        %s1124 = smul.addr %s1123, 16
        %s1125 = scalar_lea.vmem [#allocation2], %s1124
        %p1126 = scmp.lt.s32.totalorder %s90, 2
        %s1127 = scalar_select %p1126, %s90, 2
        %s1128 = smul.addr %s1127, 2
        %s1129 = smul.addr %s1128, 8
        %s1130 = scalar_lea.vmem %s1, %s1129
        %p1131 = scmp.lt.s32.totalorder %s90, 2
        %s1132 = scalar_select %p1131, %s90, 2
        %s1133 = scalar_lea.vmem %s73, %s1132
        %v1137 = vlaneseq
        %v1138 = vshrl.u32 %v1137, 7
        %v1139 = vadd.s32 %v1138, 8
        %vm1140 = vcmp.lt.s32.totalorder %v1138, 0
        %v1141 = vsub.s32 0, %v1138
        %v1142 = vsel %vm1140, %v1141, %v1138
        %v1143 = vshrl.u32 %v1142, 3
        %v1144 = vand.u32 %v1142, 7
        %v1145 = vsub.s32 0, %v1144
        %v1146 = vsel %vm1140, %v1145, %v1144
        %vm1147 = vcmp.lt.s32.totalorder %v1139, 0
        %v1148 = vsub.s32 0, %v1139
        %v1149 = vsel %vm1147, %v1148, %v1139
        %v1150 = vshrl.u32 %v1149, 3
        %v1151 = vand.u32 %v1149, 7
        %v1152 = vsub.s32 0, %v1151
        %v1153 = vsel %vm1147, %v1152, %v1151
        %vm1154 = vcmp.ne.s32.totalorder %v1146, 0
        %vm1155 = vcmp.ne.s32.totalorder %v1153, 0
        %vm1156 = vcmp.lt.s32.totalorder %v1146, 0
        %vm1157 = vcmp.lt.s32.totalorder %v1153, 0
        %vm1158 = vmand %vm1156, %vm1154
        %vm1159 = vmand %vm1157, %vm1155
        %v1160 = vadd.s32 %v1146, 8
        %v1161 = vadd.s32 %v1153, 8
        %v1162 = vsel %vm1158, %v1160, %v1146
        %v1163 = vsel %vm1159, %v1161, %v1153
        %v1164 = vld [vmem:[%s1130] sm:$0xff]
        %v1165 = vld [vmem:[%s1130 + $0x8] sm:$0xff]
        %v1166 = vpack.c.bf16 %v1165, %v1164
        %v1168 = vshrl.u32 %v1166, 16
        %v1170 = vrot.slane %v1168, 7
        %v1171 = vshll.u32 %v1166, 16
        %v1173 = vor.u32 %v1170, %v1171
        %vm1175 = vcmask 1040384
        %vm1176 = vsmask.f32 256
        %vm1177 = vmand %vm1175, %vm1176
        %v1178 = vsel %vm1177, 0, %v1173
        %v1179 = vrot.slane %v1171, 1
        %v1180 = vor.u32 %v1168, %v1179
        %vm1182 = vcmask 1047552
        %vm1183 = vsmask.f32 7424
        %vm1184 = vmand %vm1182, %vm1183
        %v1185 = vsel %vm1184, %v1180, 0
        %vm1186 = vcmp.ge.s32.totalorder %v1162, 1
        %vm1187 = vcmp.ge.s32.totalorder %v1163, 1
        %v1188 = vsel %vm1186, 1, 0
        %v1189 = vsel %vm1187, 1, 0
        %vm1190 = vcmp.eq.s32.totalorder %v1188, 1
        %vm1191 = vcmp.eq.s32.totalorder %v1189, 1
        %vm1192 = vmpackc.low %vm1190, %vm1190
        %vm1193 = vmpackc.low %vm1191, %vm1191
        %v1194 = vsel %vm1192, 65537, 0
        %v1195 = vsel %vm1193, 65537, 0
        %v1196 = vunpack.c.l.b16 %v1194
        %v1197 = vunpack.c.l.b16 %v1195
        %v1198 = vpack.c.b16 %v1197, %v1196
        %vm1199 = vcmp.ne.s16.totalorder %v1198, 0
        %v1200 = vsel %vm1199, %v1178, 0
        %vm1201 = vcmp.lt.s32.totalorder %v1162, 7
        %vm1202 = vcmp.lt.s32.totalorder %v1163, 7
        %v1203 = vsel %vm1201, 1, 0
        %v1204 = vsel %vm1202, 1, 0
        %vm1205 = vcmp.eq.s32.totalorder %v1203, 1
        %vm1206 = vcmp.eq.s32.totalorder %v1204, 1
        %vm1207 = vmpackc.low %vm1205, %vm1205
        %vm1208 = vmpackc.low %vm1206, %vm1206
        %v1209 = vsel %vm1207, 65537, 0
        %v1210 = vsel %vm1208, 65537, 0
        %v1211 = vunpack.c.l.b16 %v1209
        %v1212 = vunpack.c.l.b16 %v1210
        %v1213 = vpack.c.b16 %v1212, %v1211
        %vm1214 = vcmp.ne.s16.totalorder %v1213, 0
        %v1215 = vsel %vm1214, %v1185, 0
        %1217 = vrot.lane.b32.xlu0 %v1166, 16
        %v1218 = vpop.permute.xlu0 %1217
        %1220 = vrot.lane.b32.xlu0 %v1215, 32
        %v1221 = vpop.permute.xlu0 %1220
        %vm1222 = vcmask 130048
        %v1225 = vsel %vm1222, %v1200, %v1218
        %vm1226 = vcmask 261120
        %v1228 = vsel %vm1226, %v1225, %v1221
        %s1229 = smul.u32 %s90, 6
        %s1230 = smul.addr %s1229, 4
        %s1231 = scalar_lea.vmem %s3, %s1230
        %v1232 = vld [vmem:[%s1231] sm:$0xf]
        %v1233 = vld [vmem:[%s1231 + $0x4] sm:$0xf]
        %v1234 = vld [vmem:[%s1231 + $0x8] sm:$0xf]
        %v1235 = vld [vmem:[%s1231 + $0xc] sm:$0xf]
        %v1236 = vld [vmem:[%s1231 + $0x10] sm:$0xf]
        %v1237 = vld [vmem:[%s1231 + $0x14] sm:$0xf]
        %s1238 = scalar_lea.vmem %s5, %s90
        %v1239 = vld [vmem:[%s1238] sm:$0x1]
        %v1241 = vlaneseq
        %v1242 = vshrl.u32 %v1241, 7
        %v1243 = vsub.s32 0, %v1242
        %v1244 = vrot.slane %v1239, %v1243
        %v1252 = vunpack.c.l.b16 %v1232
        %v1253 = vunpack.c.l.b16 %v1233
        %v1254 = vunpack.c.l.b16 %v1234
        %v1255 = vunpack.c.l.b16 %v1235
        %v1256 = vunpack.c.l.b16 %v1236
        %v1257 = vunpack.c.l.b16 %v1237
        %v1258 = vpack.c.b16 %v1253, %v1252
        %v1259 = vpack.c.b16 %v1255, %v1254
        %v1260 = vpack.c.b16 %v1257, %v1256
        %vm1264 = vcmask 392192
        %v1265 = vsel %vm1264, %v1228, 0
        %1267 = vmatprep.subr.bf16.mxu0 0
        %1268 = vmatpush1.bf16.msra.mxu0 0
        %1269 = vmatprep.subr.bf16.mxu0 0
        %1270 = vmatpush1.bf16.msra.mxu0 0
        %1271 = vmatprep.subr.bf16.mxu0 0
        %1272 = vmatpush1.bf16.msra.mxu0 0
        %1273 = vmatprep.subr.bf16.mxu0 0
        %1274 = vmatpush1.bf16.msra.mxu0 0
        %1275 = vmatprep.subr.bf16.mxu0 0
        %1276 = vmatpush1.bf16.msra.mxu0 0
        %1277 = vmatprep.subr.bf16.mxu0 0
        %1278 = vmatpush1.bf16.msra.mxu0 %v1260
        %1279 = vmatprep.subr.bf16.mxu0 0
        %1280 = vmatpush1.bf16.msra.mxu0 %v1259
        %1281 = vmatprep.subr.bf16.mxu0 0
        %1282 = vmatpush1.bf16.msra.mxu0 %v1258
        %1283 = vmatprep.subr.bf16.mxu0 0
        %1284 = vmatpush2.bf16.msra.mxu0 0
        %1285 = vmatprep.subr.bf16.mxu0 0
        %1286 = vmatpush2.bf16.msra.mxu0 0
        %1287 = vmatprep.subr.bf16.mxu0 0
        %1288 = vmatpush2.bf16.msra.mxu0 0
        %1289 = vmatprep.subr.bf16.mxu0 0
        %1290 = vmatpush2.bf16.msra.mxu0 0
        %1291 = vmatprep.subr.bf16.mxu0 0
        %1292 = vmatpush2.bf16.msra.mxu0 0
        %1293 = vmatprep.subr.bf16.mxu0 0
        %1294 = vmatpush2.bf16.msra.mxu0 0
        %1295 = vmatprep.subr.bf16.mxu0 0
        %1296 = vmatpush2.bf16.msra.mxu0 0
        %1297 = vmatprep.subr.bf16.mxu0 0
        %1298 = vmatpush2.bf16.msra.mxu0 0
        %1299 = vmatprep.mubr.bf16.mxu0 0
        %1300 = vmatmul.mubr.bf16.gmra.mxu0 %v1265
        %v1301 = vpop.f32.mrf.mxu0
        %v1302 = vadd.f32 %v1244, %v1301
        %v1303 = vpop.f32.mrf.mxu0
        %v1304 = vpop.f32.mrf.mxu0
        %v1305 = vadd.f32 %v1244, %v1304
        %v1306 = vpop.f32.mrf.mxu0
        %1307 = vdwg.mxu0
        %v1308 = vmax.f32 %v1302, 0.0
        %v1309 = vmax.f32 %v1305, 0.0
        %v1310 = vpack.c.bf16 %v1309, %v1308
        %v1312 = vshrl.u32 %v1310, 16
        %v1314 = vrot.slane %v1312, 7
        %v1315 = vshll.u32 %v1310, 16
        %v1317 = vor.u32 %v1314, %v1315
        %v1319 = vsel %vm1177, 0, %v1317
        %v1320 = vrot.slane %v1315, 1
        %v1321 = vor.u32 %v1312, %v1320
        %v1323 = vsel %vm1184, %v1321, 0
        %v1324 = vsel %vm1199, %v1319, 0
        %v1325 = vsel %vm1214, %v1323, 0
        %1327 = vrot.lane.b32.xlu0 %v1310, 32
        %v1328 = vpop.permute.xlu0 %1327
        %1330 = vrot.lane.b32.xlu0 %v1325, 64
        %v1331 = vpop.permute.xlu0 %1330
        %v1334 = vsel %vm1226, %v1324, %v1328
        %vm1335 = vcmask 523264
        %v1337 = vsel %vm1335, %v1334, %v1331
        %s1338 = smul.u32 %s90, 12
        %s1339 = smul.addr %s1338, 4
        %s1340 = scalar_lea.vmem %s7, %s1339
        %v1341 = vld [vmem:[%s1340] sm:$0xf]
        %v1342 = vld [vmem:[%s1340 + $0x4] sm:$0xf]
        %v1343 = vld [vmem:[%s1340 + $0x8] sm:$0xf]
        %v1344 = vld [vmem:[%s1340 + $0xc] sm:$0xf]
        %v1345 = vld [vmem:[%s1340 + $0x10] sm:$0xf]
        %v1346 = vld [vmem:[%s1340 + $0x14] sm:$0xf]
        %v1347 = vld [vmem:[%s1340 + $0x18] sm:$0xf]
        %v1348 = vld [vmem:[%s1340 + $0x1c] sm:$0xf]
        %v1349 = vld [vmem:[%s1340 + $0x20] sm:$0xf]
        %v1350 = vld [vmem:[%s1340 + $0x24] sm:$0xf]
        %v1351 = vld [vmem:[%s1340 + $0x28] sm:$0xf]
        %v1352 = vld [vmem:[%s1340 + $0x2c] sm:$0xf]
        %s1353 = scalar_lea.vmem %s9, %s90
        %v1354 = vld [vmem:[%s1353] sm:$0x1]
        %v1356 = vlaneseq
        %v1357 = vshrl.u32 %v1356, 7
        %v1358 = vsub.s32 0, %v1357
        %v1359 = vrot.slane %v1354, %v1358
        %v1373 = vunpack.c.l.b16 %v1341
        %v1374 = vunpack.c.l.b16 %v1342
        %v1375 = vunpack.c.l.b16 %v1343
        %v1376 = vunpack.c.l.b16 %v1344
        %v1377 = vunpack.c.l.b16 %v1345
        %v1378 = vunpack.c.l.b16 %v1346
        %v1379 = vunpack.c.l.b16 %v1347
        %v1380 = vunpack.c.l.b16 %v1348
        %v1381 = vunpack.c.l.b16 %v1349
        %v1382 = vunpack.c.l.b16 %v1350
        %v1383 = vunpack.c.l.b16 %v1351
        %v1384 = vunpack.c.l.b16 %v1352
        %v1385 = vpack.c.b16 %v1374, %v1373
        %v1386 = vpack.c.b16 %v1376, %v1375
        %v1387 = vpack.c.b16 %v1378, %v1377
        %v1388 = vpack.c.b16 %v1380, %v1379
        %v1389 = vpack.c.b16 %v1382, %v1381
        %v1390 = vpack.c.b16 %v1384, %v1383
        %vm1397 = vcmask 785408
        %v1398 = vsel %vm1397, %v1337, 0
        %1400 = vmatprep.subr.bf16.mxu0 0
        %1401 = vmatpush1.bf16.msra.mxu0 0
        %1402 = vmatprep.subr.bf16.mxu0 0
        %1403 = vmatpush1.bf16.msra.mxu0 0
        %1404 = vmatprep.subr.bf16.mxu0 0
        %1405 = vmatpush1.bf16.msra.mxu0 %v1390
        %1406 = vmatprep.subr.bf16.mxu0 0
        %1407 = vmatpush1.bf16.msra.mxu0 %v1389
        %1408 = vmatprep.subr.bf16.mxu0 0
        %1409 = vmatpush1.bf16.msra.mxu0 %v1388
        %1410 = vmatprep.subr.bf16.mxu0 0
        %1411 = vmatpush1.bf16.msra.mxu0 %v1387
        %1412 = vmatprep.subr.bf16.mxu0 0
        %1413 = vmatpush1.bf16.msra.mxu0 %v1386
        %1414 = vmatprep.subr.bf16.mxu0 0
        %1415 = vmatpush1.bf16.msra.mxu0 %v1385
        %1416 = vmatprep.subr.bf16.mxu0 0
        %1417 = vmatpush2.bf16.msra.mxu0 0
        %1418 = vmatprep.subr.bf16.mxu0 0
        %1419 = vmatpush2.bf16.msra.mxu0 0
        %1420 = vmatprep.subr.bf16.mxu0 0
        %1421 = vmatpush2.bf16.msra.mxu0 0
        %1422 = vmatprep.subr.bf16.mxu0 0
        %1423 = vmatpush2.bf16.msra.mxu0 0
        %1424 = vmatprep.subr.bf16.mxu0 0
        %1425 = vmatpush2.bf16.msra.mxu0 0
        %1426 = vmatprep.subr.bf16.mxu0 0
        %1427 = vmatpush2.bf16.msra.mxu0 0
        %1428 = vmatprep.subr.bf16.mxu0 0
        %1429 = vmatpush2.bf16.msra.mxu0 0
        %1430 = vmatprep.subr.bf16.mxu0 0
        %1431 = vmatpush2.bf16.msra.mxu0 0
        %1432 = vmatprep.mubr.bf16.mxu0 0
        %1433 = vmatmul.mubr.bf16.gmra.mxu0 %v1398
        %v1434 = vpop.f32.mrf.mxu0
        %v1435 = vadd.f32 %v1359, %v1434
        %v1436 = vpop.f32.mrf.mxu0
        %v1437 = vpop.f32.mrf.mxu0
        %v1438 = vadd.f32 %v1359, %v1437
        %v1439 = vpop.f32.mrf.mxu0
        %1440 = vdwg.mxu0
        %v1441 = vmax.f32 %v1435, 0.0
        %v1442 = vmax.f32 %v1438, 0.0
        %s1443 = smul.u32 %s90, 2
        %s1444 = smul.addr %s1443, 4
        %s1445 = scalar_lea.vmem %s27, %s1444
        %v1446 = vld [vmem:[%s1445] sm:$0xf]
        %v1447 = vld [vmem:[%s1445 + $0x4] sm:$0xf]
        %s1448 = scalar_lea.vmem %s29, %s90
        %v1449 = vld [vmem:[%s1448] sm:$0x1]
        %v1451 = vlaneseq
        %v1452 = vshrl.u32 %v1451, 7
        %v1453 = vsub.s32 0, %v1452
        %v1454 = vrot.slane %v1449, %v1453
        %v1458 = vunpack.c.l.b16 %v1446
        %v1459 = vunpack.c.l.b16 %v1447
        %v1460 = vpack.c.b16 %v1459, %v1458
        %v1462 = vsel %vm1222, %v1166, 0
        %1464 = vmatprep.subr.bf16.mxu0 0
        %1465 = vmatpush1.bf16.msra.mxu0 0
        %1466 = vmatprep.subr.bf16.mxu0 0
        %1467 = vmatpush1.bf16.msra.mxu0 0
        %1468 = vmatprep.subr.bf16.mxu0 0
        %1469 = vmatpush1.bf16.msra.mxu0 0
        %1470 = vmatprep.subr.bf16.mxu0 0
        %1471 = vmatpush1.bf16.msra.mxu0 0
        %1472 = vmatprep.subr.bf16.mxu0 0
        %1473 = vmatpush1.bf16.msra.mxu0 0
        %1474 = vmatprep.subr.bf16.mxu0 0
        %1475 = vmatpush1.bf16.msra.mxu0 0
        %1476 = vmatprep.subr.bf16.mxu0 0
        %1477 = vmatpush1.bf16.msra.mxu0 0
        %1478 = vmatprep.subr.bf16.mxu0 0
        %1479 = vmatpush1.bf16.msra.mxu0 %v1460
        %1480 = vmatprep.subr.bf16.mxu0 0
        %1481 = vmatpush2.bf16.msra.mxu0 0
        %1482 = vmatprep.subr.bf16.mxu0 0
        %1483 = vmatpush2.bf16.msra.mxu0 0
        %1484 = vmatprep.subr.bf16.mxu0 0
        %1485 = vmatpush2.bf16.msra.mxu0 0
        %1486 = vmatprep.subr.bf16.mxu0 0
        %1487 = vmatpush2.bf16.msra.mxu0 0
        %1488 = vmatprep.subr.bf16.mxu0 0
        %1489 = vmatpush2.bf16.msra.mxu0 0
        %1490 = vmatprep.subr.bf16.mxu0 0
        %1491 = vmatpush2.bf16.msra.mxu0 0
        %1492 = vmatprep.subr.bf16.mxu0 0
        %1493 = vmatpush2.bf16.msra.mxu0 0
        %1494 = vmatprep.subr.bf16.mxu0 0
        %1495 = vmatpush2.bf16.msra.mxu0 0
        %1496 = vmatprep.mubr.bf16.mxu0 0
        %1497 = vmatmul.mubr.bf16.gmra.mxu0 %v1462
        %v1498 = vpop.f32.mrf.mxu0
        %v1499 = vadd.f32 %v1454, %v1498
        %v1500 = vpop.f32.mrf.mxu0
        %v1501 = vpop.f32.mrf.mxu0
        %v1502 = vadd.f32 %v1454, %v1501
        %v1503 = vpop.f32.mrf.mxu0
        %1504 = vdwg.mxu0
        %v1505 = vadd.f32 %v1441, %v1499
        %v1506 = vadd.f32 %v1442, %v1502
        %v1507 = vmax.f32 %v1505, 0.0
        %v1508 = vmax.f32 %v1506, 0.0
        %v1509 = vpack.c.bf16 %v1508, %v1507
        %v1511 = vrot.slane %v1509, 7
        %vm1512 = vcmask 1040384
        %v1515 = vsel %vm1512, 0, %v1511
        %v1517 = vrot.slane %v1509, 1
        %vm1518 = vcmask 1046528
        %v1520 = vsel %vm1518, %v1517, 0
        %vm1522 = vcmp.ge.s32.totalorder %v1162, 2
        %vm1523 = vcmp.ge.s32.totalorder %v1163, 2
        %v1524 = vsel %vm1522, 1, 0
        %v1525 = vsel %vm1523, 1, 0
        %vm1526 = vcmp.eq.s32.totalorder %v1524, 1
        %vm1527 = vcmp.eq.s32.totalorder %v1525, 1
        %vm1528 = vmpackc.low %vm1526, %vm1526
        %vm1529 = vmpackc.low %vm1527, %vm1527
        %v1530 = vsel %vm1528, 65537, 0
        %v1531 = vsel %vm1529, 65537, 0
        %v1532 = vunpack.c.l.b16 %v1530
        %v1533 = vunpack.c.l.b16 %v1531
        %v1534 = vpack.c.b16 %v1533, %v1532
        %vm1535 = vcmp.ne.s16.totalorder %v1534, 0
        %v1536 = vsel %vm1535, %v1515, 0
        %vm1537 = vcmp.lt.s32.totalorder %v1162, 6
        %vm1538 = vcmp.lt.s32.totalorder %v1163, 6
        %v1539 = vsel %vm1537, 1, 0
        %v1540 = vsel %vm1538, 1, 0
        %vm1541 = vcmp.eq.s32.totalorder %v1539, 1
        %vm1542 = vcmp.eq.s32.totalorder %v1540, 1
        %vm1543 = vmpackc.low %vm1541, %vm1541
        %vm1544 = vmpackc.low %vm1542, %vm1542
        %v1545 = vsel %vm1543, 65537, 0
        %v1546 = vsel %vm1544, 65537, 0
        %v1547 = vunpack.c.l.b16 %v1545
        %v1548 = vunpack.c.l.b16 %v1546
        %v1549 = vpack.c.b16 %v1548, %v1547
        %vm1550 = vcmp.ne.s16.totalorder %v1549, 0
        %v1551 = vsel %vm1550, %v1520, 0
        %1552 = vrot.lane.b32.xlu0 %v1509, 32
        %v1553 = vpop.permute.xlu0 %1552
        %1555 = vrot.lane.b32.xlu0 %v1551, 64
        %v1556 = vpop.permute.xlu0 %1555
        %v1559 = vsel %vm1226, %v1536, %v1553
        %v1561 = vsel %vm1335, %v1559, %v1556
        %s1562 = smul.addr %s1338, 4
        %s1563 = scalar_lea.vmem %s11, %s1562
        %v1564 = vld [vmem:[%s1563] sm:$0xf]
        %v1565 = vld [vmem:[%s1563 + $0x4] sm:$0xf]
        %v1566 = vld [vmem:[%s1563 + $0x8] sm:$0xf]
        %v1567 = vld [vmem:[%s1563 + $0xc] sm:$0xf]
        %v1568 = vld [vmem:[%s1563 + $0x10] sm:$0xf]
        %v1569 = vld [vmem:[%s1563 + $0x14] sm:$0xf]
        %v1570 = vld [vmem:[%s1563 + $0x18] sm:$0xf]
        %v1571 = vld [vmem:[%s1563 + $0x1c] sm:$0xf]
        %v1572 = vld [vmem:[%s1563 + $0x20] sm:$0xf]
        %v1573 = vld [vmem:[%s1563 + $0x24] sm:$0xf]
        %v1574 = vld [vmem:[%s1563 + $0x28] sm:$0xf]
        %v1575 = vld [vmem:[%s1563 + $0x2c] sm:$0xf]
        %s1576 = scalar_lea.vmem %s13, %s90
        %v1577 = vld [vmem:[%s1576] sm:$0x1]
        %v1579 = vlaneseq
        %v1580 = vshrl.u32 %v1579, 7
        %v1581 = vsub.s32 0, %v1580
        %v1582 = vrot.slane %v1577, %v1581
        %v1596 = vunpack.c.l.b16 %v1564
        %v1597 = vunpack.c.l.b16 %v1565
        %v1598 = vunpack.c.l.b16 %v1566
        %v1599 = vunpack.c.l.b16 %v1567
        %v1600 = vunpack.c.l.b16 %v1568
        %v1601 = vunpack.c.l.b16 %v1569
        %v1602 = vunpack.c.l.b16 %v1570
        %v1603 = vunpack.c.l.b16 %v1571
        %v1604 = vunpack.c.l.b16 %v1572
        %v1605 = vunpack.c.l.b16 %v1573
        %v1606 = vunpack.c.l.b16 %v1574
        %v1607 = vunpack.c.l.b16 %v1575
        %v1608 = vpack.c.b16 %v1597, %v1596
        %v1609 = vpack.c.b16 %v1599, %v1598
        %v1610 = vpack.c.b16 %v1601, %v1600
        %v1611 = vpack.c.b16 %v1603, %v1602
        %v1612 = vpack.c.b16 %v1605, %v1604
        %v1613 = vpack.c.b16 %v1607, %v1606
        %v1620 = vsel %vm1397, %v1561, 0
        %1622 = vmatprep.subr.bf16.mxu0 0
        %1623 = vmatpush1.bf16.msra.mxu0 0
        %1624 = vmatprep.subr.bf16.mxu0 0
        %1625 = vmatpush1.bf16.msra.mxu0 0
        %1626 = vmatprep.subr.bf16.mxu0 0
        %1627 = vmatpush1.bf16.msra.mxu0 %v1613
        %1628 = vmatprep.subr.bf16.mxu0 0
        %1629 = vmatpush1.bf16.msra.mxu0 %v1612
        %1630 = vmatprep.subr.bf16.mxu0 0
        %1631 = vmatpush1.bf16.msra.mxu0 %v1611
        %1632 = vmatprep.subr.bf16.mxu0 0
        %1633 = vmatpush1.bf16.msra.mxu0 %v1610
        %1634 = vmatprep.subr.bf16.mxu0 0
        %1635 = vmatpush1.bf16.msra.mxu0 %v1609
        %1636 = vmatprep.subr.bf16.mxu0 0
        %1637 = vmatpush1.bf16.msra.mxu0 %v1608
        %1638 = vmatprep.subr.bf16.mxu0 0
        %1639 = vmatpush2.bf16.msra.mxu0 0
        %1640 = vmatprep.subr.bf16.mxu0 0
        %1641 = vmatpush2.bf16.msra.mxu0 0
        %1642 = vmatprep.subr.bf16.mxu0 0
        %1643 = vmatpush2.bf16.msra.mxu0 0
        %1644 = vmatprep.subr.bf16.mxu0 0
        %1645 = vmatpush2.bf16.msra.mxu0 0
        %1646 = vmatprep.subr.bf16.mxu0 0
        %1647 = vmatpush2.bf16.msra.mxu0 0
        %1648 = vmatprep.subr.bf16.mxu0 0
        %1649 = vmatpush2.bf16.msra.mxu0 0
        %1650 = vmatprep.subr.bf16.mxu0 0
        %1651 = vmatpush2.bf16.msra.mxu0 0
        %1652 = vmatprep.subr.bf16.mxu0 0
        %1653 = vmatpush2.bf16.msra.mxu0 0
        %1654 = vmatprep.mubr.bf16.mxu0 0
        %1655 = vmatmul.mubr.bf16.gmra.mxu0 %v1620
        %v1656 = vpop.f32.mrf.mxu0
        %v1657 = vadd.f32 %v1582, %v1656
        %v1658 = vpop.f32.mrf.mxu0
        %v1659 = vpop.f32.mrf.mxu0
        %v1660 = vadd.f32 %v1582, %v1659
        %v1661 = vpop.f32.mrf.mxu0
        %1662 = vdwg.mxu0
        %v1663 = vmax.f32 %v1657, 0.0
        %v1664 = vmax.f32 %v1660, 0.0
        %v1665 = vpack.c.bf16 %v1664, %v1663
        %v1667 = vrot.slane %v1665, 7
        %v1669 = vsel %vm1512, 0, %v1667
        %v1671 = vrot.slane %v1665, 1
        %v1673 = vsel %vm1518, %v1671, 0
        %v1675 = vsel %vm1535, %v1669, 0
        %v1676 = vsel %vm1550, %v1673, 0
        %1677 = vrot.lane.b32.xlu0 %v1665, 32
        %v1678 = vpop.permute.xlu0 %1677
        %1680 = vrot.lane.b32.xlu0 %v1676, 64
        %v1681 = vpop.permute.xlu0 %1680
        %v1684 = vsel %vm1226, %v1675, %v1678
        %v1686 = vsel %vm1335, %v1684, %v1681
        %s1687 = smul.addr %s1338, 4
        %s1688 = scalar_lea.vmem %s15, %s1687
        %v1689 = vld [vmem:[%s1688] sm:$0xf]
        %v1690 = vld [vmem:[%s1688 + $0x4] sm:$0xf]
        %v1691 = vld [vmem:[%s1688 + $0x8] sm:$0xf]
        %v1692 = vld [vmem:[%s1688 + $0xc] sm:$0xf]
        %v1693 = vld [vmem:[%s1688 + $0x10] sm:$0xf]
        %v1694 = vld [vmem:[%s1688 + $0x14] sm:$0xf]
        %v1695 = vld [vmem:[%s1688 + $0x18] sm:$0xf]
        %v1696 = vld [vmem:[%s1688 + $0x1c] sm:$0xf]
        %v1697 = vld [vmem:[%s1688 + $0x20] sm:$0xf]
        %v1698 = vld [vmem:[%s1688 + $0x24] sm:$0xf]
        %v1699 = vld [vmem:[%s1688 + $0x28] sm:$0xf]
        %v1700 = vld [vmem:[%s1688 + $0x2c] sm:$0xf]
        %s1701 = scalar_lea.vmem %s17, %s90
        %v1702 = vld [vmem:[%s1701] sm:$0x1]
        %v1704 = vlaneseq
        %v1705 = vshrl.u32 %v1704, 7
        %v1706 = vsub.s32 0, %v1705
        %v1707 = vrot.slane %v1702, %v1706
        %v1721 = vunpack.c.l.b16 %v1689
        %v1722 = vunpack.c.l.b16 %v1690
        %v1723 = vunpack.c.l.b16 %v1691
        %v1724 = vunpack.c.l.b16 %v1692
        %v1725 = vunpack.c.l.b16 %v1693
        %v1726 = vunpack.c.l.b16 %v1694
        %v1727 = vunpack.c.l.b16 %v1695
        %v1728 = vunpack.c.l.b16 %v1696
        %v1729 = vunpack.c.l.b16 %v1697
        %v1730 = vunpack.c.l.b16 %v1698
        %v1731 = vunpack.c.l.b16 %v1699
        %v1732 = vunpack.c.l.b16 %v1700
        %v1733 = vpack.c.b16 %v1722, %v1721
        %v1734 = vpack.c.b16 %v1724, %v1723
        %v1735 = vpack.c.b16 %v1726, %v1725
        %v1736 = vpack.c.b16 %v1728, %v1727
        %v1737 = vpack.c.b16 %v1730, %v1729
        %v1738 = vpack.c.b16 %v1732, %v1731
        %v1745 = vsel %vm1397, %v1686, 0
        %1747 = vmatprep.subr.bf16.mxu0 0
        %1748 = vmatpush1.bf16.msra.mxu0 0
        %1749 = vmatprep.subr.bf16.mxu0 0
        %1750 = vmatpush1.bf16.msra.mxu0 0
        %1751 = vmatprep.subr.bf16.mxu0 0
        %1752 = vmatpush1.bf16.msra.mxu0 %v1738
        %1753 = vmatprep.subr.bf16.mxu0 0
        %1754 = vmatpush1.bf16.msra.mxu0 %v1737
        %1755 = vmatprep.subr.bf16.mxu0 0
        %1756 = vmatpush1.bf16.msra.mxu0 %v1736
        %1757 = vmatprep.subr.bf16.mxu0 0
        %1758 = vmatpush1.bf16.msra.mxu0 %v1735
        %1759 = vmatprep.subr.bf16.mxu0 0
        %1760 = vmatpush1.bf16.msra.mxu0 %v1734
        %1761 = vmatprep.subr.bf16.mxu0 0
        %1762 = vmatpush1.bf16.msra.mxu0 %v1733
        %1763 = vmatprep.subr.bf16.mxu0 0
        %1764 = vmatpush2.bf16.msra.mxu0 0
        %1765 = vmatprep.subr.bf16.mxu0 0
        %1766 = vmatpush2.bf16.msra.mxu0 0
        %1767 = vmatprep.subr.bf16.mxu0 0
        %1768 = vmatpush2.bf16.msra.mxu0 0
        %1769 = vmatprep.subr.bf16.mxu0 0
        %1770 = vmatpush2.bf16.msra.mxu0 0
        %1771 = vmatprep.subr.bf16.mxu0 0
        %1772 = vmatpush2.bf16.msra.mxu0 0
        %1773 = vmatprep.subr.bf16.mxu0 0
        %1774 = vmatpush2.bf16.msra.mxu0 0
        %1775 = vmatprep.subr.bf16.mxu0 0
        %1776 = vmatpush2.bf16.msra.mxu0 0
        %1777 = vmatprep.subr.bf16.mxu0 0
        %1778 = vmatpush2.bf16.msra.mxu0 0
        %1779 = vmatprep.mubr.bf16.mxu0 0
        %1780 = vmatmul.mubr.bf16.gmra.mxu0 %v1745
        %v1781 = vpop.f32.mrf.mxu0
        %v1782 = vadd.f32 %v1707, %v1781
        %v1783 = vpop.f32.mrf.mxu0
        %v1784 = vpop.f32.mrf.mxu0
        %v1785 = vadd.f32 %v1707, %v1784
        %v1786 = vpop.f32.mrf.mxu0
        %1787 = vdwg.mxu0
        %v1788 = vmax.f32 %v1782, 0.0
        %v1789 = vmax.f32 %v1785, 0.0
        %v1790 = vadd.f32 %v1788, %v1507
        %v1791 = vadd.f32 %v1789, %v1508
        %v1792 = vmax.f32 %v1790, 0.0
        %v1793 = vmax.f32 %v1791, 0.0
        %v1794 = vpack.c.bf16 %v1793, %v1792
        %v1796 = vrot.slane %v1794, 6
        %vm1797 = vcmask 1041408
        %v1799 = vsel %vm1797, 0, %v1796
        %v1801 = vrot.slane %v1794, 2
        %vm1802 = vcmask 1045504
        %v1804 = vsel %vm1802, %v1801, 0
        %vm1806 = vcmp.ge.s32.totalorder %v1162, 4
        %vm1807 = vcmp.ge.s32.totalorder %v1163, 4
        %v1808 = vsel %vm1806, 1, 0
        %v1809 = vsel %vm1807, 1, 0
        %vm1810 = vcmp.eq.s32.totalorder %v1808, 1
        %vm1811 = vcmp.eq.s32.totalorder %v1809, 1
        %vm1812 = vmpackc.low %vm1810, %vm1810
        %vm1813 = vmpackc.low %vm1811, %vm1811
        %v1814 = vsel %vm1812, 65537, 0
        %v1815 = vsel %vm1813, 65537, 0
        %v1816 = vunpack.c.l.b16 %v1814
        %v1817 = vunpack.c.l.b16 %v1815
        %v1818 = vpack.c.b16 %v1817, %v1816
        %vm1819 = vcmp.ne.s16.totalorder %v1818, 0
        %v1820 = vsel %vm1819, %v1799, 0
        %vm1821 = vcmp.lt.s32.totalorder %v1162, 4
        %vm1822 = vcmp.lt.s32.totalorder %v1163, 4
        %v1823 = vsel %vm1821, 1, 0
        %v1824 = vsel %vm1822, 1, 0
        %vm1825 = vcmp.eq.s32.totalorder %v1823, 1
        %vm1826 = vcmp.eq.s32.totalorder %v1824, 1
        %vm1827 = vmpackc.low %vm1825, %vm1825
        %vm1828 = vmpackc.low %vm1826, %vm1826
        %v1829 = vsel %vm1827, 65537, 0
        %v1830 = vsel %vm1828, 65537, 0
        %v1831 = vunpack.c.l.b16 %v1829
        %v1832 = vunpack.c.l.b16 %v1830
        %v1833 = vpack.c.b16 %v1832, %v1831
        %vm1834 = vcmp.ne.s16.totalorder %v1833, 0
        %v1835 = vsel %vm1834, %v1804, 0
        %1836 = vrot.lane.b32.xlu0 %v1794, 32
        %v1837 = vpop.permute.xlu0 %1836
        %1839 = vrot.lane.b32.xlu0 %v1835, 64
        %v1840 = vpop.permute.xlu0 %1839
        %v1843 = vsel %vm1226, %v1820, %v1837
        %v1845 = vsel %vm1335, %v1843, %v1840
        %s1846 = smul.addr %s1338, 4
        %s1847 = scalar_lea.vmem %s19, %s1846
        %v1848 = vld [vmem:[%s1847] sm:$0xf]
        %v1849 = vld [vmem:[%s1847 + $0x4] sm:$0xf]
        %v1850 = vld [vmem:[%s1847 + $0x8] sm:$0xf]
        %v1851 = vld [vmem:[%s1847 + $0xc] sm:$0xf]
        %v1852 = vld [vmem:[%s1847 + $0x10] sm:$0xf]
        %v1853 = vld [vmem:[%s1847 + $0x14] sm:$0xf]
        %v1854 = vld [vmem:[%s1847 + $0x18] sm:$0xf]
        %v1855 = vld [vmem:[%s1847 + $0x1c] sm:$0xf]
        %v1856 = vld [vmem:[%s1847 + $0x20] sm:$0xf]
        %v1857 = vld [vmem:[%s1847 + $0x24] sm:$0xf]
        %v1858 = vld [vmem:[%s1847 + $0x28] sm:$0xf]
        %v1859 = vld [vmem:[%s1847 + $0x2c] sm:$0xf]
        %s1860 = scalar_lea.vmem %s21, %s90
        %v1861 = vld [vmem:[%s1860] sm:$0x1]
        %v1863 = vlaneseq
        %v1864 = vshrl.u32 %v1863, 7
        %v1865 = vsub.s32 0, %v1864
        %v1866 = vrot.slane %v1861, %v1865
        %v1880 = vunpack.c.l.b16 %v1848
        %v1881 = vunpack.c.l.b16 %v1849
        %v1882 = vunpack.c.l.b16 %v1850
        %v1883 = vunpack.c.l.b16 %v1851
        %v1884 = vunpack.c.l.b16 %v1852
        %v1885 = vunpack.c.l.b16 %v1853
        %v1886 = vunpack.c.l.b16 %v1854
        %v1887 = vunpack.c.l.b16 %v1855
        %v1888 = vunpack.c.l.b16 %v1856
        %v1889 = vunpack.c.l.b16 %v1857
        %v1890 = vunpack.c.l.b16 %v1858
        %v1891 = vunpack.c.l.b16 %v1859
        %v1892 = vpack.c.b16 %v1881, %v1880
        %v1893 = vpack.c.b16 %v1883, %v1882
        %v1894 = vpack.c.b16 %v1885, %v1884
        %v1895 = vpack.c.b16 %v1887, %v1886
        %v1896 = vpack.c.b16 %v1889, %v1888
        %v1897 = vpack.c.b16 %v1891, %v1890
        %v1904 = vsel %vm1397, %v1845, 0
        %1906 = vmatprep.subr.bf16.mxu0 0
        %1907 = vmatpush1.bf16.msra.mxu0 0
        %1908 = vmatprep.subr.bf16.mxu0 0
        %1909 = vmatpush1.bf16.msra.mxu0 0
        %1910 = vmatprep.subr.bf16.mxu0 0
        %1911 = vmatpush1.bf16.msra.mxu0 %v1897
        %1912 = vmatprep.subr.bf16.mxu0 0
        %1913 = vmatpush1.bf16.msra.mxu0 %v1896
        %1914 = vmatprep.subr.bf16.mxu0 0
        %1915 = vmatpush1.bf16.msra.mxu0 %v1895
        %1916 = vmatprep.subr.bf16.mxu0 0
        %1917 = vmatpush1.bf16.msra.mxu0 %v1894
        %1918 = vmatprep.subr.bf16.mxu0 0
        %1919 = vmatpush1.bf16.msra.mxu0 %v1893
        %1920 = vmatprep.subr.bf16.mxu0 0
        %1921 = vmatpush1.bf16.msra.mxu0 %v1892
        %1922 = vmatprep.subr.bf16.mxu0 0
        %1923 = vmatpush2.bf16.msra.mxu0 0
        %1924 = vmatprep.subr.bf16.mxu0 0
        %1925 = vmatpush2.bf16.msra.mxu0 0
        %1926 = vmatprep.subr.bf16.mxu0 0
        %1927 = vmatpush2.bf16.msra.mxu0 0
        %1928 = vmatprep.subr.bf16.mxu0 0
        %1929 = vmatpush2.bf16.msra.mxu0 0
        %1930 = vmatprep.subr.bf16.mxu0 0
        %1931 = vmatpush2.bf16.msra.mxu0 0
        %1932 = vmatprep.subr.bf16.mxu0 0
        %1933 = vmatpush2.bf16.msra.mxu0 0
        %1934 = vmatprep.subr.bf16.mxu0 0
        %1935 = vmatpush2.bf16.msra.mxu0 0
        %1936 = vmatprep.subr.bf16.mxu0 0
        %1937 = vmatpush2.bf16.msra.mxu0 0
        %1938 = vmatprep.mubr.bf16.mxu0 0
        %1939 = vmatmul.mubr.bf16.gmra.mxu0 %v1904
        %v1940 = vpop.f32.mrf.mxu0
        %v1941 = vadd.f32 %v1866, %v1940
        %v1942 = vpop.f32.mrf.mxu0
        %v1943 = vpop.f32.mrf.mxu0
        %v1944 = vadd.f32 %v1866, %v1943
        %v1945 = vpop.f32.mrf.mxu0
        %1946 = vdwg.mxu0
        %v1947 = vmax.f32 %v1941, 0.0
        %v1948 = vmax.f32 %v1944, 0.0
        %v1949 = vpack.c.bf16 %v1948, %v1947
        %v1951 = vrot.slane %v1949, 6
        %v1953 = vsel %vm1797, 0, %v1951
        %v1955 = vrot.slane %v1949, 2
        %v1957 = vsel %vm1802, %v1955, 0
        %v1959 = vsel %vm1819, %v1953, 0
        %v1960 = vsel %vm1834, %v1957, 0
        %1961 = vrot.lane.b32.xlu0 %v1949, 32
        %v1962 = vpop.permute.xlu0 %1961
        %1964 = vrot.lane.b32.xlu0 %v1960, 64
        %v1965 = vpop.permute.xlu0 %1964
        %v1968 = vsel %vm1226, %v1959, %v1962
        %v1970 = vsel %vm1335, %v1968, %v1965
        %s1971 = smul.addr %s1338, 4
        %s1972 = scalar_lea.vmem %s23, %s1971
        %v1973 = vld [vmem:[%s1972] sm:$0xf]
        %v1974 = vld [vmem:[%s1972 + $0x4] sm:$0xf]
        %v1975 = vld [vmem:[%s1972 + $0x8] sm:$0xf]
        %v1976 = vld [vmem:[%s1972 + $0xc] sm:$0xf]
        %v1977 = vld [vmem:[%s1972 + $0x10] sm:$0xf]
        %v1978 = vld [vmem:[%s1972 + $0x14] sm:$0xf]
        %v1979 = vld [vmem:[%s1972 + $0x18] sm:$0xf]
        %v1980 = vld [vmem:[%s1972 + $0x1c] sm:$0xf]
        %v1981 = vld [vmem:[%s1972 + $0x20] sm:$0xf]
        %v1982 = vld [vmem:[%s1972 + $0x24] sm:$0xf]
        %v1983 = vld [vmem:[%s1972 + $0x28] sm:$0xf]
        %v1984 = vld [vmem:[%s1972 + $0x2c] sm:$0xf]
        %s1985 = scalar_lea.vmem %s25, %s90
        %v1986 = vld [vmem:[%s1985] sm:$0x1]
        %v1988 = vlaneseq
        %v1989 = vshrl.u32 %v1988, 7
        %v1990 = vsub.s32 0, %v1989
        %v1991 = vrot.slane %v1986, %v1990
        %v2005 = vunpack.c.l.b16 %v1973
        %v2006 = vunpack.c.l.b16 %v1974
        %v2007 = vunpack.c.l.b16 %v1975
        %v2008 = vunpack.c.l.b16 %v1976
        %v2009 = vunpack.c.l.b16 %v1977
        %v2010 = vunpack.c.l.b16 %v1978
        %v2011 = vunpack.c.l.b16 %v1979
        %v2012 = vunpack.c.l.b16 %v1980
        %v2013 = vunpack.c.l.b16 %v1981
        %v2014 = vunpack.c.l.b16 %v1982
        %v2015 = vunpack.c.l.b16 %v1983
        %v2016 = vunpack.c.l.b16 %v1984
        %v2017 = vpack.c.b16 %v2006, %v2005
        %v2018 = vpack.c.b16 %v2008, %v2007
        %v2019 = vpack.c.b16 %v2010, %v2009
        %v2020 = vpack.c.b16 %v2012, %v2011
        %v2021 = vpack.c.b16 %v2014, %v2013
        %v2022 = vpack.c.b16 %v2016, %v2015
        %v2029 = vsel %vm1397, %v1970, 0
        %2031 = vmatprep.subr.bf16.mxu0 0
        %2032 = vmatpush1.bf16.msra.mxu0 0
        %2033 = vmatprep.subr.bf16.mxu0 0
        %2034 = vmatpush1.bf16.msra.mxu0 0
        %2035 = vmatprep.subr.bf16.mxu0 0
        %2036 = vmatpush1.bf16.msra.mxu0 %v2022
        %2037 = vmatprep.subr.bf16.mxu0 0
        %2038 = vmatpush1.bf16.msra.mxu0 %v2021
        %2039 = vmatprep.subr.bf16.mxu0 0
        %2040 = vmatpush1.bf16.msra.mxu0 %v2020
        %2041 = vmatprep.subr.bf16.mxu0 0
        %2042 = vmatpush1.bf16.msra.mxu0 %v2019
        %2043 = vmatprep.subr.bf16.mxu0 0
        %2044 = vmatpush1.bf16.msra.mxu0 %v2018
        %2045 = vmatprep.subr.bf16.mxu0 0
        %2046 = vmatpush1.bf16.msra.mxu0 %v2017
        %2047 = vmatprep.subr.bf16.mxu0 0
        %2048 = vmatpush2.bf16.msra.mxu0 0
        %2049 = vmatprep.subr.bf16.mxu0 0
        %2050 = vmatpush2.bf16.msra.mxu0 0
        %2051 = vmatprep.subr.bf16.mxu0 0
        %2052 = vmatpush2.bf16.msra.mxu0 0
        %2053 = vmatprep.subr.bf16.mxu0 0
        %2054 = vmatpush2.bf16.msra.mxu0 0
        %2055 = vmatprep.subr.bf16.mxu0 0
        %2056 = vmatpush2.bf16.msra.mxu0 0
        %2057 = vmatprep.subr.bf16.mxu0 0
        %2058 = vmatpush2.bf16.msra.mxu0 0
        %2059 = vmatprep.subr.bf16.mxu0 0
        %2060 = vmatpush2.bf16.msra.mxu0 0
        %2061 = vmatprep.subr.bf16.mxu0 0
        %2062 = vmatpush2.bf16.msra.mxu0 0
        %2063 = vmatprep.mubr.bf16.mxu0 0
        %2064 = vmatmul.mubr.bf16.gmra.mxu0 %v2029
        %v2065 = vpop.f32.mrf.mxu0
        %v2066 = vadd.f32 %v1991, %v2065
        %v2067 = vpop.f32.mrf.mxu0
        %v2068 = vpop.f32.mrf.mxu0
        %v2069 = vadd.f32 %v1991, %v2068
        %v2070 = vpop.f32.mrf.mxu0
        %2071 = vdwg.mxu0
        %v2072 = vmax.f32 %v2066, 0.0
        %v2073 = vmax.f32 %v2069, 0.0
        %v2074 = vadd.f32 %v2072, %v1792
        %v2075 = vadd.f32 %v2073, %v1793
        %v2076 = vmax.f32 %v2074, 0.0
        %v2077 = vmax.f32 %v2075, 0.0
        %v2078 = vpack.c.bf16 %v2077, %v2076
        %s2079 = smul.u32 %s90, 4
        %s2080 = smul.addr %s2079, 4
        %s2081 = scalar_lea.vmem %s31, %s2080
        %v2082 = vld [vmem:[%s2081] sm:$0xf]
        %v2083 = vld [vmem:[%s2081 + $0x4] sm:$0xf]
        %v2084 = vld [vmem:[%s2081 + $0x8] sm:$0xf]
        %v2085 = vld [vmem:[%s2081 + $0xc] sm:$0xf]
        %s2086 = scalar_lea.vmem %s33, %s90
        %v2087 = vld [vmem:[%s2086] sm:$0x1]
        %v2089 = vlaneseq
        %v2090 = vshrl.u32 %v2089, 7
        %v2091 = vsub.s32 0, %v2090
        %v2092 = vrot.slane %v2087, %v2091
        %v2098 = vunpack.c.l.b16 %v2082
        %v2099 = vunpack.c.l.b16 %v2083
        %v2100 = vunpack.c.l.b16 %v2084
        %v2101 = vunpack.c.l.b16 %v2085
        %v2102 = vpack.c.b16 %v2099, %v2098
        %v2103 = vpack.c.b16 %v2101, %v2100
        %v2107 = vsel %vm1226, %v2078, 0
        %2109 = vmatprep.subr.bf16.mxu0 0
        %2110 = vmatpush1.bf16.msra.mxu0 0
        %2111 = vmatprep.subr.bf16.mxu0 0
        %2112 = vmatpush1.bf16.msra.mxu0 0
        %2113 = vmatprep.subr.bf16.mxu0 0
        %2114 = vmatpush1.bf16.msra.mxu0 0
        %2115 = vmatprep.subr.bf16.mxu0 0
        %2116 = vmatpush1.bf16.msra.mxu0 0
        %2117 = vmatprep.subr.bf16.mxu0 0
        %2118 = vmatpush1.bf16.msra.mxu0 0
        %2119 = vmatprep.subr.bf16.mxu0 0
        %2120 = vmatpush1.bf16.msra.mxu0 0
        %2121 = vmatprep.subr.bf16.mxu0 0
        %2122 = vmatpush1.bf16.msra.mxu0 %v2103
        %2123 = vmatprep.subr.bf16.mxu0 0
        %2124 = vmatpush1.bf16.msra.mxu0 %v2102
        %2125 = vmatprep.subr.bf16.mxu0 0
        %2126 = vmatpush2.bf16.msra.mxu0 0
        %2127 = vmatprep.subr.bf16.mxu0 0
        %2128 = vmatpush2.bf16.msra.mxu0 0
        %2129 = vmatprep.subr.bf16.mxu0 0
        %2130 = vmatpush2.bf16.msra.mxu0 0
        %2131 = vmatprep.subr.bf16.mxu0 0
        %2132 = vmatpush2.bf16.msra.mxu0 0
        %2133 = vmatprep.subr.bf16.mxu0 0
        %2134 = vmatpush2.bf16.msra.mxu0 0
        %2135 = vmatprep.subr.bf16.mxu0 0
        %2136 = vmatpush2.bf16.msra.mxu0 0
        %2137 = vmatprep.subr.bf16.mxu0 0
        %2138 = vmatpush2.bf16.msra.mxu0 0
        %2139 = vmatprep.subr.bf16.mxu0 0
        %2140 = vmatpush2.bf16.msra.mxu0 0
        %2141 = vmatprep.mubr.bf16.mxu0 0
        %2142 = vmatmul.mubr.bf16.gmra.mxu0 %v2107
        %v2143 = vpop.f32.mrf.mxu0
        %v2144 = vadd.f32 %v2092, %v2143
        %v2145 = vpop.f32.mrf.mxu0
        %v2146 = vpop.f32.mrf.mxu0
        %v2147 = vadd.f32 %v2092, %v2146
        %v2148 = vpop.f32.mrf.mxu0
        %2149 = vdwg.mxu0
        %v2150 = vpack.c.bf16 %v2147, %v2144
        %s2151 = smul.addr %s1443, 4
        %s2152 = scalar_lea.vmem %s35, %s2151
        %v2153 = vld [vmem:[%s2152] sm:$0xf]
        %v2154 = vld [vmem:[%s2152 + $0x4] sm:$0xf]
        %s2155 = scalar_lea.vmem %s37, %s90
        %v2156 = vld [vmem:[%s2155] sm:$0x1]
        %v2158 = vlaneseq
        %v2159 = vshrl.u32 %v2158, 7
        %v2160 = vsub.s32 0, %v2159
        %v2161 = vrot.slane %v2156, %v2160
        %v2165 = vunpack.c.l.b16 %v2153
        %v2166 = vunpack.c.l.b16 %v2154
        %v2167 = vpack.c.b16 %v2166, %v2165
        %v2170 = vsel %vm1222, %v2150, 0
        %2172 = vmatprep.subr.bf16.mxu0 0
        %2173 = vmatpush1.bf16.msra.mxu0 0
        %2174 = vmatprep.subr.bf16.mxu0 0
        %2175 = vmatpush1.bf16.msra.mxu0 0
        %2176 = vmatprep.subr.bf16.mxu0 0
        %2177 = vmatpush1.bf16.msra.mxu0 0
        %2178 = vmatprep.subr.bf16.mxu0 0
        %2179 = vmatpush1.bf16.msra.mxu0 0
        %2180 = vmatprep.subr.bf16.mxu0 0
        %2181 = vmatpush1.bf16.msra.mxu0 0
        %2182 = vmatprep.subr.bf16.mxu0 0
        %2183 = vmatpush1.bf16.msra.mxu0 0
        %2184 = vmatprep.subr.bf16.mxu0 0
        %2185 = vmatpush1.bf16.msra.mxu0 0
        %2186 = vmatprep.subr.bf16.mxu0 0
        %2187 = vmatpush1.bf16.msra.mxu0 %v2167
        %2188 = vmatprep.subr.bf16.mxu0 0
        %2189 = vmatpush2.bf16.msra.mxu0 0
        %2190 = vmatprep.subr.bf16.mxu0 0
        %2191 = vmatpush2.bf16.msra.mxu0 0
        %2192 = vmatprep.subr.bf16.mxu0 0
        %2193 = vmatpush2.bf16.msra.mxu0 0
        %2194 = vmatprep.subr.bf16.mxu0 0
        %2195 = vmatpush2.bf16.msra.mxu0 0
        %2196 = vmatprep.subr.bf16.mxu0 0
        %2197 = vmatpush2.bf16.msra.mxu0 0
        %2198 = vmatprep.subr.bf16.mxu0 0
        %2199 = vmatpush2.bf16.msra.mxu0 0
        %2200 = vmatprep.subr.bf16.mxu0 0
        %2201 = vmatpush2.bf16.msra.mxu0 0
        %2202 = vmatprep.subr.bf16.mxu0 0
        %2203 = vmatpush2.bf16.msra.mxu0 0
        %2204 = vmatprep.mubr.bf16.mxu0 0
        %2205 = vmatmul.mubr.bf16.gmra.mxu0 %v2170
        %v2206 = vpop.f32.mrf.mxu0
        %v2207 = vadd.f32 %v2161, %v2206
        %v2208 = vpop.f32.mrf.mxu0
        %v2209 = vpop.f32.mrf.mxu0
        %v2210 = vadd.f32 %v2161, %v2209
        %v2211 = vpop.f32.mrf.mxu0
        %2212 = vdwg.mxu0
        %v2213 = vmul.f32 %v2207, 0.5
        %v2214 = vmul.f32 %v2210, 0.5
        %v2215 = vmul.f32 %v2207, 0.70710677
        %v2216 = vmul.f32 %v2210, 0.70710677
        %vm2217 = vcmp.ge.f32.partialorder %v2215, 0.0
        %vm2218 = vcmp.ge.f32.partialorder %v2216, 0.0
        %v2219 = vsel %vm2217, 1.0, -1.0
        %v2220 = vsel %vm2218, 1.0, -1.0
        %v2221 = vand.u32 2147483647, %v2215
        %v2222 = vand.u32 2147483647, %v2216
        %v2223 = vmul.f32 %v2221, 0.3275911
        %v2224 = vmul.f32 %v2222, 0.3275911
        %v2225 = vadd.f32 %v2223, 1.0
        %v2226 = vadd.f32 %v2224, 1.0
        %v2227 = vrcp.pop %v2225
        %v2228 = vmul.f32 1.0, %v2227
        %v2229 = vrcp.pop %v2226
        %v2230 = vmul.f32 1.0, %v2229
        %v2231 = vmul.f32 %v2228, 1.0614054
        %v2232 = vmul.f32 %v2230, 1.0614054
        %v2233 = vadd.f32 %v2231, -1.4531521
        %v2234 = vadd.f32 %v2232, -1.4531521
        %v2235 = vmul.f32 %v2233, %v2228
        %v2236 = vmul.f32 %v2234, %v2230
        %v2237 = vadd.f32 %v2235, 1.4214138
        %v2238 = vadd.f32 %v2236, 1.4214138
        %v2239 = vmul.f32 %v2237, %v2228
        %v2240 = vmul.f32 %v2238, %v2230
        %v2241 = vadd.f32 %v2239, -0.28449672
        %v2242 = vadd.f32 %v2240, -0.28449672
        %v2243 = vmul.f32 %v2241, %v2228
        %v2244 = vmul.f32 %v2242, %v2230
        %v2245 = vadd.f32 %v2243, 0.2548296
        %v2246 = vadd.f32 %v2244, 0.2548296
        %v2247 = vmul.f32 %v2245, %v2228
        %v2248 = vmul.f32 %v2246, %v2230
        %v2249 = vsub.f32 0.0, %v2221
        %v2250 = vsub.f32 0.0, %v2222
        %v2251 = vmul.f32 %v2249, %v2221
        %v2252 = vmul.f32 %v2250, %v2222
        %v2253 = vmul.f32 %v2251, 1.442695
        %v2254 = vpow.pop %v2253
        %v2255 = vmul.f32 %v2252, 1.442695
        %v2256 = vpow.pop %v2255
        %v2257 = vmul.f32 %v2247, %v2254
        %v2258 = vmul.f32 %v2248, %v2256
        %v2259 = vsub.f32 1.0, %v2257
        %v2260 = vsub.f32 1.0, %v2258
        %v2261 = vmul.f32 %v2219, %v2259
        %v2262 = vmul.f32 %v2220, %v2260
        %v2263 = vadd.f32 %v2261, 1.0
        %v2264 = vadd.f32 %v2262, 1.0
        %v2265 = vmul.f32 %v2213, %v2263
        %v2266 = vmul.f32 %v2214, %v2264
        %v2267 = vpack.c.bf16 %v2266, %v2265
        %s2268 = smul.addr %s1443, 4
        %s2269 = scalar_lea.vmem %s39, %s2268
        %v2270 = vld [vmem:[%s2269] sm:$0xf]
        %v2271 = vld [vmem:[%s2269 + $0x4] sm:$0xf]
        %s2272 = scalar_lea.vmem %s41, %s90
        %v2273 = vld [vmem:[%s2272] sm:$0x1]
        %v2275 = vlaneseq
        %v2276 = vshrl.u32 %v2275, 7
        %v2277 = vsub.s32 0, %v2276
        %v2278 = vrot.slane %v2273, %v2277
        %v2282 = vunpack.c.l.b16 %v2270
        %v2283 = vunpack.c.l.b16 %v2271
        %v2284 = vpack.c.b16 %v2283, %v2282
        %v2287 = vsel %vm1222, %v2267, 0
        %2289 = vmatprep.subr.bf16.mxu0 0
        %2290 = vmatpush1.bf16.msra.mxu0 0
        %2291 = vmatprep.subr.bf16.mxu0 0
        %2292 = vmatpush1.bf16.msra.mxu0 0
        %2293 = vmatprep.subr.bf16.mxu0 0
        %2294 = vmatpush1.bf16.msra.mxu0 0
        %2295 = vmatprep.subr.bf16.mxu0 0
        %2296 = vmatpush1.bf16.msra.mxu0 0
        %2297 = vmatprep.subr.bf16.mxu0 0
        %2298 = vmatpush1.bf16.msra.mxu0 0
        %2299 = vmatprep.subr.bf16.mxu0 0
        %2300 = vmatpush1.bf16.msra.mxu0 0
        %2301 = vmatprep.subr.bf16.mxu0 0
        %2302 = vmatpush1.bf16.msra.mxu0 0
        %2303 = vmatprep.subr.bf16.mxu0 0
        %2304 = vmatpush1.bf16.msra.mxu0 %v2284
        %2305 = vmatprep.subr.bf16.mxu0 0
        %2306 = vmatpush2.bf16.msra.mxu0 0
        %2307 = vmatprep.subr.bf16.mxu0 0
        %2308 = vmatpush2.bf16.msra.mxu0 0
        %2309 = vmatprep.subr.bf16.mxu0 0
        %2310 = vmatpush2.bf16.msra.mxu0 0
        %2311 = vmatprep.subr.bf16.mxu0 0
        %2312 = vmatpush2.bf16.msra.mxu0 0
        %2313 = vmatprep.subr.bf16.mxu0 0
        %2314 = vmatpush2.bf16.msra.mxu0 0
        %2315 = vmatprep.subr.bf16.mxu0 0
        %2316 = vmatpush2.bf16.msra.mxu0 0
        %2317 = vmatprep.subr.bf16.mxu0 0
        %2318 = vmatpush2.bf16.msra.mxu0 0
        %2319 = vmatprep.subr.bf16.mxu0 0
        %2320 = vmatpush2.bf16.msra.mxu0 0
        %2321 = vmatprep.mubr.bf16.mxu0 0
        %2322 = vmatmul.mubr.bf16.gmra.mxu0 %v2287
        %v2323 = vpop.f32.mrf.mxu0
        %v2324 = vadd.f32 %v2278, %v2323
        %v2325 = vpop.f32.mrf.mxu0
        %v2326 = vpop.f32.mrf.mxu0
        %v2327 = vadd.f32 %v2278, %v2326
        %v2328 = vpop.f32.mrf.mxu0
        %2329 = vdwg.mxu0
        %2330 = vst.msk [vmem:[%s1125] sm:$0xff] %vm1222, %v2324
        %2331 = vst.msk [vmem:[%s1125 + $0x8] sm:$0xff] %vm1222, %v2327
        %v2332 = vadd.f32 %v2324, %v2144
        %v2333 = vadd.f32 %v2327, %v2147
        %s2334 = scalar_lea.vmem %s43, %s90
        %v2335 = vld [vmem:[%s2334] sm:$0x1]
        %s2336 = scalar_lea.vmem %s45, %s90
        %v2337 = vld [vmem:[%s2336] sm:$0x1]
        %v2338 = vsel %vm1222, %v2332, 0.0
        %2339 = vadd.xlane.f32.xlu0 %v2338
        %v2340 = vpop.xlane.xlu0 %2339
        %v2341 = vsel %vm1222, %v2333, 0.0
        %2342 = vadd.xlane.f32.xlu0 %v2341
        %v2343 = vpop.xlane.xlu0 %2342
        %v2344 = vrcp.pop 16.0
        %v2345 = vmul.f32 %v2340, %v2344
        %v2346 = vmul.f32 %v2343, %v2344
        %v2347 = vsub.f32 %v2332, %v2345
        %v2348 = vsub.f32 %v2333, %v2346
        %v2349 = vmul.f32 %v2347, %v2347
        %v2350 = vmul.f32 %v2348, %v2348
        %v2351 = vsel %vm1222, %v2349, 0.0
        %2352 = vadd.xlane.f32.xlu0 %v2351
        %v2353 = vpop.xlane.xlu0 %2352
        %v2354 = vsel %vm1222, %v2350, 0.0
        %2355 = vadd.xlane.f32.xlu0 %v2354
        %v2356 = vpop.xlane.xlu0 %2355
        %v2357 = vmul.f32 %v2353, %v2344
        %v2358 = vmul.f32 %v2356, %v2344
        %v2359 = vadd.f32 %v2357, 1e-05
        %v2360 = vadd.f32 %v2358, 1e-05
        %v2361 = vrsqrt.pop %v2359
        %v2362 = vrsqrt.pop %v2360
        %v2363 = vmul.f32 %v2347, %v2361
        %v2364 = vmul.f32 %v2348, %v2362
        %v2366 = vlaneseq
        %v2367 = vshrl.u32 %v2366, 7
        %v2368 = vsub.s32 0, %v2367
        %v2369 = vrot.slane %v2335, %v2368
        %v2371 = vmul.f32 %v2363, %v2369
        %v2372 = vmul.f32 %v2364, %v2369
        %v2374 = vlaneseq
        %v2375 = vshrl.u32 %v2374, 7
        %v2376 = vsub.s32 0, %v2375
        %v2377 = vrot.slane %v2337, %v2376
        %v2379 = vadd.f32 %v2371, %v2377
        %v2380 = vadd.f32 %v2372, %v2377
        %v2381 = vpack.c.bf16 %v2380, %v2379
        %s2382 = smul.addr %s1443, 4
        %s2383 = scalar_lea.vmem %s47, %s2382
        %v2384 = vld [vmem:[%s2383] sm:$0xf]
        %v2385 = vld [vmem:[%s2383 + $0x4] sm:$0xf]
        %s2386 = scalar_lea.vmem %s49, %s90
        %v2387 = vld [vmem:[%s2386] sm:$0x1]
        %v2389 = vlaneseq
        %v2390 = vshrl.u32 %v2389, 7
        %v2391 = vsub.s32 0, %v2390
        %v2392 = vrot.slane %v2387, %v2391
        %v2396 = vunpack.c.l.b16 %v2384
        %v2397 = vunpack.c.l.b16 %v2385
        %v2398 = vpack.c.b16 %v2397, %v2396
        %v2401 = vsel %vm1222, %v2381, 0
        %2403 = vmatprep.subr.bf16.mxu0 0
        %2404 = vmatpush1.bf16.msra.mxu0 0
        %2405 = vmatprep.subr.bf16.mxu0 0
        %2406 = vmatpush1.bf16.msra.mxu0 0
        %2407 = vmatprep.subr.bf16.mxu0 0
        %2408 = vmatpush1.bf16.msra.mxu0 0
        %2409 = vmatprep.subr.bf16.mxu0 0
        %2410 = vmatpush1.bf16.msra.mxu0 0
        %2411 = vmatprep.subr.bf16.mxu0 0
        %2412 = vmatpush1.bf16.msra.mxu0 0
        %2413 = vmatprep.subr.bf16.mxu0 0
        %2414 = vmatpush1.bf16.msra.mxu0 0
        %2415 = vmatprep.subr.bf16.mxu0 0
        %2416 = vmatpush1.bf16.msra.mxu0 0
        %2417 = vmatprep.subr.bf16.mxu0 0
        %2418 = vmatpush1.bf16.msra.mxu0 %v2398
        %2419 = vmatprep.subr.bf16.mxu0 0
        %2420 = vmatpush2.bf16.msra.mxu0 0
        %2421 = vmatprep.subr.bf16.mxu0 0
        %2422 = vmatpush2.bf16.msra.mxu0 0
        %2423 = vmatprep.subr.bf16.mxu0 0
        %2424 = vmatpush2.bf16.msra.mxu0 0
        %2425 = vmatprep.subr.bf16.mxu0 0
        %2426 = vmatpush2.bf16.msra.mxu0 0
        %2427 = vmatprep.subr.bf16.mxu0 0
        %2428 = vmatpush2.bf16.msra.mxu0 0
        %2429 = vmatprep.subr.bf16.mxu0 0
        %2430 = vmatpush2.bf16.msra.mxu0 0
        %2431 = vmatprep.subr.bf16.mxu0 0
        %2432 = vmatpush2.bf16.msra.mxu0 0
        %2433 = vmatprep.subr.bf16.mxu0 0
        %2434 = vmatpush2.bf16.msra.mxu0 0
        %2435 = vmatprep.mubr.bf16.mxu0 0
        %2436 = vmatmul.mubr.bf16.gmra.mxu0 %v2401
        %v2437 = vpop.f32.mrf.mxu0
        %v2438 = vadd.f32 %v2392, %v2437
        %v2439 = vpop.f32.mrf.mxu0
        %v2440 = vpop.f32.mrf.mxu0
        %v2441 = vadd.f32 %v2392, %v2440
        %v2442 = vpop.f32.mrf.mxu0
        %2443 = vdwg.mxu0
        %s2444 = smul.u32 %s90, 16
        %s2445 = scalar_lea.vmem %s51, %s2444
        %v2446 = vld [vmem:[%s2445] sm:$0xff]
        %v2447 = vld [vmem:[%s2445 + $0x8] sm:$0x3]
        %v2448 = vlaneseq
        %v2449 = vshrl.u32 %v2448, 7
        %v2450 = vsub.s32 7, %v2449
        %v2451 = vrot.slane %v2438, %v2450
        %v2452 = vadd.f32 %v2451, %v2446
        %v2453 = vadd.f32 %v2451, %v2447
        %v2454 = vlaneseq
        %v2455 = vshrl.u32 %v2454, 7
        %v2456 = vsub.s32 7, %v2455
        %v2457 = vrot.slane %v2441, %v2456
        %v2458 = vadd.f32 %v2457, %v2446
        %v2459 = vadd.f32 %v2457, %v2447
        %v2462 = vrot.slane %v2458, 6
        %v2463 = vrot.slane %v2459, 6
        %v2464 = vsel %vm1797, %v2462, %v2463
        %v2467 = vsel %vm1797, %v2453, %v2462
        %v2468 = vpack.c.bf16 %v2467, %v2452
        %v2469 = vpack.c.bf16 %v2464, %v2464
        %s2470 = smul.addr %s2079, 4
        %s2471 = scalar_lea.vmem %s53, %s2470
        %v2472 = vld [vmem:[%s2471] sm:$0xf]
        %v2473 = vld [vmem:[%s2471 + $0x4] sm:$0xf]
        %v2474 = vld [vmem:[%s2471 + $0x8] sm:$0xf]
        %v2475 = vld [vmem:[%s2471 + $0xc] sm:$0xf]
        %s2476 = scalar_lea.vmem %s55, %s90
        %v2477 = vld [vmem:[%s2476] sm:$0x1]
        %v2479 = vlaneseq
        %v2480 = vshrl.u32 %v2479, 7
        %v2481 = vsub.s32 0, %v2480
        %v2482 = vrot.slane %v2477, %v2481
        %v2488 = vunpack.c.l.b16 %v2472
        %v2489 = vunpack.c.l.b16 %v2473
        %v2490 = vunpack.c.l.b16 %v2474
        %v2491 = vunpack.c.l.b16 %v2475
        %v2492 = vpack.c.b16 %v2489, %v2488
        %v2493 = vpack.c.b16 %v2491, %v2490
        %v2497 = vsel %vm1226, %v2468, 0
        %v2500 = vsel %vm1226, %v2469, 0
        %2502 = vmatprep.subr.bf16.mxu0 0
        %2503 = vmatpush1.bf16.msra.mxu0 0
        %2504 = vmatprep.subr.bf16.mxu0 0
        %2505 = vmatpush1.bf16.msra.mxu0 0
        %2506 = vmatprep.subr.bf16.mxu0 0
        %2507 = vmatpush1.bf16.msra.mxu0 0
        %2508 = vmatprep.subr.bf16.mxu0 0
        %2509 = vmatpush1.bf16.msra.mxu0 0
        %2510 = vmatprep.subr.bf16.mxu0 0
        %2511 = vmatpush1.bf16.msra.mxu0 0
        %2512 = vmatprep.subr.bf16.mxu0 0
        %2513 = vmatpush1.bf16.msra.mxu0 0
        %2514 = vmatprep.subr.bf16.mxu0 0
        %2515 = vmatpush1.bf16.msra.mxu0 %v2493
        %2516 = vmatprep.subr.bf16.mxu0 0
        %2517 = vmatpush1.bf16.msra.mxu0 %v2492
        %2518 = vmatprep.subr.bf16.mxu0 0
        %2519 = vmatpush2.bf16.msra.mxu0 0
        %2520 = vmatprep.subr.bf16.mxu0 0
        %2521 = vmatpush2.bf16.msra.mxu0 0
        %2522 = vmatprep.subr.bf16.mxu0 0
        %2523 = vmatpush2.bf16.msra.mxu0 0
        %2524 = vmatprep.subr.bf16.mxu0 0
        %2525 = vmatpush2.bf16.msra.mxu0 0
        %2526 = vmatprep.subr.bf16.mxu0 0
        %2527 = vmatpush2.bf16.msra.mxu0 0
        %2528 = vmatprep.subr.bf16.mxu0 0
        %2529 = vmatpush2.bf16.msra.mxu0 0
        %2530 = vmatprep.subr.bf16.mxu0 0
        %2531 = vmatpush2.bf16.msra.mxu0 0
        %2532 = vmatprep.subr.bf16.mxu0 0
        %2533 = vmatpush2.bf16.msra.mxu0 0
        %2534 = vmatprep.mubr.bf16.mxu0 0
        %2535 = vmatmul.mubr.bf16.gmra.mxu0 %v2497
        %v2536 = vpop.f32.mrf.mxu0
        %v2537 = vadd.f32 %v2482, %v2536
        %v2538 = vpop.f32.mrf.mxu0
        %v2539 = vpop.f32.mrf.mxu0
        %v2540 = vadd.f32 %v2482, %v2539
        %v2541 = vpop.f32.mrf.mxu0
        %2542 = vmatprep.mubr.bf16.mxu0 0
        %2543 = vmatmul.mubr.bf16.gmra.mxu0 %v2500
        %v2544 = vpop.f32.mrf.mxu0
        %v2545 = vadd.f32 %v2482, %v2544
        %v2546 = vpop.f32.mrf.mxu0
        %v2547 = vpop.f32.mrf.mxu0
        %v2548 = vpop.f32.mrf.mxu0
        %2549 = vdwg.mxu0
        %v2550 = vmul.f32 %v2537, 0.5
        %v2551 = vmul.f32 %v2540, 0.5
        %v2552 = vmul.f32 %v2545, 0.5
        %v2553 = vmul.f32 %v2537, 0.70710677
        %v2554 = vmul.f32 %v2540, 0.70710677
        %v2555 = vmul.f32 %v2545, 0.70710677
        %vm2556 = vcmp.ge.f32.partialorder %v2553, 0.0
        %vm2557 = vcmp.ge.f32.partialorder %v2554, 0.0
        %vm2558 = vcmp.ge.f32.partialorder %v2555, 0.0
        %v2559 = vsel %vm2556, 1.0, -1.0
        %v2560 = vsel %vm2557, 1.0, -1.0
        %v2561 = vsel %vm2558, 1.0, -1.0
        %v2562 = vand.u32 2147483647, %v2553
        %v2563 = vand.u32 2147483647, %v2554
        %v2564 = vand.u32 2147483647, %v2555
        %v2565 = vmul.f32 %v2562, 0.3275911
        %v2566 = vmul.f32 %v2563, 0.3275911
        %v2567 = vmul.f32 %v2564, 0.3275911
        %v2568 = vadd.f32 %v2565, 1.0
        %v2569 = vadd.f32 %v2566, 1.0
        %v2570 = vadd.f32 %v2567, 1.0
        %v2571 = vrcp.pop %v2568
        %v2572 = vmul.f32 1.0, %v2571
        %v2573 = vrcp.pop %v2569
        %v2574 = vmul.f32 1.0, %v2573
        %v2575 = vrcp.pop %v2570
        %v2576 = vmul.f32 1.0, %v2575
        %v2577 = vmul.f32 %v2572, 1.0614054
        %v2578 = vmul.f32 %v2574, 1.0614054
        %v2579 = vmul.f32 %v2576, 1.0614054
        %v2580 = vadd.f32 %v2577, -1.4531521
        %v2581 = vadd.f32 %v2578, -1.4531521
        %v2582 = vadd.f32 %v2579, -1.4531521
        %v2583 = vmul.f32 %v2580, %v2572
        %v2584 = vmul.f32 %v2581, %v2574
        %v2585 = vmul.f32 %v2582, %v2576
        %v2586 = vadd.f32 %v2583, 1.4214138
        %v2587 = vadd.f32 %v2584, 1.4214138
        %v2588 = vadd.f32 %v2585, 1.4214138
        %v2589 = vmul.f32 %v2586, %v2572
        %v2590 = vmul.f32 %v2587, %v2574
        %v2591 = vmul.f32 %v2588, %v2576
        %v2592 = vadd.f32 %v2589, -0.28449672
        %v2593 = vadd.f32 %v2590, -0.28449672
        %v2594 = vadd.f32 %v2591, -0.28449672
        %v2595 = vmul.f32 %v2592, %v2572
        %v2596 = vmul.f32 %v2593, %v2574
        %v2597 = vmul.f32 %v2594, %v2576
        %v2598 = vadd.f32 %v2595, 0.2548296
        %v2599 = vadd.f32 %v2596, 0.2548296
        %v2600 = vadd.f32 %v2597, 0.2548296
        %v2601 = vmul.f32 %v2598, %v2572
        %v2602 = vmul.f32 %v2599, %v2574
        %v2603 = vmul.f32 %v2600, %v2576
        %v2604 = vsub.f32 0.0, %v2562
        %v2605 = vsub.f32 0.0, %v2563
        %v2606 = vsub.f32 0.0, %v2564
        %v2607 = vmul.f32 %v2604, %v2562
        %v2608 = vmul.f32 %v2605, %v2563
        %v2609 = vmul.f32 %v2606, %v2564
        %v2610 = vmul.f32 %v2607, 1.442695
        %v2611 = vpow.pop %v2610
        %v2612 = vmul.f32 %v2608, 1.442695
        %v2613 = vpow.pop %v2612
        %v2614 = vmul.f32 %v2609, 1.442695
        %v2615 = vpow.pop %v2614
        %v2616 = vmul.f32 %v2601, %v2611
        %v2617 = vmul.f32 %v2602, %v2613
        %v2618 = vmul.f32 %v2603, %v2615
        %v2619 = vsub.f32 1.0, %v2616
        %v2620 = vsub.f32 1.0, %v2617
        %v2621 = vsub.f32 1.0, %v2618
        %v2622 = vmul.f32 %v2559, %v2619
        %v2623 = vmul.f32 %v2560, %v2620
        %v2624 = vmul.f32 %v2561, %v2621
        %v2625 = vadd.f32 %v2622, 1.0
        %v2626 = vadd.f32 %v2623, 1.0
        %v2627 = vadd.f32 %v2624, 1.0
        %v2628 = vmul.f32 %v2550, %v2625
        %v2629 = vmul.f32 %v2551, %v2626
        %v2630 = vmul.f32 %v2552, %v2627
        %v2631 = vpack.c.bf16 %v2629, %v2628
        %v2632 = vpack.c.bf16 %v2630, %v2630
        %s2633 = smul.addr %s2444, 4
        %s2634 = scalar_lea.vmem %s57, %s2633
        %v2635 = vld [vmem:[%s2634] sm:$0xf]
        %v2636 = vld [vmem:[%s2634 + $0x4] sm:$0xf]
        %v2637 = vld [vmem:[%s2634 + $0x8] sm:$0xf]
        %v2638 = vld [vmem:[%s2634 + $0xc] sm:$0xf]
        %v2639 = vld [vmem:[%s2634 + $0x10] sm:$0xf]
        %v2640 = vld [vmem:[%s2634 + $0x14] sm:$0xf]
        %v2641 = vld [vmem:[%s2634 + $0x18] sm:$0xf]
        %v2642 = vld [vmem:[%s2634 + $0x1c] sm:$0xf]
        %v2643 = vld [vmem:[%s2634 + $0x20] sm:$0xf]
        %v2644 = vld [vmem:[%s2634 + $0x24] sm:$0xf]
        %v2645 = vld [vmem:[%s2634 + $0x28] sm:$0xf]
        %v2646 = vld [vmem:[%s2634 + $0x2c] sm:$0xf]
        %v2647 = vld [vmem:[%s2634 + $0x30] sm:$0xf]
        %v2648 = vld [vmem:[%s2634 + $0x34] sm:$0xf]
        %v2649 = vld [vmem:[%s2634 + $0x38] sm:$0xf]
        %v2650 = vld [vmem:[%s2634 + $0x3c] sm:$0xf]
        %s2651 = scalar_lea.vmem %s59, %s90
        %v2652 = vld [vmem:[%s2651] sm:$0x1]
        %v2654 = vlaneseq
        %v2655 = vshrl.u32 %v2654, 7
        %v2656 = vsub.s32 0, %v2655
        %v2657 = vrot.slane %v2652, %v2656
        %v2675 = vunpack.c.l.b16 %v2635
        %v2676 = vunpack.c.l.b16 %v2636
        %v2677 = vunpack.c.l.b16 %v2637
        %v2678 = vunpack.c.l.b16 %v2638
        %v2679 = vunpack.c.l.b16 %v2639
        %v2680 = vunpack.c.l.b16 %v2640
        %v2681 = vunpack.c.l.b16 %v2641
        %v2682 = vunpack.c.l.b16 %v2642
        %v2683 = vunpack.c.l.b16 %v2643
        %v2684 = vunpack.c.l.b16 %v2644
        %v2685 = vunpack.c.l.b16 %v2645
        %v2686 = vunpack.c.l.b16 %v2646
        %v2687 = vunpack.c.l.b16 %v2647
        %v2688 = vunpack.c.l.b16 %v2648
        %v2689 = vunpack.c.l.b16 %v2649
        %v2690 = vunpack.c.l.b16 %v2650
        %v2691 = vpack.c.b16 %v2676, %v2675
        %v2692 = vpack.c.b16 %v2678, %v2677
        %v2693 = vpack.c.b16 %v2680, %v2679
        %v2694 = vpack.c.b16 %v2682, %v2681
        %v2695 = vpack.c.b16 %v2684, %v2683
        %v2696 = vpack.c.b16 %v2686, %v2685
        %v2697 = vpack.c.b16 %v2688, %v2687
        %v2698 = vpack.c.b16 %v2690, %v2689
        %2707 = vmatprep.subr.bf16.mxu0 0
        %2708 = vmatpush1.bf16.msra.mxu0 %v2698
        %2709 = vmatprep.subr.bf16.mxu0 0
        %2710 = vmatpush1.bf16.msra.mxu0 %v2697
        %2711 = vmatprep.subr.bf16.mxu0 0
        %2712 = vmatpush1.bf16.msra.mxu0 %v2696
        %2713 = vmatprep.subr.bf16.mxu0 0
        %2714 = vmatpush1.bf16.msra.mxu0 %v2695
        %2715 = vmatprep.subr.bf16.mxu0 0
        %2716 = vmatpush1.bf16.msra.mxu0 %v2694
        %2717 = vmatprep.subr.bf16.mxu0 0
        %2718 = vmatpush1.bf16.msra.mxu0 %v2693
        %2719 = vmatprep.subr.bf16.mxu0 0
        %2720 = vmatpush1.bf16.msra.mxu0 %v2692
        %2721 = vmatprep.subr.bf16.mxu0 0
        %2722 = vmatpush1.bf16.msra.mxu0 %v2691
        %2723 = vmatprep.subr.bf16.mxu0 0
        %2724 = vmatpush2.bf16.msra.mxu0 0
        %2725 = vmatprep.subr.bf16.mxu0 0
        %2726 = vmatpush2.bf16.msra.mxu0 0
        %2727 = vmatprep.subr.bf16.mxu0 0
        %2728 = vmatpush2.bf16.msra.mxu0 0
        %2729 = vmatprep.subr.bf16.mxu0 0
        %2730 = vmatpush2.bf16.msra.mxu0 0
        %2731 = vmatprep.subr.bf16.mxu0 0
        %2732 = vmatpush2.bf16.msra.mxu0 0
        %2733 = vmatprep.subr.bf16.mxu0 0
        %2734 = vmatpush2.bf16.msra.mxu0 0
        %2735 = vmatprep.subr.bf16.mxu0 0
        %2736 = vmatpush2.bf16.msra.mxu0 0
        %2737 = vmatprep.subr.bf16.mxu0 0
        %2738 = vmatpush2.bf16.msra.mxu0 0
        %2739 = vmatprep.mubr.bf16.mxu0 0
        %2740 = vmatmul.mubr.bf16.gmra.mxu0 %v2631
        %v2741 = vpop.f32.mrf.mxu0
        %v2742 = vadd.f32 %v2657, %v2741
        %v2743 = vpop.f32.mrf.mxu0
        %v2744 = vpop.f32.mrf.mxu0
        %v2745 = vadd.f32 %v2657, %v2744
        %v2746 = vpop.f32.mrf.mxu0
        %2747 = vmatprep.mubr.bf16.mxu0 0
        %2748 = vmatmul.mubr.bf16.gmra.mxu0 %v2632
        %v2749 = vpop.f32.mrf.mxu0
        %v2750 = vadd.f32 %v2657, %v2749
        %v2751 = vpop.f32.mrf.mxu0
        %v2752 = vpop.f32.mrf.mxu0
        %v2753 = vpop.f32.mrf.mxu0
        %2754 = vdwg.mxu0
        %v2755 = vpack.c.bf16 %v2745, %v2742
        %v2756 = vpack.c.bf16 %v2750, %v2750
        %s2757 = smul.addr %s2079, 4
        %s2758 = scalar_lea.vmem %s61, %s2757
        %v2759 = vld [vmem:[%s2758] sm:$0xf]
        %v2760 = vld [vmem:[%s2758 + $0x4] sm:$0xf]
        %v2761 = vld [vmem:[%s2758 + $0x8] sm:$0xf]
        %v2762 = vld [vmem:[%s2758 + $0xc] sm:$0xf]
        %s2763 = scalar_lea.vmem %s63, %s90
        %v2764 = vld [vmem:[%s2763] sm:$0x1]
        %v2766 = vlaneseq
        %v2767 = vshrl.u32 %v2766, 7
        %v2768 = vsub.s32 0, %v2767
        %v2769 = vrot.slane %v2764, %v2768
        %v2775 = vunpack.c.l.b16 %v2759
        %v2776 = vunpack.c.l.b16 %v2760
        %v2777 = vunpack.c.l.b16 %v2761
        %v2778 = vunpack.c.l.b16 %v2762
        %v2779 = vpack.c.b16 %v2776, %v2775
        %v2780 = vpack.c.b16 %v2778, %v2777
        %v2784 = vsel %vm1226, %v2755, 0
        %v2787 = vsel %vm1226, %v2756, 0
        %2789 = vmatprep.subr.bf16.mxu0 0
        %2790 = vmatpush1.bf16.msra.mxu0 0
        %2791 = vmatprep.subr.bf16.mxu0 0
        %2792 = vmatpush1.bf16.msra.mxu0 0
        %2793 = vmatprep.subr.bf16.mxu0 0
        %2794 = vmatpush1.bf16.msra.mxu0 0
        %2795 = vmatprep.subr.bf16.mxu0 0
        %2796 = vmatpush1.bf16.msra.mxu0 0
        %2797 = vmatprep.subr.bf16.mxu0 0
        %2798 = vmatpush1.bf16.msra.mxu0 0
        %2799 = vmatprep.subr.bf16.mxu0 0
        %2800 = vmatpush1.bf16.msra.mxu0 0
        %2801 = vmatprep.subr.bf16.mxu0 0
        %2802 = vmatpush1.bf16.msra.mxu0 %v2780
        %2803 = vmatprep.subr.bf16.mxu0 0
        %2804 = vmatpush1.bf16.msra.mxu0 %v2779
        %2805 = vmatprep.subr.bf16.mxu0 0
        %2806 = vmatpush2.bf16.msra.mxu0 0
        %2807 = vmatprep.subr.bf16.mxu0 0
        %2808 = vmatpush2.bf16.msra.mxu0 0
        %2809 = vmatprep.subr.bf16.mxu0 0
        %2810 = vmatpush2.bf16.msra.mxu0 0
        %2811 = vmatprep.subr.bf16.mxu0 0
        %2812 = vmatpush2.bf16.msra.mxu0 0
        %2813 = vmatprep.subr.bf16.mxu0 0
        %2814 = vmatpush2.bf16.msra.mxu0 0
        %2815 = vmatprep.subr.bf16.mxu0 0
        %2816 = vmatpush2.bf16.msra.mxu0 0
        %2817 = vmatprep.subr.bf16.mxu0 0
        %2818 = vmatpush2.bf16.msra.mxu0 0
        %2819 = vmatprep.subr.bf16.mxu0 0
        %2820 = vmatpush2.bf16.msra.mxu0 0
        %2821 = vmatprep.mubr.bf16.mxu0 0
        %2822 = vmatmul.mubr.bf16.gmra.mxu0 %v2784
        %v2823 = vpop.f32.mrf.mxu0
        %v2824 = vadd.f32 %v2769, %v2823
        %v2825 = vpop.f32.mrf.mxu0
        %v2826 = vpop.f32.mrf.mxu0
        %v2827 = vadd.f32 %v2769, %v2826
        %v2828 = vpop.f32.mrf.mxu0
        %2829 = vmatprep.mubr.bf16.mxu0 0
        %2830 = vmatmul.mubr.bf16.gmra.mxu0 %v2787
        %v2831 = vpop.f32.mrf.mxu0
        %v2832 = vadd.f32 %v2769, %v2831
        %v2833 = vpop.f32.mrf.mxu0
        %v2834 = vpop.f32.mrf.mxu0
        %v2835 = vpop.f32.mrf.mxu0
        %2836 = vdwg.mxu0
        %s2837 = scalar_lea.vmem %s65, %s90
        %v2838 = vld [vmem:[%s2837] sm:$0x1]
        %s2839 = scalar_lea.vmem %s67, %s90
        %v2840 = vld [vmem:[%s2839] sm:$0x1]
        %v2841 = vsel %vm1226, %v2824, 0.0
        %2842 = vadd.xlane.f32.xlu0 %v2841
        %v2843 = vpop.xlane.xlu0 %2842
        %v2844 = vsel %vm1226, %v2827, 0.0
        %2845 = vadd.xlane.f32.xlu0 %v2844
        %v2846 = vpop.xlane.xlu0 %2845
        %vm2847 = vcmask 257024
        %v2848 = vsel %vm2847, %v2832, 0.0
        %2849 = vadd.xlane.f32.xlu0 %v2848
        %v2850 = vpop.xlane.xlu0 %2849
        %v2851 = vrcp.pop 32.0
        %v2852 = vmul.f32 %v2843, %v2851
        %v2853 = vmul.f32 %v2846, %v2851
        %v2854 = vmul.f32 %v2850, %v2851
        %v2855 = vsub.f32 %v2824, %v2852
        %v2856 = vsub.f32 %v2827, %v2853
        %v2857 = vsub.f32 %v2832, %v2854
        %v2858 = vmul.f32 %v2855, %v2855
        %v2859 = vmul.f32 %v2856, %v2856
        %v2860 = vmul.f32 %v2857, %v2857
        %v2861 = vsel %vm1226, %v2858, 0.0
        %2862 = vadd.xlane.f32.xlu0 %v2861
        %v2863 = vpop.xlane.xlu0 %2862
        %v2864 = vsel %vm1226, %v2859, 0.0
        %2865 = vadd.xlane.f32.xlu0 %v2864
        %v2866 = vpop.xlane.xlu0 %2865
        %v2867 = vsel %vm2847, %v2860, 0.0
        %2868 = vadd.xlane.f32.xlu0 %v2867
        %v2869 = vpop.xlane.xlu0 %2868
        %v2870 = vmul.f32 %v2863, %v2851
        %v2871 = vmul.f32 %v2866, %v2851
        %v2872 = vmul.f32 %v2869, %v2851
        %v2873 = vadd.f32 %v2870, 1e-05
        %v2874 = vadd.f32 %v2871, 1e-05
        %v2875 = vadd.f32 %v2872, 1e-05
        %v2876 = vrsqrt.pop %v2873
        %v2877 = vrsqrt.pop %v2874
        %v2878 = vrsqrt.pop %v2875
        %v2879 = vmul.f32 %v2855, %v2876
        %v2880 = vmul.f32 %v2856, %v2877
        %v2881 = vmul.f32 %v2857, %v2878
        %v2883 = vlaneseq
        %v2884 = vshrl.u32 %v2883, 7
        %v2885 = vsub.s32 0, %v2884
        %v2886 = vrot.slane %v2838, %v2885
        %v2888 = vmul.f32 %v2879, %v2886
        %v2889 = vmul.f32 %v2880, %v2886
        %v2890 = vmul.f32 %v2881, %v2886
        %v2892 = vlaneseq
        %v2893 = vshrl.u32 %v2892, 7
        %v2894 = vsub.s32 0, %v2893
        %v2895 = vrot.slane %v2840, %v2894
        %v2897 = vadd.f32 %v2888, %v2895
        %v2898 = vadd.f32 %v2889, %v2895
        %v2899 = vadd.f32 %v2890, %v2895
        %v2900 = vmul.f32 %v2897, 0.5
        %v2901 = vmul.f32 %v2898, 0.5
        %v2902 = vmul.f32 %v2899, 0.5
        %v2903 = vmul.f32 %v2897, 0.70710677
        %v2904 = vmul.f32 %v2898, 0.70710677
        %v2905 = vmul.f32 %v2899, 0.70710677
        %vm2906 = vcmp.ge.f32.partialorder %v2903, 0.0
        %vm2907 = vcmp.ge.f32.partialorder %v2904, 0.0
        %vm2908 = vcmp.ge.f32.partialorder %v2905, 0.0
        %v2909 = vsel %vm2906, 1.0, -1.0
        %v2910 = vsel %vm2907, 1.0, -1.0
        %v2911 = vsel %vm2908, 1.0, -1.0
        %v2912 = vand.u32 2147483647, %v2903
        %v2913 = vand.u32 2147483647, %v2904
        %v2914 = vand.u32 2147483647, %v2905
        %v2915 = vmul.f32 %v2912, 0.3275911
        %v2916 = vmul.f32 %v2913, 0.3275911
        %v2917 = vmul.f32 %v2914, 0.3275911
        %v2918 = vadd.f32 %v2915, 1.0
        %v2919 = vadd.f32 %v2916, 1.0
        %v2920 = vadd.f32 %v2917, 1.0
        %v2921 = vrcp.pop %v2918
        %v2922 = vmul.f32 1.0, %v2921
        %v2923 = vrcp.pop %v2919
        %v2924 = vmul.f32 1.0, %v2923
        %v2925 = vrcp.pop %v2920
        %v2926 = vmul.f32 1.0, %v2925
        %v2927 = vmul.f32 %v2922, 1.0614054
        %v2928 = vmul.f32 %v2924, 1.0614054
        %v2929 = vmul.f32 %v2926, 1.0614054
        %v2930 = vadd.f32 %v2927, -1.4531521
        %v2931 = vadd.f32 %v2928, -1.4531521
        %v2932 = vadd.f32 %v2929, -1.4531521
        %v2933 = vmul.f32 %v2930, %v2922
        %v2934 = vmul.f32 %v2931, %v2924
        %v2935 = vmul.f32 %v2932, %v2926
        %v2936 = vadd.f32 %v2933, 1.4214138
        %v2937 = vadd.f32 %v2934, 1.4214138
        %v2938 = vadd.f32 %v2935, 1.4214138
        %v2939 = vmul.f32 %v2936, %v2922
        %v2940 = vmul.f32 %v2937, %v2924
        %v2941 = vmul.f32 %v2938, %v2926
        %v2942 = vadd.f32 %v2939, -0.28449672
        %v2943 = vadd.f32 %v2940, -0.28449672
        %v2944 = vadd.f32 %v2941, -0.28449672
        %v2945 = vmul.f32 %v2942, %v2922
        %v2946 = vmul.f32 %v2943, %v2924
        %v2947 = vmul.f32 %v2944, %v2926
        %v2948 = vadd.f32 %v2945, 0.2548296
        %v2949 = vadd.f32 %v2946, 0.2548296
        %v2950 = vadd.f32 %v2947, 0.2548296
        %v2951 = vmul.f32 %v2948, %v2922
        %v2952 = vmul.f32 %v2949, %v2924
        %v2953 = vmul.f32 %v2950, %v2926
        %v2954 = vsub.f32 0.0, %v2912
        %v2955 = vsub.f32 0.0, %v2913
        %v2956 = vsub.f32 0.0, %v2914
        %v2957 = vmul.f32 %v2954, %v2912
        %v2958 = vmul.f32 %v2955, %v2913
        %v2959 = vmul.f32 %v2956, %v2914
        %v2960 = vmul.f32 %v2957, 1.442695
        %v2961 = vpow.pop %v2960
        %v2962 = vmul.f32 %v2958, 1.442695
        %v2963 = vpow.pop %v2962
        %v2964 = vmul.f32 %v2959, 1.442695
        %v2965 = vpow.pop %v2964
        %v2966 = vmul.f32 %v2951, %v2961
        %v2967 = vmul.f32 %v2952, %v2963
        %v2968 = vmul.f32 %v2953, %v2965
        %v2969 = vsub.f32 1.0, %v2966
        %v2970 = vsub.f32 1.0, %v2967
        %v2971 = vsub.f32 1.0, %v2968
        %v2972 = vmul.f32 %v2909, %v2969
        %v2973 = vmul.f32 %v2910, %v2970
        %v2974 = vmul.f32 %v2911, %v2971
        %v2975 = vadd.f32 %v2972, 1.0
        %v2976 = vadd.f32 %v2973, 1.0
        %v2977 = vadd.f32 %v2974, 1.0
        %v2978 = vmul.f32 %v2900, %v2975
        %v2979 = vmul.f32 %v2901, %v2976
        %v2980 = vmul.f32 %v2902, %v2977
        %s2981 = scalar_lea.vmem %s69, %s90
        %v2982 = vld [vmem:[%s2981] sm:$0x1]
        %s2983 = scalar_lea.vmem %s71, %s90
        %v2984 = vld [vmem:[%s2983] sm:$0x1]
        %2986 = vset.pattern.permute.xlu0 0
        %2987 = vperm.xlu0 %2986, %v2984
        %v2988 = vpop.permute.xlu0 %2987
        %v2990 = vlaneseq
        %v2991 = vshrl.u32 %v2990, 7
        %v2992 = vsub.s32 0, %v2991
        %v2993 = vrot.slane %v2988, %v2992
        %v2995 = vsel %vm1226, %v2982, 0
        %v2998 = vsel %vm1226, %v2978, 0
        %v3001 = vsel %vm1226, %v2979, 0
        %v3004 = vsel %vm1226, %v2980, 0
        %3006 = vmatprep.subr.mxu0 0.0
        %3007 = vmatpush1.xpose.msra.mxu0 0.0
        %3008 = vmatprep.subr.mxu0 0.0
        %3009 = vmatpush1.xpose.msra.mxu0 0.0
        %3010 = vmatprep.subr.mxu0 0.0
        %3011 = vmatpush1.xpose.msra.mxu0 0.0
        %3012 = vmatprep.subr.mxu0 0.0
        %3013 = vmatpush1.xpose.msra.mxu0 0.0
        %3014 = vmatprep.subr.mxu0 0.0
        %3015 = vmatpush1.xpose.msra.mxu0 0.0
        %3016 = vmatprep.subr.mxu0 0.0
        %3017 = vmatpush1.xpose.msra.mxu0 0.0
        %3018 = vmatprep.subr.mxu0 0.0
        %3019 = vmatpush1.xpose.msra.mxu0 0.0
        %3020 = vmatprep.subr.mxu0 0.0
        %3021 = vmatpush1.xpose.msra.mxu0 0.0
        %3022 = vmatprep.subr.mxu0 0.0
        %3023 = vmatpush1.xpose.msra.mxu0 0.0
        %3024 = vmatprep.subr.mxu0 0.0
        %3025 = vmatpush1.xpose.msra.mxu0 0.0
        %3026 = vmatprep.subr.mxu0 0.0
        %3027 = vmatpush1.xpose.msra.mxu0 0.0
        %3028 = vmatprep.subr.mxu0 0.0
        %3029 = vmatpush1.xpose.msra.mxu0 0.0
        %3030 = vmatprep.subr.mxu0 0.0
        %3031 = vmatpush1.xpose.msra.mxu0 0.0
        %3032 = vmatprep.subr.mxu0 0.0
        %3033 = vmatpush1.xpose.msra.mxu0 %v3004
        %3034 = vmatprep.subr.mxu0 0.0
        %3035 = vmatpush1.xpose.msra.mxu0 %v3001
        %3036 = vmatprep.subr.mxu0 0.0
        %3037 = vmatpush1.xpose.msra.mxu0 %v2998
        %3038 = vmatprep.subr.mxu0 0.0
        %3039 = vmatpush2.xpose.msra.mxu0 0.0
        %3040 = vmatprep.subr.mxu0 0.0
        %3041 = vmatpush2.xpose.msra.mxu0 0.0
        %3042 = vmatprep.subr.mxu0 0.0
        %3043 = vmatpush2.xpose.msra.mxu0 0.0
        %3044 = vmatprep.subr.mxu0 0.0
        %3045 = vmatpush2.xpose.msra.mxu0 0.0
        %3046 = vmatprep.subr.mxu0 0.0
        %3047 = vmatpush2.xpose.msra.mxu0 0.0
        %3048 = vmatprep.subr.mxu0 0.0
        %3049 = vmatpush2.xpose.msra.mxu0 0.0
        %3050 = vmatprep.subr.mxu0 0.0
        %3051 = vmatpush2.xpose.msra.mxu0 0.0
        %3052 = vmatprep.subr.mxu0 0.0
        %3053 = vmatpush2.xpose.msra.mxu0 0.0
        %3054 = vmatprep.subr.mxu0 0.0
        %3055 = vmatpush2.xpose.msra.mxu0 0.0
        %3056 = vmatprep.subr.mxu0 0.0
        %3057 = vmatpush2.xpose.msra.mxu0 0.0
        %3058 = vmatprep.subr.mxu0 0.0
        %3059 = vmatpush2.xpose.msra.mxu0 0.0
        %3060 = vmatprep.subr.mxu0 0.0
        %3061 = vmatpush2.xpose.msra.mxu0 0.0
        %3062 = vmatprep.subr.mxu0 0.0
        %3063 = vmatpush2.xpose.msra.mxu0 0.0
        %3064 = vmatprep.subr.mxu0 0.0
        %3065 = vmatpush2.xpose.msra.mxu0 0.0
        %3066 = vmatprep.subr.mxu0 0.0
        %3067 = vmatpush2.xpose.msra.mxu0 0.0
        %3068 = vmatprep.subr.mxu0 0.0
        %3069 = vmatpush2.xpose.msra.mxu0 0.0
        %3070 = vmatprep.mubr.f32.mxu0 0.0
        %3071 = vmatmul.mubr.f32.gmra.mxu0 %v2995
        %v3072 = vpop.f32.mrf.mxu0
        %v3073 = vadd.f32 %v2993, %v3072
        %v3074 = vpop.f32.mrf.mxu0
        %3075 = vdwg.mxu0
        %vm3076 = vcmask 155648
        %3077 = vst.msk [vmem:[%s1133] sm:$0x1] %vm3076, %v3073
        %p3078 = scmp.lt.s32.totalorder %s90, 2
        %s3079 = scalar_select %p3078, %s90, 2
        %s3080 = scalar_lea.vmem %s73, %s3079
        %s3081 = sand.u32 %s885, 1
        %s3082 = scalar_lea.sflag [#allocation3], %s3081
        %s3083 = sand.u32 %s885, 1
        %s3084 = smul.addr %s3083, 16
        %s3085 = scalar_lea.vmem [#allocation2], %s3084
        // Predicated region
        $region165: #{_lambda_.1} parent=163 // pred_check
          %p3086 = pneg %p869
        $region166: #{_lambda_.1} parent=163 // pred_check_branch
          %3088 = sbr.rel (%p3086) target = $region168
        $region167: #{_lambda_.1} parent=163 // pred_region
          _
        $region168: #{_lambda_.1} parent=163 // pred_fallthru
          _
        // Predicated region
        $region169: #{_lambda_.1} parent=163 // pred_check
          %p3089 = pneg %p895
        $region170: #{_lambda_.1} parent=163 // pred_check_branch
          %3091 = sbr.rel (%p3089) target = $region172
        $region171: #{_lambda_.1} parent=163 // pred_region
          %s3093 = ssub.s32 256, 256
          %3094 = vsyncadd %s3082, %s3093
          %s3095 = smul.addr %s90, 2
          %s3096 = smul.addr %s3095, 128
          %s3097 = scalar_lea.hbm %s75, %s3096
          %s3098 = sshll.u32 %s3085, 4
          %s3099 = int_to_ptr.vmem [resolvable:$true] %s3098
          %3104 = dma.vmem_to_hbm [thread:$0]  %s3099, 256, %s3097, %s3082, 128, 128, 8
        $region172: #{_lambda_.1} parent=163 // pred_fallthru
          _
      $region164: #{_lambda_.1} parent=5 // pred_fallthru
        _
      %p3105 = scmp.le.s32.totalorder 2, %s85
      // Predicated region
      $region173: #{_lambda_.1} parent=5 // pred_check
        %p3106 = pneg %p3105
      $region174: #{_lambda_.1} parent=5 // pred_check_branch
        %3108 = sbr.rel (%p3106) target = $region176
      $region175: #{_lambda_.1} parent=5 // pred_region
        %s3109 = ssub.s32 %s85, 2
        // Predicated region
        $region177: #{_lambda_.1} parent=175 // pred_check
          %p3110 = pneg %p875
        $region178: #{_lambda_.1} parent=175 // pred_check_branch
          %3112 = sbr.rel (%p3110) target = $region180
        $region179: #{_lambda_.1} parent=175 // pred_region
          %p3113 = scmp.lt.s32.totalorder %s91, 2
          %s3114 = scalar_select %p3113, %s91, 2
          %s3115 = scalar_lea.vmem %s73, %s3114
        $region180: #{_lambda_.1} parent=175 // pred_fallthru
          _
        // Predicated region
        $region181: #{_lambda_.1} parent=175 // pred_check
          %p3116 = pneg %p901
        $region182: #{_lambda_.1} parent=175 // pred_check_branch
          %3118 = sbr.rel (%p3116) target = $region184
        $region183: #{_lambda_.1} parent=175 // pred_region
          %s3119 = sand.u32 %s886, 1
          %s3120 = scalar_lea.sflag [#allocation3], %s3119
          %s3121 = sand.u32 %s886, 1
          %s3122 = smul.addr %s3121, 16
          %s3123 = scalar_lea.vmem [#allocation2], %s3122
          %3124 = dma.done %s3120, 256
        $region184: #{_lambda_.1} parent=175 // pred_fallthru
          _
      $region176: #{_lambda_.1} parent=5 // pred_fallthru
        _
    $region6: #{_lambda_.1} parent=1 // loop_footer
      %s89 = sadd.s32 1, %s85
    $region7: #{_lambda_.1} parent=1 // loop_footer_branch
      %84 = sbr.rel target = $region3
    $region8: #{_lambda_.1} parent=1 // loop_exit
      _
    %3125 = vsyncpa [#allocation3], 1
    %s3126 = scalar_lea.sflag [#allocation3], 1
    %3127 = vsyncpa %s3126, 1

</llo_original>
